<compile_context>
chip_gen: v6e
topology: v6e:2x2x1
jax: 0.10.0
libtpu: 0.0.40
codegen_flags: <defaults>
</compile_context>

<pallas_src>
import jax
import jax.numpy as jnp
import numpy as np
from jax.experimental import pallas as pl
from jax.experimental.pallas import tpu as pltpu

_EPS = 1e-5

# bf16 operands are the rated MXU path on v6e/v7x (~2x rate, half the conv-slab VMEM),
# but the bf16 input/weight rounding pushes the block output error to ~1e-2, above the
# 2e-3 check below, so the default stays f32 (BN stats / accumulation are f32 always).
MATMUL_DTYPE = jnp.float32


def _stats_kernel(x_ref, sum_ref, ssq_ref):
    """Per-image partial BN statistics (sum, sum of squares) of a (C, Npix) slab."""
    v = x_ref[0]                                          # (C, NPIX), halo/pad lanes = 0
    sum_ref[0] = jnp.sum(v, axis=1, keepdims=True)        # (C, 1)
    ssq_ref[0] = jnp.sum(v * v, axis=1, keepdims=True)


def _make_conv3x3_stage_kernel(C, NPIX, Wp, GUARD):
    """bn-affine -> 3x3 conv (9 shifted matmuls) -> relu -> residual -> partial stats."""
    # tap k = (dh+1)*3 + (dw+1)  <->  lane shift dh*Wp + dw inside one padded image
    TAP_OFFS = tuple(dh * Wp + dw for dh in (-1, 0, 1) for dw in (-1, 0, 1))

    def kernel(prev_ref, scale_ref, shift_ref, mask_ref, w_ref,
               out_ref, sum_ref, ssq_ref, pad_ref):
        prev = prev_ref[0]                       # (C, NPIX) current image, halo lanes = 0
        mask = mask_ref[...]                     # (1, NPIX): 1 on real pixels, 0 on halo
        # BN folded to a per-channel affine; re-mask so the halo stays exactly zero.
        bn = (prev * scale_ref[...] + shift_ref[...]) * mask

        # Zero-guarded conv-input slab: one dense lane-aligned store; the 9 taps are
        # read back as (slightly unaligned) lane slices -- no im2col materialization.
        zero_guard = jnp.zeros((C, GUARD), MATMUL_DTYPE)
        pad_ref[:, 0:GUARD] = zero_guard
        pad_ref[:, GUARD + NPIX:GUARD + NPIX + GUARD] = zero_guard
        pad_ref[:, GUARD:GUARD + NPIX] = bn.astype(MATMUL_DTYPE)

        acc = jnp.zeros((C, NPIX), jnp.float32)
        for k, off in enumerate(TAP_OFFS):       # unrolled; 9 small-K, lane-wide matmuls
            w_k = w_ref[k * C:(k + 1) * C, :]                     # (Cout, Cin)
            tap = pad_ref[:, GUARD + off:GUARD + off + NPIX]      # (Cin, NPIX)
            acc = acc + jnp.dot(w_k, tap, preferred_element_type=jnp.float32)

        # relu + residual; mask returns the halo (and lane padding) to exactly zero.
        out = (jnp.maximum(acc, 0.0) + prev) * mask
        out_ref[0] = out
        # Per-image partial batch stats for the NEXT stage's BN (two-pass BN).
        sum_ref[0] = jnp.sum(out, axis=1, keepdims=True)
        ssq_ref[0] = jnp.sum(out * out, axis=1, keepdims=True)

    return kernel


def _make_conv1x1_stage_kernel(C, NPIX):
    """bn-affine -> 1x1 conv (single matmul) -> relu -> residual (final stage)."""
    def kernel(prev_ref, scale_ref, shift_ref, w_ref, out_ref):
        prev = prev_ref[0]                                   # (C, NPIX)
        bn = prev * scale_ref[...] + shift_ref[...]          # 1x1 conv: no halo masking
        conv = jnp.dot(w_ref[...], bn.astype(MATMUL_DTYPE),  # (Cout,Cin)@(Cin,NPIX)
                       preferred_element_type=jnp.float32)
        # Halo lanes of `conv` are garbage; the wrapper slices them away and nothing
        # downstream reads them (this is the last stage).
        out_ref[0] = jnp.maximum(conv, 0.0) + prev
    return kernel


def _bn_affine(sum_b, ssq_b, gamma, beta, n_valid):
    """Combine per-image partials into the per-channel BN affine (scale, shift)."""
    s = jnp.sum(sum_b, axis=0)[:, 0]                         # (C,)
    ss = jnp.sum(ssq_b, axis=0)[:, 0]
    mean = s / n_valid
    # One-pass E[x^2]-mean^2; clamp at 0 to guard against cancellation -> rsqrt(NaN).
    var = jnp.maximum(ss / n_valid - mean * mean, 0.0)
    inv = jax.lax.rsqrt(var + _EPS)
    scale = gamma.astype(jnp.float32) * inv
    shift = beta.astype(jnp.float32) - mean * scale
    return scale.reshape(-1, 1), shift.reshape(-1, 1)


@jax.jit
def eb_deep_basic_block(x_nchw, params):
    g1, b1, g2, b2, g3, b3, w1, w2, w3 = params
    B, C, H, W = x_nchw.shape
    Hp, Wp = H + 2, W + 2
    NPIX_real = Hp * Wp
    NPIX = ((NPIX_real + 127) // 128) * 128        # lane-dense padded spatial extent
    GUARD = ((Wp + 1 + 127) // 128) * 128          # lane-tile-aligned zero guard
    n_valid = float(B * H * W)

    # ---- layout plumbing (plain XLA): NCHW -> per-image channel-major (C, NPIX) slabs
    xp = jnp.pad(x_nchw.astype(jnp.float32), ((0, 0), (0, 0), (1, 1), (1, 1)))
    xT = jnp.pad(xp.reshape(B, C, NPIX_real),
                 ((0, 0), (0, 0), (0, NPIX - NPIX_real)))                    # (B,C,NPIX)
    mask = jnp.pad(jnp.pad(jnp.ones((H, W), jnp.float32),
                           ((1, 1), (1, 1))).reshape(1, NPIX_real),
                   ((0, 0), (0, NPIX - NPIX_real)))                          # (1, NPIX)

    # 3x3 weights HWIO (3,3,Cin,Cout) -> stacked per-tap transposed (9*Cout, Cin) LHS
    w1T = jnp.transpose(w1, (0, 1, 3, 2)).reshape(9 * C, C).astype(MATMUL_DTYPE)
    w2T = jnp.transpose(w2, (0, 1, 3, 2)).reshape(9 * C, C).astype(MATMUL_DTYPE)
    w3T = jnp.transpose(w3, (1, 0)).astype(MATMUL_DTYPE)                     # (Cout, Cin)

    act_spec = pl.BlockSpec((1, C, NPIX), lambda b: (b, 0, 0))
    vecC_spec = pl.BlockSpec((C, 1), lambda b: (0, 0))
    mask_spec = pl.BlockSpec((1, NPIX), lambda b: (0, 0))
    stat_spec = pl.BlockSpec((1, C, 1), lambda b: (b, 0, 0))
    parallel = pltpu.CompilerParams(dimension_semantics=("parallel",))
    act_shape = jax.ShapeDtypeStruct((B, C, NPIX), jnp.float32)
    stat_shape = jax.ShapeDtypeStruct((B, C, 1), jnp.float32)

    # pass 0: per-image partial batch stats of x (two-pass BN, reduction pass)
    s0, q0 = pl.pallas_call(
        _stats_kernel,
        out_shape=(stat_shape, stat_shape),
        grid=(B,),
        in_specs=[act_spec],
        out_specs=(stat_spec, stat_spec),
        compiler_params=parallel,
    )(xT)

    conv3_kernel = _make_conv3x3_stage_kernel(C, NPIX, Wp, GUARD)

    def conv3_stage(prev, scale, shift, w9T):
        return pl.pallas_call(
            conv3_kernel,
            out_shape=(act_shape, stat_shape, stat_shape),
            grid=(B,),
            in_specs=[act_spec, vecC_spec, vecC_spec, mask_spec,
                      pl.BlockSpec((9 * C, C), lambda b: (0, 0))],
            out_specs=(act_spec, stat_spec, stat_spec),
            scratch_shapes=[pltpu.VMEM((C, NPIX + 2 * GUARD), MATMUL_DTYPE)],
            compiler_params=parallel,
        )(prev, scale, shift, mask, w9T)

    # stage 1: out1 = relu(conv3x3(bn1(x))) + x        (+ partial stats of out1)
    scale1, shift1 = _bn_affine(s0, q0, g1, b1, n_valid)
    out1, s1, q1 = conv3_stage(xT, scale1, shift1, w1T)

    # stage 2: out2 = relu(conv3x3(bn2(out1))) + out1  (+ partial stats of out2)
    scale2, shift2 = _bn_affine(s1, q1, g2, b2, n_valid)
    out2, s2, q2 = conv3_stage(out1, scale2, shift2, w2T)

    # stage 3: out3 = relu(conv1x1(bn3(out2))) + out2
    scale3, shift3 = _bn_affine(s2, q2, g3, b3, n_valid)
    out3 = pl.pallas_call(
        _make_conv1x1_stage_kernel(C, NPIX),
        out_shape=act_shape,
        grid=(B,),
        in_specs=[act_spec, vecC_spec, vecC_spec,
                  pl.BlockSpec((C, C), lambda b: (0, 0))],
        out_specs=act_spec,
        compiler_params=parallel,
    )(out2, scale3, shift3, w3T)

    # channel-major, halo-padded -> NCHW real pixels
    out = out3[:, :, :NPIX_real].reshape(B, C, Hp, Wp)[:, :, 1:H + 1, 1:W + 1]
    return out


def reference(x_nchw, params):
    """Pure-JAX reference for correctness checking."""
    g1, b1, g2, b2, g3, b3, w1, w2, w3 = params
    x = jnp.transpose(x_nchw, (0, 2, 3, 1))

    def bn(t, gamma, beta):
        mean = jnp.mean(t, axis=(0, 1, 2), keepdims=True)
        var = jnp.mean((t - mean) ** 2, axis=(0, 1, 2), keepdims=True)
        return (t - mean) * jax.lax.rsqrt(var + _EPS) * gamma + beta

    def conv3(t, w):
        return jax.lax.conv_general_dilated(
            t, w, window_strides=(1, 1), padding=((1, 1), (1, 1)),
            dimension_numbers=("NHWC", "HWIO", "NHWC"))

    out1 = jnp.maximum(conv3(bn(x, g1, b1), w1), 0.0) + x
    out2 = jnp.maximum(conv3(bn(out1, g2, b2), w2), 0.0) + out1
    out3 = jnp.maximum(jnp.einsum("bhwc,cd->bhwd", bn(out2, g3, b3), w3), 0.0) + out2
    return jnp.transpose(out3, (0, 3, 1, 2))


if __name__ == "__main__":
    # Small shapes consistent with the module: inplanes == planes (stride=1, no downsample).
    B, C, H, W = 2, 16, 16, 16
    key = jax.random.PRNGKey(0)
    ks = jax.random.split(key, 10)

    x = jax.random.normal(ks[0], (B, C, H, W), jnp.float32)
    g1 = 1.0 + 0.1 * jax.random.normal(ks[1], (C,), jnp.float32)
    b1 = 0.1 * jax.random.normal(ks[2], (C,), jnp.float32)
    g2 = 1.0 + 0.1 * jax.random.normal(ks[3], (C,), jnp.float32)
    b2 = 0.1 * jax.random.normal(ks[4], (C,), jnp.float32)
    g3 = 1.0 + 0.1 * jax.random.normal(ks[5], (C,), jnp.float32)
    b3 = 0.1 * jax.random.normal(ks[6], (C,), jnp.float32)
    w1 = 0.1 * jax.random.normal(ks[7], (3, 3, C, C), jnp.float32)  # HWIO (3x3 conv)
    w2 = 0.1 * jax.random.normal(ks[8], (3, 3, C, C), jnp.float32)  # HWIO (3x3 conv)
    w3 = 0.1 * jax.random.normal(ks[9], (C, C), jnp.float32)        # (Cin, Cout) (1x1 conv)
    params = (g1, b1, g2, b2, g3, b3, w1, w2, w3)

    out = jax.block_until_ready(eb_deep_basic_block(x, params))
    ref = jax.block_until_ready(reference(x, params))
    np.testing.assert_allclose(np.asarray(out), np.asarray(ref), rtol=2e-3, atol=2e-3)
    print("KERNEL_OK")
</pallas_src>

<mosaic_0001>
module attributes {stable_mosaic.version = 11 : i64} {
  func.func @_stats_kernel(%arg0: i32, %arg1: memref<1x16x384xf32, #tpu.memory_space<vmem>>, %arg2: memref<1x16x1xf32, #tpu.memory_space<vmem>>, %arg3: memref<1x16x1xf32, #tpu.memory_space<vmem>>) attributes {dimension_semantics = [#tpu.dimension_semantics<parallel>], iteration_bounds = array<i64: 2>, scalar_prefetch = 0 : i64, scratch_operands = 0 : i64, tpu.core_type = #tpu.core_type<tc>, window_params = [{transform_indices = @transform_0, window_bounds = array<i64: 1, 16, 384>}, {transform_indices = @transform_1, window_bounds = array<i64: 1, 16, 1>}, {transform_indices = @transform_2, window_bounds = array<i64: 1, 16, 1>}]} {
    %c0 = arith.constant 0 : index
    %c0_0 = arith.constant 0 : index
    %c0_1 = arith.constant 0 : index
    %0 = vector.load %arg1[%c0, %c0_0, %c0_1] : memref<1x16x384xf32, #tpu.memory_space<vmem>>, vector<1x16x384xf32>
    %1 = vector.shape_cast %0 : vector<1x16x384xf32> to vector<16x384xf32>
    %cst = arith.constant dense<0.000000e+00> : vector<16xf32>
    %2 = vector.multi_reduction <add>, %1, %cst [1] : vector<16x384xf32> to vector<16xf32>
    %3 = vector.shape_cast %2 : vector<16xf32> to vector<16x1xf32>
    %c0_2 = arith.constant 0 : index
    %c0_3 = arith.constant 0 : index
    %c0_4 = arith.constant 0 : index
    %4 = vector.load %arg2[%c0_2, %c0_3, %c0_4] : memref<1x16x1xf32, #tpu.memory_space<vmem>>, vector<1x16x1xf32>
    %5 = vector.shape_cast %4 : vector<1x16x1xf32> to vector<16x1xf32>
    %6 = vector.shape_cast %3 : vector<16x1xf32> to vector<1x16x1xf32>
    tpu.vector_store %arg2[%c0_2, %c0_3, %c0_4], %6 {strides = array<i32>} : memref<1x16x1xf32, #tpu.memory_space<vmem>>, vector<1x16x1xf32>,
    %7 = arith.mulf %1, %1 : vector<16x384xf32>
    %cst_5 = arith.constant dense<0.000000e+00> : vector<16xf32>
    %8 = vector.multi_reduction <add>, %7, %cst_5 [1] : vector<16x384xf32> to vector<16xf32>
    %9 = vector.shape_cast %8 : vector<16xf32> to vector<16x1xf32>
    %c0_6 = arith.constant 0 : index
    %c0_7 = arith.constant 0 : index
    %c0_8 = arith.constant 0 : index
    %10 = vector.load %arg3[%c0_6, %c0_7, %c0_8] : memref<1x16x1xf32, #tpu.memory_space<vmem>>, vector<1x16x1xf32>
    %11 = vector.shape_cast %10 : vector<1x16x1xf32> to vector<16x1xf32>
    %12 = vector.shape_cast %9 : vector<16x1xf32> to vector<1x16x1xf32>
    tpu.vector_store %arg3[%c0_6, %c0_7, %c0_8], %12 {strides = array<i32>} : memref<1x16x1xf32, #tpu.memory_space<vmem>>, vector<1x16x1xf32>,
    return
  }
  func.func @transform_0(%arg0: i32) -> (i32, i32, i32) {
    %c0_i32 = arith.constant 0 : i32
    %c0_i32_0 = arith.constant 0 : i32
    %c0_i32_1 = arith.constant 0 : i32
    return %arg0, %c0_i32, %c0_i32_0 : i32, i32, i32
  }
  func.func @transform_1(%arg0: i32) -> (i32, i32, i32) {
    %c0_i32 = arith.constant 0 : i32
    %c0_i32_0 = arith.constant 0 : i32
    %c0_i32_1 = arith.constant 0 : i32
    return %arg0, %c0_i32, %c0_i32_0 : i32, i32, i32
  }
  func.func @transform_2(%arg0: i32) -> (i32, i32, i32) {
    %c0_i32 = arith.constant 0 : i32
    %c0_i32_0 = arith.constant 0 : i32
    %c0_i32_1 = arith.constant 0 : i32
    return %arg0, %c0_i32, %c0_i32_0 : i32, i32, i32
  }
}

module attributes {stable_mosaic.version = 11 : i64} {
  func.func @kernel(%arg0: i32, %arg1: memref<1x16x384xf32, #tpu.memory_space<vmem>>, %arg2: memref<16x1xf32, #tpu.memory_space<vmem>>, %arg3: memref<16x1xf32, #tpu.memory_space<vmem>>, %arg4: memref<1x384xf32, #tpu.memory_space<vmem>>, %arg5: memref<144x16xf32, #tpu.memory_space<vmem>>, %arg6: memref<1x16x384xf32, #tpu.memory_space<vmem>>, %arg7: memref<1x16x1xf32, #tpu.memory_space<vmem>>, %arg8: memref<1x16x1xf32, #tpu.memory_space<vmem>>, %arg9: memref<16x640xf32, #tpu.memory_space<vmem>>) attributes {dimension_semantics = [#tpu.dimension_semantics<parallel>], iteration_bounds = array<i64: 2>, scalar_prefetch = 0 : i64, scratch_operands = 1 : i64, tpu.core_type = #tpu.core_type<tc>, window_params = [{transform_indices = @transform_0, window_bounds = array<i64: 1, 16, 384>}, {pipeline_mode = #tpu.pipeline_mode<synchronous>, transform_indices = @transform_1, window_bounds = array<i64: 16, 1>}, {pipeline_mode = #tpu.pipeline_mode<synchronous>, transform_indices = @transform_2, window_bounds = array<i64: 16, 1>}, {pipeline_mode = #tpu.pipeline_mode<synchronous>, transform_indices = @transform_3, window_bounds = array<i64: 1, 384>}, {pipeline_mode = #tpu.pipeline_mode<synchronous>, transform_indices = @transform_4, window_bounds = array<i64: 144, 16>}, {transform_indices = @transform_5, window_bounds = array<i64: 1, 16, 384>}, {transform_indices = @transform_6, window_bounds = array<i64: 1, 16, 1>}, {transform_indices = @transform_7, window_bounds = array<i64: 1, 16, 1>}]} {
    %c0 = arith.constant 0 : index
    %c0_0 = arith.constant 0 : index
    %c0_1 = arith.constant 0 : index
    %0 = vector.load %arg1[%c0, %c0_0, %c0_1] : memref<1x16x384xf32, #tpu.memory_space<vmem>>, vector<1x16x384xf32>
    %1 = vector.shape_cast %0 : vector<1x16x384xf32> to vector<16x384xf32>
    %c0_2 = arith.constant 0 : index
    %c0_3 = arith.constant 0 : index
    %2 = vector.load %arg4[%c0_2, %c0_3] : memref<1x384xf32, #tpu.memory_space<vmem>>, vector<1x384xf32>
    %c0_4 = arith.constant 0 : index
    %c0_5 = arith.constant 0 : index
    %3 = vector.load %arg2[%c0_4, %c0_5] : memref<16x1xf32, #tpu.memory_space<vmem>>, vector<16x1xf32>
    %4 = vector.broadcast %3 : vector<16x1xf32> to vector<16x384xf32>
    %5 = arith.mulf %1, %4 : vector<16x384xf32>
    %c0_6 = arith.constant 0 : index
    %c0_7 = arith.constant 0 : index
    %6 = vector.load %arg3[%c0_6, %c0_7] : memref<16x1xf32, #tpu.memory_space<vmem>>, vector<16x1xf32>
    %7 = vector.broadcast %6 : vector<16x1xf32> to vector<16x384xf32>
    %8 = arith.addf %5, %7 : vector<16x384xf32>
    %9 = vector.broadcast %2 : vector<1x384xf32> to vector<16x384xf32>
    %10 = arith.mulf %8, %9 : vector<16x384xf32>
    %cst = arith.constant 0.000000e+00 : f32
    %11 = vector.broadcast %cst : f32 to vector<16x128xf32>
    %c0_8 = arith.constant 0 : index
    %c0_9 = arith.constant 0 : index
    %12 = vector.load %arg9[%c0_8, %c0_9] : memref<16x640xf32, #tpu.memory_space<vmem>>, vector<16x128xf32>
    tpu.vector_store %arg9[%c0_8, %c0_9], %11 {strides = array<i32>} : memref<16x640xf32, #tpu.memory_space<vmem>>, vector<16x128xf32>,
    %c0_10 = arith.constant 0 : index
    %c512 = arith.constant 512 : index
    %13 = vector.load %arg9[%c0_10, %c512] : memref<16x640xf32, #tpu.memory_space<vmem>>, vector<16x128xf32>
    tpu.vector_store %arg9[%c0_10, %c512], %11 {strides = array<i32>} : memref<16x640xf32, #tpu.memory_space<vmem>>, vector<16x128xf32>,
    %c0_11 = arith.constant 0 : index
    %c128 = arith.constant 128 : index
    %14 = vector.load %arg9[%c0_11, %c128] : memref<16x640xf32, #tpu.memory_space<vmem>>, vector<16x384xf32>
    tpu.vector_store %arg9[%c0_11, %c128], %10 {strides = array<i32>} : memref<16x640xf32, #tpu.memory_space<vmem>>, vector<16x384xf32>,
    %cst_12 = arith.constant 0.000000e+00 : f32
    %15 = vector.broadcast %cst_12 : f32 to vector<16x384xf32>
    %c0_13 = arith.constant 0 : index
    %c0_14 = arith.constant 0 : index
    %16 = vector.load %arg5[%c0_13, %c0_14] : memref<144x16xf32, #tpu.memory_space<vmem>>, vector<16x16xf32>
    %c0_15 = arith.constant 0 : index
    %c109 = arith.constant 109 : index
    %17 = vector.load %arg9[%c0_15, %c109] : memref<16x640xf32, #tpu.memory_space<vmem>>, vector<16x384xf32>
    %cst_16 = arith.constant dense<0.000000e+00> : vector<16x384xf32>
    %18 = tpu.matmul %16, %17, %cst_16 {dimension_numbers = #tpu.dot_dimension_numbers<[1], [0], [0], [1], [0, 0, 1, 1], [], []>} : vector<16x16xf32>, vector<16x384xf32>, vector<16x384xf32> -> vector<16x384xf32>
    %19 = arith.addf %15, %18 : vector<16x384xf32>
    %c16 = arith.constant 16 : index
    %c0_17 = arith.constant 0 : index
    %20 = vector.load %arg5[%c16, %c0_17] : memref<144x16xf32, #tpu.memory_space<vmem>>, vector<16x16xf32>
    %c0_18 = arith.constant 0 : index
    %c110 = arith.constant 110 : index
    %21 = vector.load %arg9[%c0_18, %c110] : memref<16x640xf32, #tpu.memory_space<vmem>>, vector<16x384xf32>
    %cst_19 = arith.constant dense<0.000000e+00> : vector<16x384xf32>
    %22 = tpu.matmul %20, %21, %cst_19 {dimension_numbers = #tpu.dot_dimension_numbers<[1], [0], [0], [1], [0, 0, 1, 1], [], []>} : vector<16x16xf32>, vector<16x384xf32>, vector<16x384xf32> -> vector<16x384xf32>
    %23 = arith.addf %19, %22 : vector<16x384xf32>
    %c32 = arith.constant 32 : index
    %c0_20 = arith.constant 0 : index
    %24 = vector.load %arg5[%c32, %c0_20] : memref<144x16xf32, #tpu.memory_space<vmem>>, vector<16x16xf32>
    %c0_21 = arith.constant 0 : index
    %c111 = arith.constant 111 : index
    %25 = vector.load %arg9[%c0_21, %c111] : memref<16x640xf32, #tpu.memory_space<vmem>>, vector<16x384xf32>
    %cst_22 = arith.constant dense<0.000000e+00> : vector<16x384xf32>
    %26 = tpu.matmul %24, %25, %cst_22 {dimension_numbers = #tpu.dot_dimension_numbers<[1], [0], [0], [1], [0, 0, 1, 1], [], []>} : vector<16x16xf32>, vector<16x384xf32>, vector<16x384xf32> -> vector<16x384xf32>
    %27 = arith.addf %23, %26 : vector<16x384xf32>
    %c48 = arith.constant 48 : index
    %c0_23 = arith.constant 0 : index
    %28 = vector.load %arg5[%c48, %c0_23] : memref<144x16xf32, #tpu.memory_space<vmem>>, vector<16x16xf32>
    %c0_24 = arith.constant 0 : index
    %c127 = arith.constant 127 : index
    %29 = vector.load %arg9[%c0_24, %c127] : memref<16x640xf32, #tpu.memory_space<vmem>>, vector<16x384xf32>
    %cst_25 = arith.constant dense<0.000000e+00> : vector<16x384xf32>
    %30 = tpu.matmul %28, %29, %cst_25 {dimension_numbers = #tpu.dot_dimension_numbers<[1], [0], [0], [1], [0, 0, 1, 1], [], []>} : vector<16x16xf32>, vector<16x384xf32>, vector<16x384xf32> -> vector<16x384xf32>
    %31 = arith.addf %27, %30 : vector<16x384xf32>
    %c64 = arith.constant 64 : index
    %c0_26 = arith.constant 0 : index
    %32 = vector.load %arg5[%c64, %c0_26] : memref<144x16xf32, #tpu.memory_space<vmem>>, vector<16x16xf32>
    %c0_27 = arith.constant 0 : index
    %c128_28 = arith.constant 128 : index
    %33 = vector.load %arg9[%c0_27, %c128_28] : memref<16x640xf32, #tpu.memory_space<vmem>>, vector<16x384xf32>
    %cst_29 = arith.constant dense<0.000000e+00> : vector<16x384xf32>
    %34 = tpu.matmul %32, %33, %cst_29 {dimension_numbers = #tpu.dot_dimension_numbers<[1], [0], [0], [1], [0, 0, 1, 1], [], []>} : vector<16x16xf32>, vector<16x384xf32>, vector<16x384xf32> -> vector<16x384xf32>
    %35 = arith.addf %31, %34 : vector<16x384xf32>
    %c80 = arith.constant 80 : index
    %c0_30 = arith.constant 0 : index
    %36 = vector.load %arg5[%c80, %c0_30] : memref<144x16xf32, #tpu.memory_space<vmem>>, vector<16x16xf32>
    %c0_31 = arith.constant 0 : index
    %c129 = arith.constant 129 : index
    %37 = vector.load %arg9[%c0_31, %c129] : memref<16x640xf32, #tpu.memory_space<vmem>>, vector<16x384xf32>
    %cst_32 = arith.constant dense<0.000000e+00> : vector<16x384xf32>
    %38 = tpu.matmul %36, %37, %cst_32 {dimension_numbers = #tpu.dot_dimension_numbers<[1], [0], [0], [1], [0, 0, 1, 1], [], []>} : vector<16x16xf32>, vector<16x384xf32>, vector<16x384xf32> -> vector<16x384xf32>
    %39 = arith.addf %35, %38 : vector<16x384xf32>
    %c96 = arith.constant 96 : index
    %c0_33 = arith.constant 0 : index
    %40 = vector.load %arg5[%c96, %c0_33] : memref<144x16xf32, #tpu.memory_space<vmem>>, vector<16x16xf32>
    %c0_34 = arith.constant 0 : index
    %c145 = arith.constant 145 : index
    %41 = vector.load %arg9[%c0_34, %c145] : memref<16x640xf32, #tpu.memory_space<vmem>>, vector<16x384xf32>
    %cst_35 = arith.constant dense<0.000000e+00> : vector<16x384xf32>
    %42 = tpu.matmul %40, %41, %cst_35 {dimension_numbers = #tpu.dot_dimension_numbers<[1], [0], [0], [1], [0, 0, 1, 1], [], []>} : vector<16x16xf32>, vector<16x384xf32>, vector<16x384xf32> -> vector<16x384xf32>
    %43 = arith.addf %39, %42 : vector<16x384xf32>
    %c112 = arith.constant 112 : index
    %c0_36 = arith.constant 0 : index
    %44 = vector.load %arg5[%c112, %c0_36] : memref<144x16xf32, #tpu.memory_space<vmem>>, vector<16x16xf32>
    %c0_37 = arith.constant 0 : index
    %c146 = arith.constant 146 : index
    %45 = vector.load %arg9[%c0_37, %c146] : memref<16x640xf32, #tpu.memory_space<vmem>>, vector<16x384xf32>
    %cst_38 = arith.constant dense<0.000000e+00> : vector<16x384xf32>
    %46 = tpu.matmul %44, %45, %cst_38 {dimension_numbers = #tpu.dot_dimension_numbers<[1], [0], [0], [1], [0, 0, 1, 1], [], []>} : vector<16x16xf32>, vector<16x384xf32>, vector<16x384xf32> -> vector<16x384xf32>
    %47 = arith.addf %43, %46 : vector<16x384xf32>
    %c128_39 = arith.constant 128 : index
    %c0_40 = arith.constant 0 : index
    %48 = vector.load %arg5[%c128_39, %c0_40] : memref<144x16xf32, #tpu.memory_space<vmem>>, vector<16x16xf32>
    %c0_41 = arith.constant 0 : index
    %c147 = arith.constant 147 : index
    %49 = vector.load %arg9[%c0_41, %c147] : memref<16x640xf32, #tpu.memory_space<vmem>>, vector<16x384xf32>
    %cst_42 = arith.constant dense<0.000000e+00> : vector<16x384xf32>
    %50 = tpu.matmul %48, %49, %cst_42 {dimension_numbers = #tpu.dot_dimension_numbers<[1], [0], [0], [1], [0, 0, 1, 1], [], []>} : vector<16x16xf32>, vector<16x384xf32>, vector<16x384xf32> -> vector<16x384xf32>
    %51 = arith.addf %47, %50 : vector<16x384xf32>
    %cst_43 = arith.constant 0.000000e+00 : f32
    %52 = vector.broadcast %cst_43 : f32 to vector<16x384xf32>
    %53 = arith.maximumf %51, %52 : vector<16x384xf32>
    %54 = arith.addf %53, %1 : vector<16x384xf32>
    %55 = vector.broadcast %2 : vector<1x384xf32> to vector<16x384xf32>
    %56 = arith.mulf %54, %55 : vector<16x384xf32>
    %c0_44 = arith.constant 0 : index
    %c0_45 = arith.constant 0 : index
    %c0_46 = arith.constant 0 : index
    %57 = vector.load %arg6[%c0_44, %c0_45, %c0_46] : memref<1x16x384xf32, #tpu.memory_space<vmem>>, vector<1x16x384xf32>
    %58 = vector.shape_cast %57 : vector<1x16x384xf32> to vector<16x384xf32>
    %59 = vector.shape_cast %56 : vector<16x384xf32> to vector<1x16x384xf32>
    tpu.vector_store %arg6[%c0_44, %c0_45, %c0_46], %59 {strides = array<i32>} : memref<1x16x384xf32, #tpu.memory_space<vmem>>, vector<1x16x384xf32>,
    %cst_47 = arith.constant dense<0.000000e+00> : vector<16xf32>
    %60 = vector.multi_reduction <add>, %56, %cst_47 [1] : vector<16x384xf32> to vector<16xf32>
    %61 = vector.shape_cast %60 : vector<16xf32> to vector<16x1xf32>
    %c0_48 = arith.constant 0 : index
    %c0_49 = arith.constant 0 : index
    %c0_50 = arith.constant 0 : index
    %62 = vector.load %arg7[%c0_48, %c0_49, %c0_50] : memref<1x16x1xf32, #tpu.memory_space<vmem>>, vector<1x16x1xf32>
    %63 = vector.shape_cast %62 : vector<1x16x1xf32> to vector<16x1xf32>
    %64 = vector.shape_cast %61 : vector<16x1xf32> to vector<1x16x1xf32>
    tpu.vector_store %arg7[%c0_48, %c0_49, %c0_50], %64 {strides = array<i32>} : memref<1x16x1xf32, #tpu.memory_space<vmem>>, vector<1x16x1xf32>,
    %65 = arith.mulf %56, %56 : vector<16x384xf32>
    %cst_51 = arith.constant dense<0.000000e+00> : vector<16xf32>
    %66 = vector.multi_reduction <add>, %65, %cst_51 [1] : vector<16x384xf32> to vector<16xf32>
    %67 = vector.shape_cast %66 : vector<16xf32> to vector<16x1xf32>
    %c0_52 = arith.constant 0 : index
    %c0_53 = arith.constant 0 : index
    %c0_54 = arith.constant 0 : index
    %68 = vector.load %arg8[%c0_52, %c0_53, %c0_54] : memref<1x16x1xf32, #tpu.memory_space<vmem>>, vector<1x16x1xf32>
    %69 = vector.shape_cast %68 : vector<1x16x1xf32> to vector<16x1xf32>
    %70 = vector.shape_cast %67 : vector<16x1xf32> to vector<1x16x1xf32>
    tpu.vector_store %arg8[%c0_52, %c0_53, %c0_54], %70 {strides = array<i32>} : memref<1x16x1xf32, #tpu.memory_space<vmem>>, vector<1x16x1xf32>,
    return
  }
  func.func @transform_0(%arg0: i32) -> (i32, i32, i32) {
    %c0_i32 = arith.constant 0 : i32
    %c0_i32_0 = arith.constant 0 : i32
    %c0_i32_1 = arith.constant 0 : i32
    return %arg0, %c0_i32, %c0_i32_0 : i32, i32, i32
  }
  func.func @transform_1(%arg0: i32) -> (i32, i32) {
    %c0_i32 = arith.constant 0 : i32
    %c0_i32_0 = arith.constant 0 : i32
    %c0_i32_1 = arith.constant 0 : i32
    return %c0_i32, %c0_i32_0 : i32, i32
  }
  func.func @transform_2(%arg0: i32) -> (i32, i32) {
    %c0_i32 = arith.constant 0 : i32
    %c0_i32_0 = arith.constant 0 : i32
    %c0_i32_1 = arith.constant 0 : i32
    return %c0_i32, %c0_i32_0 : i32, i32
  }
  func.func @transform_3(%arg0: i32) -> (i32, i32) {
    %c0_i32 = arith.constant 0 : i32
    %c0_i32_0 = arith.constant 0 : i32
    %c0_i32_1 = arith.constant 0 : i32
    return %c0_i32, %c0_i32_0 : i32, i32
  }
  func.func @transform_4(%arg0: i32) -> (i32, i32) {
    %c0_i32 = arith.constant 0 : i32
    %c0_i32_0 = arith.constant 0 : i32
    %c0_i32_1 = arith.constant 0 : i32
    return %c0_i32, %c0_i32_0 : i32, i32
  }
  func.func @transform_5(%arg0: i32) -> (i32, i32, i32) {
    %c0_i32 = arith.constant 0 : i32
    %c0_i32_0 = arith.constant 0 : i32
    %c0_i32_1 = arith.constant 0 : i32
    return %arg0, %c0_i32, %c0_i32_0 : i32, i32, i32
  }
  func.func @transform_6(%arg0: i32) -> (i32, i32, i32) {
    %c0_i32 = arith.constant 0 : i32
    %c0_i32_0 = arith.constant 0 : i32
    %c0_i32_1 = arith.constant 0 : i32
    return %arg0, %c0_i32, %c0_i32_0 : i32, i32, i32
  }
  func.func @transform_7(%arg0: i32) -> (i32, i32, i32) {
    %c0_i32 = arith.constant 0 : i32
    %c0_i32_0 = arith.constant 0 : i32
    %c0_i32_1 = arith.constant 0 : i32
    return %arg0, %c0_i32, %c0_i32_0 : i32, i32, i32
  }
}

module attributes {stable_mosaic.version = 11 : i64} {
  func.func @kernel(%arg0: i32, %arg1: memref<1x16x384xf32, #tpu.memory_space<vmem>>, %arg2: memref<16x1xf32, #tpu.memory_space<vmem>>, %arg3: memref<16x1xf32, #tpu.memory_space<vmem>>, %arg4: memref<16x16xf32, #tpu.memory_space<vmem>>, %arg5: memref<1x16x384xf32, #tpu.memory_space<vmem>>) attributes {dimension_semantics = [#tpu.dimension_semantics<parallel>], iteration_bounds = array<i64: 2>, scalar_prefetch = 0 : i64, scratch_operands = 0 : i64, tpu.core_type = #tpu.core_type<tc>, window_params = [{transform_indices = @transform_0, window_bounds = array<i64: 1, 16, 384>}, {pipeline_mode = #tpu.pipeline_mode<synchronous>, transform_indices = @transform_1, window_bounds = array<i64: 16, 1>}, {pipeline_mode = #tpu.pipeline_mode<synchronous>, transform_indices = @transform_2, window_bounds = array<i64: 16, 1>}, {pipeline_mode = #tpu.pipeline_mode<synchronous>, transform_indices = @transform_3, window_bounds = array<i64: 16, 16>}, {transform_indices = @transform_4, window_bounds = array<i64: 1, 16, 384>}]} {
    %c0 = arith.constant 0 : index
    %c0_0 = arith.constant 0 : index
    %c0_1 = arith.constant 0 : index
    %0 = vector.load %arg1[%c0, %c0_0, %c0_1] : memref<1x16x384xf32, #tpu.memory_space<vmem>>, vector<1x16x384xf32>
    %1 = vector.shape_cast %0 : vector<1x16x384xf32> to vector<16x384xf32>
    %c0_2 = arith.constant 0 : index
    %c0_3 = arith.constant 0 : index
    %2 = vector.load %arg2[%c0_2, %c0_3] : memref<16x1xf32, #tpu.memory_space<vmem>>, vector<16x1xf32>
    %3 = vector.broadcast %2 : vector<16x1xf32> to vector<16x384xf32>
    %4 = arith.mulf %1, %3 : vector<16x384xf32>
    %c0_4 = arith.constant 0 : index
    %c0_5 = arith.constant 0 : index
    %5 = vector.load %arg3[%c0_4, %c0_5] : memref<16x1xf32, #tpu.memory_space<vmem>>, vector<16x1xf32>
    %6 = vector.broadcast %5 : vector<16x1xf32> to vector<16x384xf32>
    %7 = arith.addf %4, %6 : vector<16x384xf32>
    %c0_6 = arith.constant 0 : index
    %c0_7 = arith.constant 0 : index
    %8 = vector.load %arg4[%c0_6, %c0_7] : memref<16x16xf32, #tpu.memory_space<vmem>>, vector<16x16xf32>
    %cst = arith.constant dense<0.000000e+00> : vector<16x384xf32>
    %9 = tpu.matmul %8, %7, %cst {dimension_numbers = #tpu.dot_dimension_numbers<[1], [0], [0], [1], [0, 0, 1, 1], [], []>} : vector<16x16xf32>, vector<16x384xf32>, vector<16x384xf32> -> vector<16x384xf32>
    %cst_8 = arith.constant 0.000000e+00 : f32
    %10 = vector.broadcast %cst_8 : f32 to vector<16x384xf32>
    %11 = arith.maximumf %9, %10 : vector<16x384xf32>
    %12 = arith.addf %11, %1 : vector<16x384xf32>
    %c0_9 = arith.constant 0 : index
    %c0_10 = arith.constant 0 : index
    %c0_11 = arith.constant 0 : index
    %13 = vector.load %arg5[%c0_9, %c0_10, %c0_11] : memref<1x16x384xf32, #tpu.memory_space<vmem>>, vector<1x16x384xf32>
    %14 = vector.shape_cast %13 : vector<1x16x384xf32> to vector<16x384xf32>
    %15 = vector.shape_cast %12 : vector<16x384xf32> to vector<1x16x384xf32>
    tpu.vector_store %arg5[%c0_9, %c0_10, %c0_11], %15 {strides = array<i32>} : memref<1x16x384xf32, #tpu.memory_space<vmem>>, vector<1x16x384xf32>,
    return
  }
  func.func @transform_0(%arg0: i32) -> (i32, i32, i32) {
    %c0_i32 = arith.constant 0 : i32
    %c0_i32_0 = arith.constant 0 : i32
    %c0_i32_1 = arith.constant 0 : i32
    return %arg0, %c0_i32, %c0_i32_0 : i32, i32, i32
  }
  func.func @transform_1(%arg0: i32) -> (i32, i32) {
    %c0_i32 = arith.constant 0 : i32
    %c0_i32_0 = arith.constant 0 : i32
    %c0_i32_1 = arith.constant 0 : i32
    return %c0_i32, %c0_i32_0 : i32, i32
  }
  func.func @transform_2(%arg0: i32) -> (i32, i32) {
    %c0_i32 = arith.constant 0 : i32
    %c0_i32_0 = arith.constant 0 : i32
    %c0_i32_1 = arith.constant 0 : i32
    return %c0_i32, %c0_i32_0 : i32, i32
  }
  func.func @transform_3(%arg0: i32) -> (i32, i32) {
    %c0_i32 = arith.constant 0 : i32
    %c0_i32_0 = arith.constant 0 : i32
    %c0_i32_1 = arith.constant 0 : i32
    return %c0_i32, %c0_i32_0 : i32, i32
  }
  func.func @transform_4(%arg0: i32) -> (i32, i32, i32) {
    %c0_i32 = arith.constant 0 : i32
    %c0_i32_0 = arith.constant 0 : i32
    %c0_i32_1 = arith.constant 0 : i32
    return %arg0, %c0_i32, %c0_i32_0 : i32, i32, i32
  }
}

</mosaic_0001>

<llo_original>
// kernel: eb_deep_basic_block.4
$region0: #{eb_deep_basic_block.4}
  #allocation0 [shape = 'u32[]', space=smem, size = 0x4, offset = 0x4, fixed_abs, tag = 'smem constant byte address 0x4 - core index']
  #allocation1 [shape = 'u32[144,128]{1,0:T(1,128)}', space=vmem, size = 0x12000, scoped, tag = 'internal scratch']
  %s0 = inlined_call_operand.vmem [shape: f32[2,16,384], index: 0, kind: input, shape index: {}]
  %s1 = inlined_call_operand.vmem [shape: f32[2,16,1], index: 1, kind: output, shape index: {0}]
  %s2 = inlined_call_operand.vmem [shape: f32[2,16,1], index: 2, kind: output, shape index: {1}]
  %3 = xla_tuple %s1, %s2
  %s4 = sld [smem:[#allocation0]]
  $region45: #{eb_deep_basic_block.4} parent=0
    _
  %s6 = ssub.s32 1, %s4
  %s7 = scalar_select 0, %s6, %s4
  loop: start=0, step=1, limit=4
  $region2: #{eb_deep_basic_block.4} parent=0 // loop_pre_header
    _
  $region3: #{eb_deep_basic_block.4} parent=0 // loop_header
    %s9 = sphi 0, %s13
    %p10 = scmp.ge.s32.totalorder %s9, 4
    %s19 = sphi 0, %s21
    %s22 = sphi 0, %s19
    %s23 = sphi 0, %s22
    %s39 = sphi 0, %s23
    %s45 = sphi 0, %s47
    %s48 = sphi 0, %s45
    %s49 = sphi 0, %s48
    %s65 = sphi 0, %s49
    %s71 = sphi 0, %s73
    %s74 = sphi 0, %s71
    %s75 = sphi 0, %s74
    %s91 = sphi 0, %s75
  $region4: #{eb_deep_basic_block.4} parent=0 // loop_header_branch
    %12 = sbr.rel (%p10) target = $region8
  $region5: #{eb_deep_basic_block.4} parent=0 // loop_body
    %s14 = ssub.s32 %s9, 1
    %s15 = ssub.s32 %s9, 2
    %s16 = sadd.s32 %s9, 1
    %s17 = ssub.s32 %s9, %s16
    %p18 = scmp.eq.s32.totalorder %s17, 0
    %s20 = sadd.s32 %s19, 1
    %s21 = scalar_select %p18, %s19, %s20
    %p24 = pneg %p18
    %p25 = scmp.eq.s32.totalorder %s9, 1
    %p26 = por %p24, %p25
    %p27 = scmp.ne.s32.totalorder %s19, %s22
    %p28 = scmp.eq.s32.totalorder %s9, 0
    %p29 = por %p27, %p28
    %p30 = scmp.ne.s32.totalorder %s19, %s22
    %p31 = scmp.eq.s32.totalorder %s14, 1
    %p32 = por %p30, %p31
    %p33 = scmp.ne.s32.totalorder %s22, %s23
    %p34 = scmp.eq.s32.totalorder %s14, 0
    %p35 = por %p33, %p34
    %p36 = scmp.ne.s32.totalorder %s22, %s23
    %p37 = scmp.eq.s32.totalorder %s15, 1
    %p38 = por %p36, %p37
    %p40 = scmp.ne.s32.totalorder %s23, %s39
    %p41 = scmp.eq.s32.totalorder %s15, 0
    %p42 = por %p40, %p41
    %s43 = ssub.s32 %s9, %s16
    %p44 = scmp.eq.s32.totalorder %s43, 0
    %s46 = sadd.s32 %s45, 1
    %s47 = scalar_select %p44, %s45, %s46
    %p50 = pneg %p44
    %p51 = scmp.eq.s32.totalorder %s9, 1
    %p52 = por %p50, %p51
    %p53 = scmp.ne.s32.totalorder %s45, %s48
    %p54 = scmp.eq.s32.totalorder %s9, 0
    %p55 = por %p53, %p54
    %p56 = scmp.ne.s32.totalorder %s45, %s48
    %p57 = scmp.eq.s32.totalorder %s14, 1
    %p58 = por %p56, %p57
    %p59 = scmp.ne.s32.totalorder %s48, %s49
    %p60 = scmp.eq.s32.totalorder %s14, 0
    %p61 = por %p59, %p60
    %p62 = scmp.ne.s32.totalorder %s48, %s49
    %p63 = scmp.eq.s32.totalorder %s15, 1
    %p64 = por %p62, %p63
    %p66 = scmp.ne.s32.totalorder %s49, %s65
    %p67 = scmp.eq.s32.totalorder %s15, 0
    %p68 = por %p66, %p67
    %s69 = ssub.s32 %s9, %s16
    %p70 = scmp.eq.s32.totalorder %s69, 0
    %s72 = sadd.s32 %s71, 1
    %s73 = scalar_select %p70, %s71, %s72
    %p76 = pneg %p70
    %p77 = scmp.eq.s32.totalorder %s9, 1
    %p78 = por %p76, %p77
    %p79 = scmp.ne.s32.totalorder %s71, %s74
    %p80 = scmp.eq.s32.totalorder %s9, 0
    %p81 = por %p79, %p80
    %p82 = scmp.ne.s32.totalorder %s71, %s74
    %p83 = scmp.eq.s32.totalorder %s14, 1
    %p84 = por %p82, %p83
    %p85 = scmp.ne.s32.totalorder %s74, %s75
    %p86 = scmp.eq.s32.totalorder %s14, 0
    %p87 = por %p85, %p86
    %p88 = scmp.ne.s32.totalorder %s74, %s75
    %p89 = scmp.eq.s32.totalorder %s15, 1
    %p90 = por %p88, %p89
    %p92 = scmp.ne.s32.totalorder %s75, %s91
    %p93 = scmp.eq.s32.totalorder %s15, 0
    %p94 = por %p92, %p93
    %p95 = scmp.le.s32.totalorder 1, %s9
    %p96 = scmp.lt.s32.totalorder %s9, 3
    %p97 = pnand %p95, %p96
    %p98 = pneg %p97
    // Predicated region
    $region9: #{eb_deep_basic_block.4} parent=5 // pred_check
      _
    $region10: #{eb_deep_basic_block.4} parent=5 // pred_check_branch
      %100 = sbr.rel (%p97) target = $region12
    $region11: #{eb_deep_basic_block.4} parent=5 // pred_region
      %s101 = ssub.s32 %s9, 1
    $region12: #{eb_deep_basic_block.4} parent=5 // pred_fallthru
      _
    %p102 = scmp.lt.s32.totalorder %s9, 2
    // Predicated region
    $region13: #{eb_deep_basic_block.4} parent=5 // pred_check
      %p103 = pneg %p102
    $region14: #{eb_deep_basic_block.4} parent=5 // pred_check_branch
      %105 = sbr.rel (%p103) target = $region16
    $region15: #{eb_deep_basic_block.4} parent=5 // pred_region
      // Predicated region
      $region17: #{eb_deep_basic_block.4} parent=15 // pred_check
        %p106 = pneg %p29
      $region18: #{eb_deep_basic_block.4} parent=15 // pred_check_branch
        %108 = sbr.rel (%p106) target = $region20
      $region19: #{eb_deep_basic_block.4} parent=15 // pred_region
        %p109 = scmp.lt.s32.totalorder %s9, 1
        %s110 = scalar_select %p109, %s9, 1
        %s111 = smul.addr %s110, 6
        %s112 = smul.addr %s111, 8
        %s113 = scalar_lea.vmem %s0, %s112
      $region20: #{eb_deep_basic_block.4} parent=15 // pred_fallthru
        _
    $region16: #{eb_deep_basic_block.4} parent=5 // pred_fallthru
      _
    %p114 = scmp.le.s32.totalorder 1, %s9
    %p115 = scmp.lt.s32.totalorder %s9, 3
    %p116 = pnand %p114, %p115
    %p117 = pneg %p116
    // Predicated region
    $region21: #{eb_deep_basic_block.4} parent=5 // pred_check
      _
    $region22: #{eb_deep_basic_block.4} parent=5 // pred_check_branch
      %119 = sbr.rel (%p116) target = $region24
    $region23: #{eb_deep_basic_block.4} parent=5 // pred_region
      %s120 = ssub.s32 %s9, 1
      %p121 = scmp.lt.s32.totalorder %s14, 1
      %s122 = scalar_select %p121, %s14, 1
      %s123 = smul.addr %s122, 6
      %s124 = smul.addr %s123, 8
      %s125 = scalar_lea.vmem %s0, %s124
      %p126 = pneg %p35
      %p127 = pneg %p32
      %p128 = pneg %p61
      %p129 = pneg %p58
      %p130 = scmp.lt.s32.totalorder %s14, 1
      %s131 = scalar_select %p130, %s14, 1
      %s132 = smul.addr %s131, 2
      %s133 = smul.addr %s132, 8
      %s134 = scalar_lea.vmem %s1, %s133
      %p135 = pneg %p87
      %p136 = pneg %p84
      %p137 = scmp.lt.s32.totalorder %s14, 1
      %s138 = scalar_select %p137, %s14, 1
      %s139 = smul.addr %s138, 2
      %s140 = smul.addr %s139, 8
      %s141 = scalar_lea.vmem %s2, %s140
      %p142 = scmp.lt.s32.totalorder %s14, 1
      %s143 = scalar_select %p142, %s14, 1
      %s144 = smul.addr %s143, 6
      %s145 = smul.addr %s144, 8
      %s146 = scalar_lea.vmem %s0, %s145
      %p147 = scmp.lt.s32.totalorder %s14, 1
      %s148 = scalar_select %p147, %s14, 1
      %s149 = smul.addr %s148, 2
      %s150 = smul.addr %s149, 8
      %s151 = scalar_lea.vmem %s1, %s150
      %p152 = scmp.lt.s32.totalorder %s14, 1
      %s153 = scalar_select %p152, %s14, 1
      %s154 = smul.addr %s153, 2
      %s155 = smul.addr %s154, 8
      %s156 = scalar_lea.vmem %s2, %s155
      %v157 = vld [vmem:[%s146] sm:$0xff]
      %v158 = vld [vmem:[%s146 + $0x8] sm:$0xff]
      %v159 = vld [vmem:[%s146 + $0x10] sm:$0xff]
      %v160 = vld [vmem:[%s146 + $0x18] sm:$0xff]
      %v161 = vld [vmem:[%s146 + $0x20] sm:$0xff]
      %v162 = vld [vmem:[%s146 + $0x28] sm:$0xff]
      %v163 = vadd.f32 %v157, %v158
      %v164 = vadd.f32 %v163, %v159
      %165 = vadd.xlane.f32.xlu0 %v164
      %v166 = vpop.xlane.xlu0 %165
      %v167 = vadd.f32 %v160, %v161
      %v168 = vadd.f32 %v167, %v162
      %169 = vadd.xlane.f32.xlu0 %v168
      %v170 = vpop.xlane.xlu0 %169
      %vm171 = vcmask 7168
      %172 = vst.msk [vmem:[%s151] sm:$0xff] %vm171, %v166
      %173 = vst.msk [vmem:[%s151 + $0x8] sm:$0xff] %vm171, %v170
      %v174 = vmul.f32 %v157, %v157
      %v175 = vmul.f32 %v158, %v158
      %v176 = vmul.f32 %v159, %v159
      %v177 = vmul.f32 %v160, %v160
      %v178 = vmul.f32 %v161, %v161
      %v179 = vmul.f32 %v162, %v162
      %v180 = vadd.f32 %v174, %v175
      %v181 = vadd.f32 %v180, %v176
      %182 = vadd.xlane.f32.xlu0 %v181
      %v183 = vpop.xlane.xlu0 %182
      %v184 = vadd.f32 %v177, %v178
      %v185 = vadd.f32 %v184, %v179
      %186 = vadd.xlane.f32.xlu0 %v185
      %v187 = vpop.xlane.xlu0 %186
      %188 = vst.msk [vmem:[%s156] sm:$0xff] %vm171, %v183
      %189 = vst.msk [vmem:[%s156 + $0x8] sm:$0xff] %vm171, %v187
      %p190 = scmp.lt.s32.totalorder %s14, 1
      %s191 = scalar_select %p190, %s14, 1
      %s192 = smul.addr %s191, 2
      %s193 = smul.addr %s192, 8
      %s194 = scalar_lea.vmem %s1, %s193
      %p195 = scmp.lt.s32.totalorder %s14, 1
      %s196 = scalar_select %p195, %s14, 1
      %s197 = smul.addr %s196, 2
      %s198 = smul.addr %s197, 8
      %s199 = scalar_lea.vmem %s2, %s198
      // Predicated region
      $region25: #{eb_deep_basic_block.4} parent=23 // pred_check
        %p200 = pneg %p58
      $region26: #{eb_deep_basic_block.4} parent=23 // pred_check_branch
        %202 = sbr.rel (%p200) target = $region28
      $region27: #{eb_deep_basic_block.4} parent=23 // pred_region
        _
      $region28: #{eb_deep_basic_block.4} parent=23 // pred_fallthru
        _
      // Predicated region
      $region29: #{eb_deep_basic_block.4} parent=23 // pred_check
        %p203 = pneg %p84
      $region30: #{eb_deep_basic_block.4} parent=23 // pred_check_branch
        %205 = sbr.rel (%p203) target = $region32
      $region31: #{eb_deep_basic_block.4} parent=23 // pred_region
        _
      $region32: #{eb_deep_basic_block.4} parent=23 // pred_fallthru
        _
    $region24: #{eb_deep_basic_block.4} parent=5 // pred_fallthru
      _
    %p206 = scmp.le.s32.totalorder 2, %s9
    // Predicated region
    $region33: #{eb_deep_basic_block.4} parent=5 // pred_check
      %p207 = pneg %p206
    $region34: #{eb_deep_basic_block.4} parent=5 // pred_check_branch
      %209 = sbr.rel (%p207) target = $region36
    $region35: #{eb_deep_basic_block.4} parent=5 // pred_region
      %s210 = ssub.s32 %s9, 2
      // Predicated region
      $region37: #{eb_deep_basic_block.4} parent=35 // pred_check
        %p211 = pneg %p64
      $region38: #{eb_deep_basic_block.4} parent=35 // pred_check_branch
        %213 = sbr.rel (%p211) target = $region40
      $region39: #{eb_deep_basic_block.4} parent=35 // pred_region
        %p214 = scmp.lt.s32.totalorder %s15, 1
        %s215 = scalar_select %p214, %s15, 1
        %s216 = smul.addr %s215, 2
        %s217 = smul.addr %s216, 8
        %s218 = scalar_lea.vmem %s1, %s217
      $region40: #{eb_deep_basic_block.4} parent=35 // pred_fallthru
        _
      // Predicated region
      $region41: #{eb_deep_basic_block.4} parent=35 // pred_check
        %p219 = pneg %p90
      $region42: #{eb_deep_basic_block.4} parent=35 // pred_check_branch
        %221 = sbr.rel (%p219) target = $region44
      $region43: #{eb_deep_basic_block.4} parent=35 // pred_region
        %p222 = scmp.lt.s32.totalorder %s15, 1
        %s223 = scalar_select %p222, %s15, 1
        %s224 = smul.addr %s223, 2
        %s225 = smul.addr %s224, 8
        %s226 = scalar_lea.vmem %s2, %s225
      $region44: #{eb_deep_basic_block.4} parent=35 // pred_fallthru
        _
    $region36: #{eb_deep_basic_block.4} parent=5 // pred_fallthru
      _
  $region6: #{eb_deep_basic_block.4} parent=0 // loop_footer
    %s13 = sadd.s32 1, %s9
  $region7: #{eb_deep_basic_block.4} parent=0 // loop_footer_branch
    %8 = sbr.rel target = $region3
  $region8: #{eb_deep_basic_block.4} parent=0 // loop_exit
    _

// kernel: eb_deep_basic_block.7
$region0: #{eb_deep_basic_block.7}
  #allocation0 [shape = 'u32[]', space=smem, size = 0x4, offset = 0x4, fixed_abs, tag = 'smem constant byte address 0x4 - core index']
  #allocation1 [shape = 'u32[144,128]{1,0:T(1,128)}', space=vmem, size = 0x12000, scoped, tag = 'internal scratch']
  %s0 = inlined_call_operand.vmem [shape: f32[2,16,384], index: 0, kind: input, shape index: {}]
  %s1 = inlined_call_operand.vmem [shape: f32[16,1], index: 1, kind: input, shape index: {}]
  %s2 = inlined_call_operand.vmem [shape: f32[16,1], index: 2, kind: input, shape index: {}]
  %s3 = inlined_call_operand.vmem [shape: f32[16,16], index: 3, kind: input, shape index: {}]
  %s4 = inlined_call_operand.vmem [shape: f32[2,16,384], index: 4, kind: output, shape index: {}]
  %s5 = sld [smem:[#allocation0]]
  $region49: #{eb_deep_basic_block.7} parent=0
    _
  %s7 = ssub.s32 1, %s5
  %s8 = scalar_select 0, %s7, %s5
  loop: start=0, step=1, limit=4
  $region2: #{eb_deep_basic_block.7} parent=0 // loop_pre_header
    _
  $region3: #{eb_deep_basic_block.7} parent=0 // loop_header
    %s10 = sphi 0, %s14
    %p11 = scmp.ge.s32.totalorder %s10, 4
    %s20 = sphi 0, %s22
    %s23 = sphi 0, %s20
    %s24 = sphi 0, %s23
    %s40 = sphi 0, %s24
    %s44 = sphi 0, %s44
    %s46 = sphi 0, %s44
    %s47 = sphi 0, %s46
    %s61 = sphi 0, %s47
    %s65 = sphi 0, %s65
    %s67 = sphi 0, %s65
    %s68 = sphi 0, %s67
    %s82 = sphi 0, %s68
    %s86 = sphi 0, %s86
    %s88 = sphi 0, %s86
    %s89 = sphi 0, %s88
    %s103 = sphi 0, %s89
    %s109 = sphi 0, %s111
    %s112 = sphi 0, %s109
    %s113 = sphi 0, %s112
    %s129 = sphi 0, %s113
  $region4: #{eb_deep_basic_block.7} parent=0 // loop_header_branch
    %13 = sbr.rel (%p11) target = $region8
  $region5: #{eb_deep_basic_block.7} parent=0 // loop_body
    %s15 = ssub.s32 %s10, 1
    %s16 = ssub.s32 %s10, 2
    %s17 = sadd.s32 %s10, 1
    %s18 = ssub.s32 %s10, %s17
    %p19 = scmp.eq.s32.totalorder %s18, 0
    %s21 = sadd.s32 %s20, 1
    %s22 = scalar_select %p19, %s20, %s21
    %p25 = pneg %p19
    %p26 = scmp.eq.s32.totalorder %s10, 1
    %p27 = por %p25, %p26
    %p28 = scmp.ne.s32.totalorder %s20, %s23
    %p29 = scmp.eq.s32.totalorder %s10, 0
    %p30 = por %p28, %p29
    %p31 = scmp.ne.s32.totalorder %s20, %s23
    %p32 = scmp.eq.s32.totalorder %s15, 1
    %p33 = por %p31, %p32
    %p34 = scmp.ne.s32.totalorder %s23, %s24
    %p35 = scmp.eq.s32.totalorder %s15, 0
    %p36 = por %p34, %p35
    %p37 = scmp.ne.s32.totalorder %s23, %s24
    %p38 = scmp.eq.s32.totalorder %s16, 1
    %p39 = por %p37, %p38
    %p41 = scmp.ne.s32.totalorder %s24, %s40
    %p42 = scmp.eq.s32.totalorder %s16, 0
    %p43 = por %p41, %p42
    %s45 = sadd.s32 %s44, 1
    %p48 = scmp.eq.s32.totalorder %s10, 1
    %p49 = scmp.ne.s32.totalorder %s44, %s46
    %p50 = scmp.eq.s32.totalorder %s10, 0
    %p51 = por %p49, %p50
    %p52 = scmp.ne.s32.totalorder %s44, %s46
    %p53 = scmp.eq.s32.totalorder %s15, 1
    %p54 = por %p52, %p53
    %p55 = scmp.ne.s32.totalorder %s46, %s47
    %p56 = scmp.eq.s32.totalorder %s15, 0
    %p57 = por %p55, %p56
    %p58 = scmp.ne.s32.totalorder %s46, %s47
    %p59 = scmp.eq.s32.totalorder %s16, 1
    %p60 = por %p58, %p59
    %p62 = scmp.ne.s32.totalorder %s47, %s61
    %p63 = scmp.eq.s32.totalorder %s16, 0
    %p64 = por %p62, %p63
    %s66 = sadd.s32 %s65, 1
    %p69 = scmp.eq.s32.totalorder %s10, 1
    %p70 = scmp.ne.s32.totalorder %s65, %s67
    %p71 = scmp.eq.s32.totalorder %s10, 0
    %p72 = por %p70, %p71
    %p73 = scmp.ne.s32.totalorder %s65, %s67
    %p74 = scmp.eq.s32.totalorder %s15, 1
    %p75 = por %p73, %p74
    %p76 = scmp.ne.s32.totalorder %s67, %s68
    %p77 = scmp.eq.s32.totalorder %s15, 0
    %p78 = por %p76, %p77
    %p79 = scmp.ne.s32.totalorder %s67, %s68
    %p80 = scmp.eq.s32.totalorder %s16, 1
    %p81 = por %p79, %p80
    %p83 = scmp.ne.s32.totalorder %s68, %s82
    %p84 = scmp.eq.s32.totalorder %s16, 0
    %p85 = por %p83, %p84
    %s87 = sadd.s32 %s86, 1
    %p90 = scmp.eq.s32.totalorder %s10, 1
    %p91 = scmp.ne.s32.totalorder %s86, %s88
    %p92 = scmp.eq.s32.totalorder %s10, 0
    %p93 = por %p91, %p92
    %p94 = scmp.ne.s32.totalorder %s86, %s88
    %p95 = scmp.eq.s32.totalorder %s15, 1
    %p96 = por %p94, %p95
    %p97 = scmp.ne.s32.totalorder %s88, %s89
    %p98 = scmp.eq.s32.totalorder %s15, 0
    %p99 = por %p97, %p98
    %p100 = scmp.ne.s32.totalorder %s88, %s89
    %p101 = scmp.eq.s32.totalorder %s16, 1
    %p102 = por %p100, %p101
    %p104 = scmp.ne.s32.totalorder %s89, %s103
    %p105 = scmp.eq.s32.totalorder %s16, 0
    %p106 = por %p104, %p105
    %s107 = ssub.s32 %s10, %s17
    %p108 = scmp.eq.s32.totalorder %s107, 0
    %s110 = sadd.s32 %s109, 1
    %s111 = scalar_select %p108, %s109, %s110
    %p114 = pneg %p108
    %p115 = scmp.eq.s32.totalorder %s10, 1
    %p116 = por %p114, %p115
    %p117 = scmp.ne.s32.totalorder %s109, %s112
    %p118 = scmp.eq.s32.totalorder %s10, 0
    %p119 = por %p117, %p118
    %p120 = scmp.ne.s32.totalorder %s109, %s112
    %p121 = scmp.eq.s32.totalorder %s15, 1
    %p122 = por %p120, %p121
    %p123 = scmp.ne.s32.totalorder %s112, %s113
    %p124 = scmp.eq.s32.totalorder %s15, 0
    %p125 = por %p123, %p124
    %p126 = scmp.ne.s32.totalorder %s112, %s113
    %p127 = scmp.eq.s32.totalorder %s16, 1
    %p128 = por %p126, %p127
    %p130 = scmp.ne.s32.totalorder %s113, %s129
    %p131 = scmp.eq.s32.totalorder %s16, 0
    %p132 = por %p130, %p131
    %p133 = scmp.le.s32.totalorder 1, %s10
    %p134 = scmp.lt.s32.totalorder %s10, 3
    %p135 = pnand %p133, %p134
    %p136 = pneg %p135
    // Predicated region
    $region9: #{eb_deep_basic_block.7} parent=5 // pred_check
      _
    $region10: #{eb_deep_basic_block.7} parent=5 // pred_check_branch
      %138 = sbr.rel (%p135) target = $region12
    $region11: #{eb_deep_basic_block.7} parent=5 // pred_region
      %s139 = ssub.s32 %s10, 1
      // Predicated region
      $region13: #{eb_deep_basic_block.7} parent=11 // pred_check
        %p140 = pneg %p57
      $region14: #{eb_deep_basic_block.7} parent=11 // pred_check_branch
        %142 = sbr.rel (%p140) target = $region16
      $region15: #{eb_deep_basic_block.7} parent=11 // pred_region
        _
      $region16: #{eb_deep_basic_block.7} parent=11 // pred_fallthru
        _
      // Predicated region
      $region17: #{eb_deep_basic_block.7} parent=11 // pred_check
        %p143 = pneg %p78
      $region18: #{eb_deep_basic_block.7} parent=11 // pred_check_branch
        %145 = sbr.rel (%p143) target = $region20
      $region19: #{eb_deep_basic_block.7} parent=11 // pred_region
        _
      $region20: #{eb_deep_basic_block.7} parent=11 // pred_fallthru
        _
      // Predicated region
      $region21: #{eb_deep_basic_block.7} parent=11 // pred_check
        %p146 = pneg %p99
      $region22: #{eb_deep_basic_block.7} parent=11 // pred_check_branch
        %148 = sbr.rel (%p146) target = $region24
      $region23: #{eb_deep_basic_block.7} parent=11 // pred_region
        _
      $region24: #{eb_deep_basic_block.7} parent=11 // pred_fallthru
        _
    $region12: #{eb_deep_basic_block.7} parent=5 // pred_fallthru
      _
    %p149 = scmp.lt.s32.totalorder %s10, 2
    // Predicated region
    $region25: #{eb_deep_basic_block.7} parent=5 // pred_check
      %p150 = pneg %p149
    $region26: #{eb_deep_basic_block.7} parent=5 // pred_check_branch
      %152 = sbr.rel (%p150) target = $region28
    $region27: #{eb_deep_basic_block.7} parent=5 // pred_region
      // Predicated region
      $region29: #{eb_deep_basic_block.7} parent=27 // pred_check
        %p153 = pneg %p30
      $region30: #{eb_deep_basic_block.7} parent=27 // pred_check_branch
        %155 = sbr.rel (%p153) target = $region32
      $region31: #{eb_deep_basic_block.7} parent=27 // pred_region
        %p156 = scmp.lt.s32.totalorder %s10, 1
        %s157 = scalar_select %p156, %s10, 1
        %s158 = smul.addr %s157, 6
        %s159 = smul.addr %s158, 8
        %s160 = scalar_lea.vmem %s0, %s159
      $region32: #{eb_deep_basic_block.7} parent=27 // pred_fallthru
        _
    $region28: #{eb_deep_basic_block.7} parent=5 // pred_fallthru
      _
    %p161 = scmp.le.s32.totalorder 1, %s10
    %p162 = scmp.lt.s32.totalorder %s10, 3
    %p163 = pnand %p161, %p162
    %p164 = pneg %p163
    // Predicated region
    $region33: #{eb_deep_basic_block.7} parent=5 // pred_check
      _
    $region34: #{eb_deep_basic_block.7} parent=5 // pred_check_branch
      %166 = sbr.rel (%p163) target = $region36
    $region35: #{eb_deep_basic_block.7} parent=5 // pred_region
      %s167 = ssub.s32 %s10, 1
      %p168 = scmp.lt.s32.totalorder %s15, 1
      %s169 = scalar_select %p168, %s15, 1
      %s170 = smul.addr %s169, 6
      %s171 = smul.addr %s170, 8
      %s172 = scalar_lea.vmem %s0, %s171
      %p173 = pneg %p36
      %p174 = pneg %p33
      %p175 = pneg %p57
      %p176 = pneg %p54
      %p177 = pneg %p78
      %p178 = pneg %p75
      %p179 = pneg %p99
      %p180 = pneg %p96
      %p181 = pneg %p125
      %p182 = pneg %p122
      %p183 = scmp.lt.s32.totalorder %s15, 1
      %s184 = scalar_select %p183, %s15, 1
      %s185 = smul.addr %s184, 6
      %s186 = smul.addr %s185, 8
      %s187 = scalar_lea.vmem %s4, %s186
      %p188 = scmp.lt.s32.totalorder %s15, 1
      %s189 = scalar_select %p188, %s15, 1
      %s190 = smul.addr %s189, 6
      %s191 = smul.addr %s190, 8
      %s192 = scalar_lea.vmem %s0, %s191
      %p193 = scmp.lt.s32.totalorder %s15, 1
      %s194 = scalar_select %p193, %s15, 1
      %s195 = smul.addr %s194, 6
      %s196 = smul.addr %s195, 8
      %s197 = scalar_lea.vmem %s4, %s196
      %v198 = vld [vmem:[%s192] sm:$0xff]
      %v199 = vld [vmem:[%s192 + $0x8] sm:$0xff]
      %v200 = vld [vmem:[%s192 + $0x10] sm:$0xff]
      %v201 = vld [vmem:[%s192 + $0x18] sm:$0xff]
      %v202 = vld [vmem:[%s192 + $0x20] sm:$0xff]
      %v203 = vld [vmem:[%s192 + $0x28] sm:$0xff]
      %v204 = vld [vmem:[%s1] sm:$0xff]
      %v205 = vld [vmem:[%s1 + $0x8] sm:$0xff]
      %207 = vset.pattern.permute.xlu0 0
      %208 = vperm.xlu0 %207, %v204
      %v209 = vpop.permute.xlu0 %208
      %212 = vset.pattern.permute.xlu0 0
      %213 = vperm.xlu0 %212, %v205
      %v214 = vpop.permute.xlu0 %213
      %v216 = vmul.f32 %v198, %v209
      %v217 = vmul.f32 %v199, %v209
      %v218 = vmul.f32 %v200, %v209
      %v219 = vmul.f32 %v201, %v214
      %v220 = vmul.f32 %v202, %v214
      %v221 = vmul.f32 %v203, %v214
      %v222 = vld [vmem:[%s2] sm:$0xff]
      %v223 = vld [vmem:[%s2 + $0x8] sm:$0xff]
      %225 = vset.pattern.permute.xlu0 0
      %226 = vperm.xlu0 %225, %v222
      %v227 = vpop.permute.xlu0 %226
      %230 = vset.pattern.permute.xlu0 0
      %231 = vperm.xlu0 %230, %v223
      %v232 = vpop.permute.xlu0 %231
      %v234 = vadd.f32 %v216, %v227
      %v235 = vadd.f32 %v217, %v227
      %v236 = vadd.f32 %v218, %v227
      %v237 = vadd.f32 %v219, %v232
      %v238 = vadd.f32 %v220, %v232
      %v239 = vadd.f32 %v221, %v232
      %v240 = vld [vmem:[%s3] sm:$0xff]
      %v241 = vld [vmem:[%s3 + $0x8] sm:$0xff]
      %vm242 = vcmask 130048
      %v244 = vsel %vm242, %v240, 0
      %v247 = vsel %vm242, %v241, 0
      %249 = vmatprep.subr.mxu0 0.0
      %250 = vmatpush1.msra.mxu0 0.0
      %251 = vmatprep.subr.mxu0 0.0
      %252 = vmatpush1.msra.mxu0 0.0
      %253 = vmatprep.subr.mxu0 0.0
      %254 = vmatpush1.msra.mxu0 0.0
      %255 = vmatprep.subr.mxu0 0.0
      %256 = vmatpush1.msra.mxu0 0.0
      %257 = vmatprep.subr.mxu0 0.0
      %258 = vmatpush1.msra.mxu0 0.0
      %259 = vmatprep.subr.mxu0 0.0
      %260 = vmatpush1.msra.mxu0 0.0
      %261 = vmatprep.subr.mxu0 0.0
      %262 = vmatpush1.msra.mxu0 0.0
      %263 = vmatprep.subr.mxu0 0.0
      %264 = vmatpush1.msra.mxu0 0.0
      %265 = vmatprep.subr.mxu0 0.0
      %266 = vmatpush1.msra.mxu0 0.0
      %267 = vmatprep.subr.mxu0 0.0
      %268 = vmatpush1.msra.mxu0 0.0
      %269 = vmatprep.subr.mxu0 0.0
      %270 = vmatpush1.msra.mxu0 0.0
      %271 = vmatprep.subr.mxu0 0.0
      %272 = vmatpush1.msra.mxu0 0.0
      %273 = vmatprep.subr.mxu0 0.0
      %274 = vmatpush1.msra.mxu0 0.0
      %275 = vmatprep.subr.mxu0 0.0
      %276 = vmatpush1.msra.mxu0 0.0
      %277 = vmatprep.subr.mxu0 %v238
      %278 = vmatpush1.msra.mxu0 %v237
      %279 = vmatprep.subr.mxu0 %v235
      %280 = vmatpush1.msra.mxu0 %v234
      %281 = vmatprep.subr.mxu0 0.0
      %282 = vmatpush2.msra.mxu0 0.0
      %283 = vmatprep.subr.mxu0 0.0
      %284 = vmatpush2.msra.mxu0 0.0
      %285 = vmatprep.subr.mxu0 0.0
      %286 = vmatpush2.msra.mxu0 0.0
      %287 = vmatprep.subr.mxu0 0.0
      %288 = vmatpush2.msra.mxu0 0.0
      %289 = vmatprep.subr.mxu0 0.0
      %290 = vmatpush2.msra.mxu0 0.0
      %291 = vmatprep.subr.mxu0 0.0
      %292 = vmatpush2.msra.mxu0 0.0
      %293 = vmatprep.subr.mxu0 0.0
      %294 = vmatpush2.msra.mxu0 0.0
      %295 = vmatprep.subr.mxu0 0.0
      %296 = vmatpush2.msra.mxu0 0.0
      %297 = vmatprep.subr.mxu0 0.0
      %298 = vmatpush2.msra.mxu0 0.0
      %299 = vmatprep.subr.mxu0 0.0
      %300 = vmatpush2.msra.mxu0 0.0
      %301 = vmatprep.subr.mxu0 0.0
      %302 = vmatpush2.msra.mxu0 0.0
      %303 = vmatprep.subr.mxu0 0.0
      %304 = vmatpush2.msra.mxu0 0.0
      %305 = vmatprep.subr.mxu0 0.0
      %306 = vmatpush2.msra.mxu0 0.0
      %307 = vmatprep.subr.mxu0 0.0
      %308 = vmatpush2.msra.mxu0 0.0
      %309 = vmatprep.subr.mxu0 0.0
      %310 = vmatpush2.msra.mxu0 0.0
      %311 = vmatprep.subr.mxu0 0.0
      %312 = vmatpush2.msra.mxu0 0.0
      %313 = vmatprep.mubr.f32.mxu0 0.0
      %314 = vmatmul.mubr.f32.gmra.mxu0 %v244
      %v315 = vpop.f32.mrf.mxu0
      %v316 = vadd.f32 0.0, %v315
      %v317 = vpop.f32.mrf.mxu0
      %v318 = vadd.f32 0.0, %v317
      %319 = vmatprep.mubr.f32.mxu0 0.0
      %320 = vmatmul.mubr.f32.gmra.mxu0 %v247
      %v321 = vpop.f32.mrf.mxu0
      %v322 = vadd.f32 0.0, %v321
      %v323 = vpop.f32.mrf.mxu0
      %v324 = vadd.f32 0.0, %v323
      %325 = vdwg.mxu0
      %326 = vmatprep.subr.mxu0 0.0
      %327 = vmatpush1.msra.mxu0 0.0
      %328 = vmatprep.subr.mxu0 0.0
      %329 = vmatpush1.msra.mxu0 0.0
      %330 = vmatprep.subr.mxu0 0.0
      %331 = vmatpush1.msra.mxu0 0.0
      %332 = vmatprep.subr.mxu0 0.0
      %333 = vmatpush1.msra.mxu0 0.0
      %334 = vmatprep.subr.mxu0 0.0
      %335 = vmatpush1.msra.mxu0 0.0
      %336 = vmatprep.subr.mxu0 0.0
      %337 = vmatpush1.msra.mxu0 0.0
      %338 = vmatprep.subr.mxu0 0.0
      %339 = vmatpush1.msra.mxu0 0.0
      %340 = vmatprep.subr.mxu0 0.0
      %341 = vmatpush1.msra.mxu0 0.0
      %342 = vmatprep.subr.mxu0 0.0
      %343 = vmatpush1.msra.mxu0 0.0
      %344 = vmatprep.subr.mxu0 0.0
      %345 = vmatpush1.msra.mxu0 0.0
      %346 = vmatprep.subr.mxu0 0.0
      %347 = vmatpush1.msra.mxu0 0.0
      %348 = vmatprep.subr.mxu0 0.0
      %349 = vmatpush1.msra.mxu0 0.0
      %350 = vmatprep.subr.mxu0 0.0
      %351 = vmatpush1.msra.mxu0 0.0
      %352 = vmatprep.subr.mxu0 0.0
      %353 = vmatpush1.msra.mxu0 0.0
      %354 = vmatprep.subr.mxu0 0.0
      %355 = vmatpush1.msra.mxu0 %v239
      %356 = vmatprep.subr.mxu0 0.0
      %357 = vmatpush1.msra.mxu0 %v236
      %358 = vmatprep.subr.mxu0 0.0
      %359 = vmatpush2.msra.mxu0 0.0
      %360 = vmatprep.subr.mxu0 0.0
      %361 = vmatpush2.msra.mxu0 0.0
      %362 = vmatprep.subr.mxu0 0.0
      %363 = vmatpush2.msra.mxu0 0.0
      %364 = vmatprep.subr.mxu0 0.0
      %365 = vmatpush2.msra.mxu0 0.0
      %366 = vmatprep.subr.mxu0 0.0
      %367 = vmatpush2.msra.mxu0 0.0
      %368 = vmatprep.subr.mxu0 0.0
      %369 = vmatpush2.msra.mxu0 0.0
      %370 = vmatprep.subr.mxu0 0.0
      %371 = vmatpush2.msra.mxu0 0.0
      %372 = vmatprep.subr.mxu0 0.0
      %373 = vmatpush2.msra.mxu0 0.0
      %374 = vmatprep.subr.mxu0 0.0
      %375 = vmatpush2.msra.mxu0 0.0
      %376 = vmatprep.subr.mxu0 0.0
      %377 = vmatpush2.msra.mxu0 0.0
      %378 = vmatprep.subr.mxu0 0.0
      %379 = vmatpush2.msra.mxu0 0.0
      %380 = vmatprep.subr.mxu0 0.0
      %381 = vmatpush2.msra.mxu0 0.0
      %382 = vmatprep.subr.mxu0 0.0
      %383 = vmatpush2.msra.mxu0 0.0
      %384 = vmatprep.subr.mxu0 0.0
      %385 = vmatpush2.msra.mxu0 0.0
      %386 = vmatprep.subr.mxu0 0.0
      %387 = vmatpush2.msra.mxu0 0.0
      %388 = vmatprep.subr.mxu0 0.0
      %389 = vmatpush2.msra.mxu0 0.0
      %390 = vmatprep.mubr.f32.mxu0 0.0
      %391 = vmatmul.mubr.f32.gmra.mxu0 %v244
      %v392 = vpop.f32.mrf.mxu0
      %v393 = vadd.f32 0.0, %v392
      %v394 = vpop.f32.mrf.mxu0
      %395 = vmatprep.mubr.f32.mxu0 0.0
      %396 = vmatmul.mubr.f32.gmra.mxu0 %v247
      %v397 = vpop.f32.mrf.mxu0
      %v398 = vadd.f32 0.0, %v397
      %v399 = vpop.f32.mrf.mxu0
      %400 = vdwg.mxu0
      %v401 = vmax.f32 %v316, 0.0
      %v402 = vmax.f32 %v318, 0.0
      %v403 = vmax.f32 %v393, 0.0
      %v404 = vmax.f32 %v322, 0.0
      %v405 = vmax.f32 %v324, 0.0
      %v406 = vmax.f32 %v398, 0.0
      %v407 = vadd.f32 %v401, %v198
      %v408 = vadd.f32 %v402, %v199
      %v409 = vadd.f32 %v403, %v200
      %v410 = vadd.f32 %v404, %v201
      %v411 = vadd.f32 %v405, %v202
      %v412 = vadd.f32 %v406, %v203
      %413 = vst [vmem:[%s197] sm:$0xff] %v407
      %414 = vst [vmem:[%s197 + $0x8] sm:$0xff] %v408
      %415 = vst [vmem:[%s197 + $0x10] sm:$0xff] %v409
      %416 = vst [vmem:[%s197 + $0x18] sm:$0xff] %v410
      %417 = vst [vmem:[%s197 + $0x20] sm:$0xff] %v411
      %418 = vst [vmem:[%s197 + $0x28] sm:$0xff] %v412
      %p419 = scmp.lt.s32.totalorder %s15, 1
      %s420 = scalar_select %p419, %s15, 1
      %s421 = smul.addr %s420, 6
      %s422 = smul.addr %s421, 8
      %s423 = scalar_lea.vmem %s4, %s422
      // Predicated region
      $region37: #{eb_deep_basic_block.7} parent=35 // pred_check
        %p424 = pneg %p122
      $region38: #{eb_deep_basic_block.7} parent=35 // pred_check_branch
        %426 = sbr.rel (%p424) target = $region40
      $region39: #{eb_deep_basic_block.7} parent=35 // pred_region
        _
      $region40: #{eb_deep_basic_block.7} parent=35 // pred_fallthru
        _
    $region36: #{eb_deep_basic_block.7} parent=5 // pred_fallthru
      _
    %p427 = scmp.le.s32.totalorder 2, %s10
    // Predicated region
    $region41: #{eb_deep_basic_block.7} parent=5 // pred_check
      %p428 = pneg %p427
    $region42: #{eb_deep_basic_block.7} parent=5 // pred_check_branch
      %430 = sbr.rel (%p428) target = $region44
    $region43: #{eb_deep_basic_block.7} parent=5 // pred_region
      %s431 = ssub.s32 %s10, 2
      // Predicated region
      $region45: #{eb_deep_basic_block.7} parent=43 // pred_check
        %p432 = pneg %p128
      $region46: #{eb_deep_basic_block.7} parent=43 // pred_check_branch
        %434 = sbr.rel (%p432) target = $region48
      $region47: #{eb_deep_basic_block.7} parent=43 // pred_region
        %p435 = scmp.lt.s32.totalorder %s16, 1
        %s436 = scalar_select %p435, %s16, 1
        %s437 = smul.addr %s436, 6
        %s438 = smul.addr %s437, 8
        %s439 = scalar_lea.vmem %s4, %s438
      $region48: #{eb_deep_basic_block.7} parent=43 // pred_fallthru
        _
    $region44: #{eb_deep_basic_block.7} parent=5 // pred_fallthru
      _
  $region6: #{eb_deep_basic_block.7} parent=0 // loop_footer
    %s14 = sadd.s32 1, %s10
  $region7: #{eb_deep_basic_block.7} parent=0 // loop_footer_branch
    %9 = sbr.rel target = $region3
  $region8: #{eb_deep_basic_block.7} parent=0 // loop_exit
    _

// kernel: eb_deep_basic_block.5
$region0: #{eb_deep_basic_block.5}
  #allocation0 [shape = 'u32[]', space=smem, size = 0x4, offset = 0x4, fixed_abs, tag = 'smem constant byte address 0x4 - core index']
  #allocation1 [shape = 'u32[144,128]{1,0:T(1,128)}', space=vmem, size = 0x12000, scoped, tag = 'internal scratch']
  #allocation2 [shape = 'f32[16,640]{1,0:T(8,128)}', space=vmem, size = 0xa000, scoped, tag = 'scratch operand']
  %s0 = inlined_call_operand.vmem [shape: f32[2,16,384], index: 0, kind: input, shape index: {}]
  %s1 = inlined_call_operand.vmem [shape: f32[16,1], index: 1, kind: input, shape index: {}]
  %s2 = inlined_call_operand.vmem [shape: f32[16,1], index: 2, kind: input, shape index: {}]
  %s3 = inlined_call_operand.vmem [shape: f32[1,384], index: 3, kind: input, shape index: {}]
  %s4 = inlined_call_operand.vmem [shape: f32[144,16], index: 4, kind: input, shape index: {}]
  %s5 = inlined_call_operand.vmem [shape: f32[2,16,384], index: 5, kind: output, shape index: {0}]
  %s6 = inlined_call_operand.vmem [shape: f32[2,16,1], index: 6, kind: output, shape index: {1}]
  %s7 = inlined_call_operand.vmem [shape: f32[2,16,1], index: 7, kind: output, shape index: {2}]
  %8 = xla_tuple %s5, %s6, %s7
  %s9 = sld [smem:[#allocation0]]
  $region69: #{eb_deep_basic_block.5} parent=0
    _
  %s11 = ssub.s32 1, %s9
  %s12 = scalar_select 0, %s11, %s9
  loop: start=0, step=1, limit=4
  $region2: #{eb_deep_basic_block.5} parent=0 // loop_pre_header
    _
  $region3: #{eb_deep_basic_block.5} parent=0 // loop_header
    %s14 = sphi 0, %s18
    %p15 = scmp.ge.s32.totalorder %s14, 4
    %s24 = sphi 0, %s26
    %s27 = sphi 0, %s24
    %s28 = sphi 0, %s27
    %s44 = sphi 0, %s28
    %s48 = sphi 0, %s48
    %s50 = sphi 0, %s48
    %s51 = sphi 0, %s50
    %s65 = sphi 0, %s51
    %s69 = sphi 0, %s69
    %s71 = sphi 0, %s69
    %s72 = sphi 0, %s71
    %s86 = sphi 0, %s72
    %s90 = sphi 0, %s90
    %s92 = sphi 0, %s90
    %s93 = sphi 0, %s92
    %s107 = sphi 0, %s93
    %s111 = sphi 0, %s111
    %s113 = sphi 0, %s111
    %s114 = sphi 0, %s113
    %s128 = sphi 0, %s114
    %s134 = sphi 0, %s136
    %s137 = sphi 0, %s134
    %s138 = sphi 0, %s137
    %s154 = sphi 0, %s138
    %s160 = sphi 0, %s162
    %s163 = sphi 0, %s160
    %s164 = sphi 0, %s163
    %s180 = sphi 0, %s164
    %s186 = sphi 0, %s188
    %s189 = sphi 0, %s186
    %s190 = sphi 0, %s189
    %s206 = sphi 0, %s190
  $region4: #{eb_deep_basic_block.5} parent=0 // loop_header_branch
    %17 = sbr.rel (%p15) target = $region8
  $region5: #{eb_deep_basic_block.5} parent=0 // loop_body
    %s19 = ssub.s32 %s14, 1
    %s20 = ssub.s32 %s14, 2
    %s21 = sadd.s32 %s14, 1
    %s22 = ssub.s32 %s14, %s21
    %p23 = scmp.eq.s32.totalorder %s22, 0
    %s25 = sadd.s32 %s24, 1
    %s26 = scalar_select %p23, %s24, %s25
    %p29 = pneg %p23
    %p30 = scmp.eq.s32.totalorder %s14, 1
    %p31 = por %p29, %p30
    %p32 = scmp.ne.s32.totalorder %s24, %s27
    %p33 = scmp.eq.s32.totalorder %s14, 0
    %p34 = por %p32, %p33
    %p35 = scmp.ne.s32.totalorder %s24, %s27
    %p36 = scmp.eq.s32.totalorder %s19, 1
    %p37 = por %p35, %p36
    %p38 = scmp.ne.s32.totalorder %s27, %s28
    %p39 = scmp.eq.s32.totalorder %s19, 0
    %p40 = por %p38, %p39
    %p41 = scmp.ne.s32.totalorder %s27, %s28
    %p42 = scmp.eq.s32.totalorder %s20, 1
    %p43 = por %p41, %p42
    %p45 = scmp.ne.s32.totalorder %s28, %s44
    %p46 = scmp.eq.s32.totalorder %s20, 0
    %p47 = por %p45, %p46
    %s49 = sadd.s32 %s48, 1
    %p52 = scmp.eq.s32.totalorder %s14, 1
    %p53 = scmp.ne.s32.totalorder %s48, %s50
    %p54 = scmp.eq.s32.totalorder %s14, 0
    %p55 = por %p53, %p54
    %p56 = scmp.ne.s32.totalorder %s48, %s50
    %p57 = scmp.eq.s32.totalorder %s19, 1
    %p58 = por %p56, %p57
    %p59 = scmp.ne.s32.totalorder %s50, %s51
    %p60 = scmp.eq.s32.totalorder %s19, 0
    %p61 = por %p59, %p60
    %p62 = scmp.ne.s32.totalorder %s50, %s51
    %p63 = scmp.eq.s32.totalorder %s20, 1
    %p64 = por %p62, %p63
    %p66 = scmp.ne.s32.totalorder %s51, %s65
    %p67 = scmp.eq.s32.totalorder %s20, 0
    %p68 = por %p66, %p67
    %s70 = sadd.s32 %s69, 1
    %p73 = scmp.eq.s32.totalorder %s14, 1
    %p74 = scmp.ne.s32.totalorder %s69, %s71
    %p75 = scmp.eq.s32.totalorder %s14, 0
    %p76 = por %p74, %p75
    %p77 = scmp.ne.s32.totalorder %s69, %s71
    %p78 = scmp.eq.s32.totalorder %s19, 1
    %p79 = por %p77, %p78
    %p80 = scmp.ne.s32.totalorder %s71, %s72
    %p81 = scmp.eq.s32.totalorder %s19, 0
    %p82 = por %p80, %p81
    %p83 = scmp.ne.s32.totalorder %s71, %s72
    %p84 = scmp.eq.s32.totalorder %s20, 1
    %p85 = por %p83, %p84
    %p87 = scmp.ne.s32.totalorder %s72, %s86
    %p88 = scmp.eq.s32.totalorder %s20, 0
    %p89 = por %p87, %p88
    %s91 = sadd.s32 %s90, 1
    %p94 = scmp.eq.s32.totalorder %s14, 1
    %p95 = scmp.ne.s32.totalorder %s90, %s92
    %p96 = scmp.eq.s32.totalorder %s14, 0
    %p97 = por %p95, %p96
    %p98 = scmp.ne.s32.totalorder %s90, %s92
    %p99 = scmp.eq.s32.totalorder %s19, 1
    %p100 = por %p98, %p99
    %p101 = scmp.ne.s32.totalorder %s92, %s93
    %p102 = scmp.eq.s32.totalorder %s19, 0
    %p103 = por %p101, %p102
    %p104 = scmp.ne.s32.totalorder %s92, %s93
    %p105 = scmp.eq.s32.totalorder %s20, 1
    %p106 = por %p104, %p105
    %p108 = scmp.ne.s32.totalorder %s93, %s107
    %p109 = scmp.eq.s32.totalorder %s20, 0
    %p110 = por %p108, %p109
    %s112 = sadd.s32 %s111, 1
    %p115 = scmp.eq.s32.totalorder %s14, 1
    %p116 = scmp.ne.s32.totalorder %s111, %s113
    %p117 = scmp.eq.s32.totalorder %s14, 0
    %p118 = por %p116, %p117
    %p119 = scmp.ne.s32.totalorder %s111, %s113
    %p120 = scmp.eq.s32.totalorder %s19, 1
    %p121 = por %p119, %p120
    %p122 = scmp.ne.s32.totalorder %s113, %s114
    %p123 = scmp.eq.s32.totalorder %s19, 0
    %p124 = por %p122, %p123
    %p125 = scmp.ne.s32.totalorder %s113, %s114
    %p126 = scmp.eq.s32.totalorder %s20, 1
    %p127 = por %p125, %p126
    %p129 = scmp.ne.s32.totalorder %s114, %s128
    %p130 = scmp.eq.s32.totalorder %s20, 0
    %p131 = por %p129, %p130
    %s132 = ssub.s32 %s14, %s21
    %p133 = scmp.eq.s32.totalorder %s132, 0
    %s135 = sadd.s32 %s134, 1
    %s136 = scalar_select %p133, %s134, %s135
    %p139 = pneg %p133
    %p140 = scmp.eq.s32.totalorder %s14, 1
    %p141 = por %p139, %p140
    %p142 = scmp.ne.s32.totalorder %s134, %s137
    %p143 = scmp.eq.s32.totalorder %s14, 0
    %p144 = por %p142, %p143
    %p145 = scmp.ne.s32.totalorder %s134, %s137
    %p146 = scmp.eq.s32.totalorder %s19, 1
    %p147 = por %p145, %p146
    %p148 = scmp.ne.s32.totalorder %s137, %s138
    %p149 = scmp.eq.s32.totalorder %s19, 0
    %p150 = por %p148, %p149
    %p151 = scmp.ne.s32.totalorder %s137, %s138
    %p152 = scmp.eq.s32.totalorder %s20, 1
    %p153 = por %p151, %p152
    %p155 = scmp.ne.s32.totalorder %s138, %s154
    %p156 = scmp.eq.s32.totalorder %s20, 0
    %p157 = por %p155, %p156
    %s158 = ssub.s32 %s14, %s21
    %p159 = scmp.eq.s32.totalorder %s158, 0
    %s161 = sadd.s32 %s160, 1
    %s162 = scalar_select %p159, %s160, %s161
    %p165 = pneg %p159
    %p166 = scmp.eq.s32.totalorder %s14, 1
    %p167 = por %p165, %p166
    %p168 = scmp.ne.s32.totalorder %s160, %s163
    %p169 = scmp.eq.s32.totalorder %s14, 0
    %p170 = por %p168, %p169
    %p171 = scmp.ne.s32.totalorder %s160, %s163
    %p172 = scmp.eq.s32.totalorder %s19, 1
    %p173 = por %p171, %p172
    %p174 = scmp.ne.s32.totalorder %s163, %s164
    %p175 = scmp.eq.s32.totalorder %s19, 0
    %p176 = por %p174, %p175
    %p177 = scmp.ne.s32.totalorder %s163, %s164
    %p178 = scmp.eq.s32.totalorder %s20, 1
    %p179 = por %p177, %p178
    %p181 = scmp.ne.s32.totalorder %s164, %s180
    %p182 = scmp.eq.s32.totalorder %s20, 0
    %p183 = por %p181, %p182
    %s184 = ssub.s32 %s14, %s21
    %p185 = scmp.eq.s32.totalorder %s184, 0
    %s187 = sadd.s32 %s186, 1
    %s188 = scalar_select %p185, %s186, %s187
    %p191 = pneg %p185
    %p192 = scmp.eq.s32.totalorder %s14, 1
    %p193 = por %p191, %p192
    %p194 = scmp.ne.s32.totalorder %s186, %s189
    %p195 = scmp.eq.s32.totalorder %s14, 0
    %p196 = por %p194, %p195
    %p197 = scmp.ne.s32.totalorder %s186, %s189
    %p198 = scmp.eq.s32.totalorder %s19, 1
    %p199 = por %p197, %p198
    %p200 = scmp.ne.s32.totalorder %s189, %s190
    %p201 = scmp.eq.s32.totalorder %s19, 0
    %p202 = por %p200, %p201
    %p203 = scmp.ne.s32.totalorder %s189, %s190
    %p204 = scmp.eq.s32.totalorder %s20, 1
    %p205 = por %p203, %p204
    %p207 = scmp.ne.s32.totalorder %s190, %s206
    %p208 = scmp.eq.s32.totalorder %s20, 0
    %p209 = por %p207, %p208
    %p210 = scmp.le.s32.totalorder 1, %s14
    %p211 = scmp.lt.s32.totalorder %s14, 3
    %p212 = pnand %p210, %p211
    %p213 = pneg %p212
    // Predicated region
    $region9: #{eb_deep_basic_block.5} parent=5 // pred_check
      _
    $region10: #{eb_deep_basic_block.5} parent=5 // pred_check_branch
      %215 = sbr.rel (%p212) target = $region12
    $region11: #{eb_deep_basic_block.5} parent=5 // pred_region
      %s216 = ssub.s32 %s14, 1
      // Predicated region
      $region13: #{eb_deep_basic_block.5} parent=11 // pred_check
        %p217 = pneg %p61
      $region14: #{eb_deep_basic_block.5} parent=11 // pred_check_branch
        %219 = sbr.rel (%p217) target = $region16
      $region15: #{eb_deep_basic_block.5} parent=11 // pred_region
        _
      $region16: #{eb_deep_basic_block.5} parent=11 // pred_fallthru
        _
      // Predicated region
      $region17: #{eb_deep_basic_block.5} parent=11 // pred_check
        %p220 = pneg %p82
      $region18: #{eb_deep_basic_block.5} parent=11 // pred_check_branch
        %222 = sbr.rel (%p220) target = $region20
      $region19: #{eb_deep_basic_block.5} parent=11 // pred_region
        _
      $region20: #{eb_deep_basic_block.5} parent=11 // pred_fallthru
        _
      // Predicated region
      $region21: #{eb_deep_basic_block.5} parent=11 // pred_check
        %p223 = pneg %p103
      $region22: #{eb_deep_basic_block.5} parent=11 // pred_check_branch
        %225 = sbr.rel (%p223) target = $region24
      $region23: #{eb_deep_basic_block.5} parent=11 // pred_region
        _
      $region24: #{eb_deep_basic_block.5} parent=11 // pred_fallthru
        _
      // Predicated region
      $region25: #{eb_deep_basic_block.5} parent=11 // pred_check
        %p226 = pneg %p124
      $region26: #{eb_deep_basic_block.5} parent=11 // pred_check_branch
        %228 = sbr.rel (%p226) target = $region28
      $region27: #{eb_deep_basic_block.5} parent=11 // pred_region
        _
      $region28: #{eb_deep_basic_block.5} parent=11 // pred_fallthru
        _
    $region12: #{eb_deep_basic_block.5} parent=5 // pred_fallthru
      _
    %p229 = scmp.lt.s32.totalorder %s14, 2
    // Predicated region
    $region29: #{eb_deep_basic_block.5} parent=5 // pred_check
      %p230 = pneg %p229
    $region30: #{eb_deep_basic_block.5} parent=5 // pred_check_branch
      %232 = sbr.rel (%p230) target = $region32
    $region31: #{eb_deep_basic_block.5} parent=5 // pred_region
      // Predicated region
      $region33: #{eb_deep_basic_block.5} parent=31 // pred_check
        %p233 = pneg %p34
      $region34: #{eb_deep_basic_block.5} parent=31 // pred_check_branch
        %235 = sbr.rel (%p233) target = $region36
      $region35: #{eb_deep_basic_block.5} parent=31 // pred_region
        %p236 = scmp.lt.s32.totalorder %s14, 1
        %s237 = scalar_select %p236, %s14, 1
        %s238 = smul.addr %s237, 6
        %s239 = smul.addr %s238, 8
        %s240 = scalar_lea.vmem %s0, %s239
      $region36: #{eb_deep_basic_block.5} parent=31 // pred_fallthru
        _
    $region32: #{eb_deep_basic_block.5} parent=5 // pred_fallthru
      _
    %p241 = scmp.le.s32.totalorder 1, %s14
    %p242 = scmp.lt.s32.totalorder %s14, 3
    %p243 = pnand %p241, %p242
    %p244 = pneg %p243
    // Predicated region
    $region37: #{eb_deep_basic_block.5} parent=5 // pred_check
      _
    $region38: #{eb_deep_basic_block.5} parent=5 // pred_check_branch
      %246 = sbr.rel (%p243) target = $region40
    $region39: #{eb_deep_basic_block.5} parent=5 // pred_region
      %s247 = ssub.s32 %s14, 1
      %p248 = scmp.lt.s32.totalorder %s19, 1
      %s249 = scalar_select %p248, %s19, 1
      %s250 = smul.addr %s249, 6
      %s251 = smul.addr %s250, 8
      %s252 = scalar_lea.vmem %s0, %s251
      %p253 = pneg %p40
      %p254 = pneg %p37
      %p255 = pneg %p61
      %p256 = pneg %p58
      %p257 = pneg %p82
      %p258 = pneg %p79
      %p259 = pneg %p103
      %p260 = pneg %p100
      %p261 = pneg %p124
      %p262 = pneg %p121
      %p263 = pneg %p150
      %p264 = pneg %p147
      %p265 = scmp.lt.s32.totalorder %s19, 1
      %s266 = scalar_select %p265, %s19, 1
      %s267 = smul.addr %s266, 6
      %s268 = smul.addr %s267, 8
      %s269 = scalar_lea.vmem %s5, %s268
      %p270 = pneg %p176
      %p271 = pneg %p173
      %p272 = scmp.lt.s32.totalorder %s19, 1
      %s273 = scalar_select %p272, %s19, 1
      %s274 = smul.addr %s273, 2
      %s275 = smul.addr %s274, 8
      %s276 = scalar_lea.vmem %s6, %s275
      %p277 = pneg %p202
      %p278 = pneg %p199
      %p279 = scmp.lt.s32.totalorder %s19, 1
      %s280 = scalar_select %p279, %s19, 1
      %s281 = smul.addr %s280, 2
      %s282 = smul.addr %s281, 8
      %s283 = scalar_lea.vmem %s7, %s282
      %p284 = scmp.lt.s32.totalorder %s19, 1
      %s285 = scalar_select %p284, %s19, 1
      %s286 = smul.addr %s285, 6
      %s287 = smul.addr %s286, 8
      %s288 = scalar_lea.vmem %s0, %s287
      %p289 = scmp.lt.s32.totalorder %s19, 1
      %s290 = scalar_select %p289, %s19, 1
      %s291 = smul.addr %s290, 6
      %s292 = smul.addr %s291, 8
      %s293 = scalar_lea.vmem %s5, %s292
      %p294 = scmp.lt.s32.totalorder %s19, 1
      %s295 = scalar_select %p294, %s19, 1
      %s296 = smul.addr %s295, 2
      %s297 = smul.addr %s296, 8
      %s298 = scalar_lea.vmem %s6, %s297
      %p299 = scmp.lt.s32.totalorder %s19, 1
      %s300 = scalar_select %p299, %s19, 1
      %s301 = smul.addr %s300, 2
      %s302 = smul.addr %s301, 8
      %s303 = scalar_lea.vmem %s7, %s302
      %v304 = vld [vmem:[%s288] sm:$0xff]
      %v305 = vld [vmem:[%s288 + $0x8] sm:$0xff]
      %v306 = vld [vmem:[%s288 + $0x10] sm:$0xff]
      %v307 = vld [vmem:[%s288 + $0x18] sm:$0xff]
      %v308 = vld [vmem:[%s288 + $0x20] sm:$0xff]
      %v309 = vld [vmem:[%s288 + $0x28] sm:$0xff]
      %v310 = vld [vmem:[%s3] sm:$0x7]
      %v311 = vld [vmem:[%s1] sm:$0xff]
      %v312 = vld [vmem:[%s1 + $0x8] sm:$0xff]
      %314 = vset.pattern.permute.xlu0 0
      %315 = vperm.xlu0 %314, %v311
      %v316 = vpop.permute.xlu0 %315
      %319 = vset.pattern.permute.xlu0 0
      %320 = vperm.xlu0 %319, %v312
      %v321 = vpop.permute.xlu0 %320
      %v323 = vmul.f32 %v304, %v316
      %v324 = vmul.f32 %v305, %v316
      %v325 = vmul.f32 %v306, %v316
      %v326 = vmul.f32 %v307, %v321
      %v327 = vmul.f32 %v308, %v321
      %v328 = vmul.f32 %v309, %v321
      %v329 = vld [vmem:[%s2] sm:$0xff]
      %v330 = vld [vmem:[%s2 + $0x8] sm:$0xff]
      %332 = vset.pattern.permute.xlu0 0
      %333 = vperm.xlu0 %332, %v329
      %v334 = vpop.permute.xlu0 %333
      %337 = vset.pattern.permute.xlu0 0
      %338 = vperm.xlu0 %337, %v330
      %v339 = vpop.permute.xlu0 %338
      %v341 = vadd.f32 %v323, %v334
      %v342 = vadd.f32 %v324, %v334
      %v343 = vadd.f32 %v325, %v334
      %v344 = vadd.f32 %v326, %v339
      %v345 = vadd.f32 %v327, %v339
      %v346 = vadd.f32 %v328, %v339
      %v348 = vlaneseq
      %v349 = vshrl.u32 %v348, 7
      %v350 = vsub.s32 0, %v349
      %v351 = vrot.slane %v310, %v350
      %v352 = vlaneseq
      %v353 = vshrl.u32 %v352, 7
      %v354 = vsub.s32 1, %v353
      %v355 = vrot.slane %v310, %v354
      %v356 = vlaneseq
      %v357 = vshrl.u32 %v356, 7
      %v358 = vsub.s32 2, %v357
      %v359 = vrot.slane %v310, %v358
      %v363 = vmul.f32 %v341, %v351
      %v364 = vmul.f32 %v342, %v355
      %v365 = vmul.f32 %v343, %v359
      %v366 = vmul.f32 %v344, %v351
      %v367 = vmul.f32 %v345, %v355
      %v368 = vmul.f32 %v346, %v359
      %369 = vst [vmem:[#allocation2] sm:$0xff] 0.0
      %370 = vst [vmem:[#allocation2 + $0x28] sm:$0xff] 0.0
      %371 = vst [vmem:[#allocation2 + $0x20] sm:$0xff] 0.0
      %372 = vst [vmem:[#allocation2 + $0x48] sm:$0xff] 0.0
      %373 = vst [vmem:[#allocation2 + $0x8] sm:$0xff] %v363
      %374 = vst [vmem:[#allocation2 + $0x10] sm:$0xff] %v364
      %375 = vst [vmem:[#allocation2 + $0x18] sm:$0xff] %v365
      %376 = vst [vmem:[#allocation2 + $0x30] sm:$0xff] %v366
      %377 = vst [vmem:[#allocation2 + $0x38] sm:$0xff] %v367
      %378 = vst [vmem:[#allocation2 + $0x40] sm:$0xff] %v368
      %v379 = vld [vmem:[%s4] sm:$0xff]
      %v380 = vld [vmem:[%s4 + $0x8] sm:$0xff]
      %v381 = vld [vmem:[#allocation2] sm:$0xff]
      %v382 = vld [vmem:[#allocation2 + $0x8] sm:$0xff]
      %v383 = vld [vmem:[#allocation2 + $0x10] sm:$0xff]
      %v384 = vld [vmem:[#allocation2 + $0x18] sm:$0xff]
      %v385 = vld [vmem:[#allocation2 + $0x28] sm:$0xff]
      %v386 = vld [vmem:[#allocation2 + $0x30] sm:$0xff]
      %v387 = vld [vmem:[#allocation2 + $0x38] sm:$0xff]
      %v388 = vld [vmem:[#allocation2 + $0x40] sm:$0xff]
      %v389 = vld [vmem:[%s4 + $0x10] sm:$0xff]
      %v390 = vld [vmem:[%s4 + $0x18] sm:$0xff]
      %399 = vrot.lane.b32.xlu0 %v381, 18
      %v400 = vpop.permute.xlu0 %399
      %401 = vrot.lane.b32.xlu0 %v382, 18
      %v402 = vpop.permute.xlu0 %401
      %403 = vrot.lane.b32.xlu0 %v383, 18
      %v404 = vpop.permute.xlu0 %403
      %405 = vrot.lane.b32.xlu0 %v384, 18
      %v406 = vpop.permute.xlu0 %405
      %407 = vrot.lane.b32.xlu0 %v385, 18
      %v408 = vpop.permute.xlu0 %407
      %409 = vrot.lane.b32.xlu0 %v386, 18
      %v410 = vpop.permute.xlu0 %409
      %411 = vrot.lane.b32.xlu0 %v387, 18
      %v412 = vpop.permute.xlu0 %411
      %413 = vrot.lane.b32.xlu0 %v388, 18
      %v414 = vpop.permute.xlu0 %413
      %vm415 = vcmask 146432
      %v416 = vsel %vm415, %v400, %v402
      %v417 = vsel %vm415, %v402, %v404
      %v418 = vsel %vm415, %v404, %v406
      %v419 = vsel %vm415, %v408, %v410
      %v420 = vsel %vm415, %v410, %v412
      %v421 = vsel %vm415, %v412, %v414
      %vm428 = vcmask 130048
      %v430 = vsel %vm428, %v389, 0
      %v433 = vsel %vm428, %v390, 0
      %435 = vmatprep.subr.mxu0 0.0
      %436 = vmatpush1.msra.mxu0 0.0
      %437 = vmatprep.subr.mxu0 0.0
      %438 = vmatpush1.msra.mxu0 0.0
      %439 = vmatprep.subr.mxu0 0.0
      %440 = vmatpush1.msra.mxu0 0.0
      %441 = vmatprep.subr.mxu0 0.0
      %442 = vmatpush1.msra.mxu0 0.0
      %443 = vmatprep.subr.mxu0 0.0
      %444 = vmatpush1.msra.mxu0 0.0
      %445 = vmatprep.subr.mxu0 0.0
      %446 = vmatpush1.msra.mxu0 0.0
      %447 = vmatprep.subr.mxu0 0.0
      %448 = vmatpush1.msra.mxu0 0.0
      %449 = vmatprep.subr.mxu0 0.0
      %450 = vmatpush1.msra.mxu0 0.0
      %451 = vmatprep.subr.mxu0 0.0
      %452 = vmatpush1.msra.mxu0 0.0
      %453 = vmatprep.subr.mxu0 0.0
      %454 = vmatpush1.msra.mxu0 0.0
      %455 = vmatprep.subr.mxu0 0.0
      %456 = vmatpush1.msra.mxu0 0.0
      %457 = vmatprep.subr.mxu0 0.0
      %458 = vmatpush1.msra.mxu0 0.0
      %459 = vmatprep.subr.mxu0 0.0
      %460 = vmatpush1.msra.mxu0 0.0
      %461 = vmatprep.subr.mxu0 0.0
      %462 = vmatpush1.msra.mxu0 0.0
      %463 = vmatprep.subr.mxu0 %v420
      %464 = vmatpush1.msra.mxu0 %v419
      %465 = vmatprep.subr.mxu0 %v417
      %466 = vmatpush1.msra.mxu0 %v416
      %467 = vmatprep.subr.mxu0 0.0
      %468 = vmatpush2.msra.mxu0 0.0
      %469 = vmatprep.subr.mxu0 0.0
      %470 = vmatpush2.msra.mxu0 0.0
      %471 = vmatprep.subr.mxu0 0.0
      %472 = vmatpush2.msra.mxu0 0.0
      %473 = vmatprep.subr.mxu0 0.0
      %474 = vmatpush2.msra.mxu0 0.0
      %475 = vmatprep.subr.mxu0 0.0
      %476 = vmatpush2.msra.mxu0 0.0
      %477 = vmatprep.subr.mxu0 0.0
      %478 = vmatpush2.msra.mxu0 0.0
      %479 = vmatprep.subr.mxu0 0.0
      %480 = vmatpush2.msra.mxu0 0.0
      %481 = vmatprep.subr.mxu0 0.0
      %482 = vmatpush2.msra.mxu0 0.0
      %483 = vmatprep.subr.mxu0 0.0
      %484 = vmatpush2.msra.mxu0 0.0
      %485 = vmatprep.subr.mxu0 0.0
      %486 = vmatpush2.msra.mxu0 0.0
      %487 = vmatprep.subr.mxu0 0.0
      %488 = vmatpush2.msra.mxu0 0.0
      %489 = vmatprep.subr.mxu0 0.0
      %490 = vmatpush2.msra.mxu0 0.0
      %491 = vmatprep.subr.mxu0 0.0
      %492 = vmatpush2.msra.mxu0 0.0
      %493 = vmatprep.subr.mxu0 0.0
      %494 = vmatpush2.msra.mxu0 0.0
      %495 = vmatprep.subr.mxu0 0.0
      %496 = vmatpush2.msra.mxu0 0.0
      %497 = vmatprep.subr.mxu0 0.0
      %498 = vmatpush2.msra.mxu0 0.0
      %499 = vmatprep.mubr.f32.mxu0 0.0
      %500 = vmatmul.mubr.f32.gmra.mxu0 %v430
      %v501 = vpop.f32.mrf.mxu0
      %v502 = vadd.f32 0.0, %v501
      %v503 = vpop.f32.mrf.mxu0
      %v504 = vadd.f32 0.0, %v503
      %505 = vmatprep.mubr.f32.mxu0 0.0
      %506 = vmatmul.mubr.f32.gmra.mxu0 %v433
      %v507 = vpop.f32.mrf.mxu0
      %v508 = vadd.f32 0.0, %v507
      %v509 = vpop.f32.mrf.mxu0
      %v510 = vadd.f32 0.0, %v509
      %511 = vdwg.mxu0
      %512 = vmatprep.subr.mxu0 0.0
      %513 = vmatpush1.msra.mxu0 0.0
      %514 = vmatprep.subr.mxu0 0.0
      %515 = vmatpush1.msra.mxu0 0.0
      %516 = vmatprep.subr.mxu0 0.0
      %517 = vmatpush1.msra.mxu0 0.0
      %518 = vmatprep.subr.mxu0 0.0
      %519 = vmatpush1.msra.mxu0 0.0
      %520 = vmatprep.subr.mxu0 0.0
      %521 = vmatpush1.msra.mxu0 0.0
      %522 = vmatprep.subr.mxu0 0.0
      %523 = vmatpush1.msra.mxu0 0.0
      %524 = vmatprep.subr.mxu0 0.0
      %525 = vmatpush1.msra.mxu0 0.0
      %526 = vmatprep.subr.mxu0 0.0
      %527 = vmatpush1.msra.mxu0 0.0
      %528 = vmatprep.subr.mxu0 0.0
      %529 = vmatpush1.msra.mxu0 0.0
      %530 = vmatprep.subr.mxu0 0.0
      %531 = vmatpush1.msra.mxu0 0.0
      %532 = vmatprep.subr.mxu0 0.0
      %533 = vmatpush1.msra.mxu0 0.0
      %534 = vmatprep.subr.mxu0 0.0
      %535 = vmatpush1.msra.mxu0 0.0
      %536 = vmatprep.subr.mxu0 0.0
      %537 = vmatpush1.msra.mxu0 0.0
      %538 = vmatprep.subr.mxu0 0.0
      %539 = vmatpush1.msra.mxu0 0.0
      %540 = vmatprep.subr.mxu0 0.0
      %541 = vmatpush1.msra.mxu0 %v421
      %542 = vmatprep.subr.mxu0 0.0
      %543 = vmatpush1.msra.mxu0 %v418
      %544 = vmatprep.subr.mxu0 0.0
      %545 = vmatpush2.msra.mxu0 0.0
      %546 = vmatprep.subr.mxu0 0.0
      %547 = vmatpush2.msra.mxu0 0.0
      %548 = vmatprep.subr.mxu0 0.0
      %549 = vmatpush2.msra.mxu0 0.0
      %550 = vmatprep.subr.mxu0 0.0
      %551 = vmatpush2.msra.mxu0 0.0
      %552 = vmatprep.subr.mxu0 0.0
      %553 = vmatpush2.msra.mxu0 0.0
      %554 = vmatprep.subr.mxu0 0.0
      %555 = vmatpush2.msra.mxu0 0.0
      %556 = vmatprep.subr.mxu0 0.0
      %557 = vmatpush2.msra.mxu0 0.0
      %558 = vmatprep.subr.mxu0 0.0
      %559 = vmatpush2.msra.mxu0 0.0
      %560 = vmatprep.subr.mxu0 0.0
      %561 = vmatpush2.msra.mxu0 0.0
      %562 = vmatprep.subr.mxu0 0.0
      %563 = vmatpush2.msra.mxu0 0.0
      %564 = vmatprep.subr.mxu0 0.0
      %565 = vmatpush2.msra.mxu0 0.0
      %566 = vmatprep.subr.mxu0 0.0
      %567 = vmatpush2.msra.mxu0 0.0
      %568 = vmatprep.subr.mxu0 0.0
      %569 = vmatpush2.msra.mxu0 0.0
      %570 = vmatprep.subr.mxu0 0.0
      %571 = vmatpush2.msra.mxu0 0.0
      %572 = vmatprep.subr.mxu0 0.0
      %573 = vmatpush2.msra.mxu0 0.0
      %574 = vmatprep.subr.mxu0 0.0
      %575 = vmatpush2.msra.mxu0 0.0
      %576 = vmatprep.mubr.f32.mxu0 0.0
      %577 = vmatmul.mubr.f32.gmra.mxu0 %v430
      %v578 = vpop.f32.mrf.mxu0
      %v579 = vadd.f32 0.0, %v578
      %v580 = vpop.f32.mrf.mxu0
      %581 = vmatprep.mubr.f32.mxu0 0.0
      %582 = vmatmul.mubr.f32.gmra.mxu0 %v433
      %v583 = vpop.f32.mrf.mxu0
      %v584 = vadd.f32 0.0, %v583
      %v585 = vpop.f32.mrf.mxu0
      %586 = vdwg.mxu0
      %587 = vrot.lane.b32.xlu0 %v381, 19
      %v588 = vpop.permute.xlu0 %587
      %589 = vrot.lane.b32.xlu0 %v382, 19
      %v590 = vpop.permute.xlu0 %589
      %591 = vrot.lane.b32.xlu0 %v383, 19
      %v592 = vpop.permute.xlu0 %591
      %593 = vrot.lane.b32.xlu0 %v384, 19
      %v594 = vpop.permute.xlu0 %593
      %595 = vrot.lane.b32.xlu0 %v385, 19
      %v596 = vpop.permute.xlu0 %595
      %597 = vrot.lane.b32.xlu0 %v386, 19
      %v598 = vpop.permute.xlu0 %597
      %599 = vrot.lane.b32.xlu0 %v387, 19
      %v600 = vpop.permute.xlu0 %599
      %601 = vrot.lane.b32.xlu0 %v388, 19
      %v602 = vpop.permute.xlu0 %601
      %vm603 = vcmask 154624
      %v604 = vsel %vm603, %v588, %v590
      %v605 = vsel %vm603, %v590, %v592
      %v606 = vsel %vm603, %v592, %v594
      %v607 = vsel %vm603, %v596, %v598
      %v608 = vsel %vm603, %v598, %v600
      %v609 = vsel %vm603, %v600, %v602
      %v617 = vsel %vm428, %v379, 0
      %v620 = vsel %vm428, %v380, 0
      %622 = vmatprep.subr.mxu0 0.0
      %623 = vmatpush1.msra.mxu0 0.0
      %624 = vmatprep.subr.mxu0 0.0
      %625 = vmatpush1.msra.mxu0 0.0
      %626 = vmatprep.subr.mxu0 0.0
      %627 = vmatpush1.msra.mxu0 0.0
      %628 = vmatprep.subr.mxu0 0.0
      %629 = vmatpush1.msra.mxu0 0.0
      %630 = vmatprep.subr.mxu0 0.0
      %631 = vmatpush1.msra.mxu0 0.0
      %632 = vmatprep.subr.mxu0 0.0
      %633 = vmatpush1.msra.mxu0 0.0
      %634 = vmatprep.subr.mxu0 0.0
      %635 = vmatpush1.msra.mxu0 0.0
      %636 = vmatprep.subr.mxu0 0.0
      %637 = vmatpush1.msra.mxu0 0.0
      %638 = vmatprep.subr.mxu0 0.0
      %639 = vmatpush1.msra.mxu0 0.0
      %640 = vmatprep.subr.mxu0 0.0
      %641 = vmatpush1.msra.mxu0 0.0
      %642 = vmatprep.subr.mxu0 0.0
      %643 = vmatpush1.msra.mxu0 0.0
      %644 = vmatprep.subr.mxu0 0.0
      %645 = vmatpush1.msra.mxu0 0.0
      %646 = vmatprep.subr.mxu0 0.0
      %647 = vmatpush1.msra.mxu0 0.0
      %648 = vmatprep.subr.mxu0 0.0
      %649 = vmatpush1.msra.mxu0 0.0
      %650 = vmatprep.subr.mxu0 %v608
      %651 = vmatpush1.msra.mxu0 %v607
      %652 = vmatprep.subr.mxu0 %v605
      %653 = vmatpush1.msra.mxu0 %v604
      %654 = vmatprep.subr.mxu0 0.0
      %655 = vmatpush2.msra.mxu0 0.0
      %656 = vmatprep.subr.mxu0 0.0
      %657 = vmatpush2.msra.mxu0 0.0
      %658 = vmatprep.subr.mxu0 0.0
      %659 = vmatpush2.msra.mxu0 0.0
      %660 = vmatprep.subr.mxu0 0.0
      %661 = vmatpush2.msra.mxu0 0.0
      %662 = vmatprep.subr.mxu0 0.0
      %663 = vmatpush2.msra.mxu0 0.0
      %664 = vmatprep.subr.mxu0 0.0
      %665 = vmatpush2.msra.mxu0 0.0
      %666 = vmatprep.subr.mxu0 0.0
      %667 = vmatpush2.msra.mxu0 0.0
      %668 = vmatprep.subr.mxu0 0.0
      %669 = vmatpush2.msra.mxu0 0.0
      %670 = vmatprep.subr.mxu0 0.0
      %671 = vmatpush2.msra.mxu0 0.0
      %672 = vmatprep.subr.mxu0 0.0
      %673 = vmatpush2.msra.mxu0 0.0
      %674 = vmatprep.subr.mxu0 0.0
      %675 = vmatpush2.msra.mxu0 0.0
      %676 = vmatprep.subr.mxu0 0.0
      %677 = vmatpush2.msra.mxu0 0.0
      %678 = vmatprep.subr.mxu0 0.0
      %679 = vmatpush2.msra.mxu0 0.0
      %680 = vmatprep.subr.mxu0 0.0
      %681 = vmatpush2.msra.mxu0 0.0
      %682 = vmatprep.subr.mxu0 0.0
      %683 = vmatpush2.msra.mxu0 0.0
      %684 = vmatprep.subr.mxu0 0.0
      %685 = vmatpush2.msra.mxu0 0.0
      %686 = vmatprep.mubr.f32.mxu0 0.0
      %687 = vmatmul.mubr.f32.gmra.mxu0 %v617
      %v688 = vpop.f32.mrf.mxu0
      %v689 = vadd.f32 %v502, %v688
      %v690 = vpop.f32.mrf.mxu0
      %v691 = vadd.f32 %v504, %v690
      %692 = vmatprep.mubr.f32.mxu0 0.0
      %693 = vmatmul.mubr.f32.gmra.mxu0 %v620
      %v694 = vpop.f32.mrf.mxu0
      %v695 = vadd.f32 %v508, %v694
      %v696 = vpop.f32.mrf.mxu0
      %v697 = vadd.f32 %v510, %v696
      %698 = vdwg.mxu0
      %699 = vmatprep.subr.mxu0 0.0
      %700 = vmatpush1.msra.mxu0 0.0
      %701 = vmatprep.subr.mxu0 0.0
      %702 = vmatpush1.msra.mxu0 0.0
      %703 = vmatprep.subr.mxu0 0.0
      %704 = vmatpush1.msra.mxu0 0.0
      %705 = vmatprep.subr.mxu0 0.0
      %706 = vmatpush1.msra.mxu0 0.0
      %707 = vmatprep.subr.mxu0 0.0
      %708 = vmatpush1.msra.mxu0 0.0
      %709 = vmatprep.subr.mxu0 0.0
      %710 = vmatpush1.msra.mxu0 0.0
      %711 = vmatprep.subr.mxu0 0.0
      %712 = vmatpush1.msra.mxu0 0.0
      %713 = vmatprep.subr.mxu0 0.0
      %714 = vmatpush1.msra.mxu0 0.0
      %715 = vmatprep.subr.mxu0 0.0
      %716 = vmatpush1.msra.mxu0 0.0
      %717 = vmatprep.subr.mxu0 0.0
      %718 = vmatpush1.msra.mxu0 0.0
      %719 = vmatprep.subr.mxu0 0.0
      %720 = vmatpush1.msra.mxu0 0.0
      %721 = vmatprep.subr.mxu0 0.0
      %722 = vmatpush1.msra.mxu0 0.0
      %723 = vmatprep.subr.mxu0 0.0
      %724 = vmatpush1.msra.mxu0 0.0
      %725 = vmatprep.subr.mxu0 0.0
      %726 = vmatpush1.msra.mxu0 0.0
      %727 = vmatprep.subr.mxu0 0.0
      %728 = vmatpush1.msra.mxu0 %v609
      %729 = vmatprep.subr.mxu0 0.0
      %730 = vmatpush1.msra.mxu0 %v606
      %731 = vmatprep.subr.mxu0 0.0
      %732 = vmatpush2.msra.mxu0 0.0
      %733 = vmatprep.subr.mxu0 0.0
      %734 = vmatpush2.msra.mxu0 0.0
      %735 = vmatprep.subr.mxu0 0.0
      %736 = vmatpush2.msra.mxu0 0.0
      %737 = vmatprep.subr.mxu0 0.0
      %738 = vmatpush2.msra.mxu0 0.0
      %739 = vmatprep.subr.mxu0 0.0
      %740 = vmatpush2.msra.mxu0 0.0
      %741 = vmatprep.subr.mxu0 0.0
      %742 = vmatpush2.msra.mxu0 0.0
      %743 = vmatprep.subr.mxu0 0.0
      %744 = vmatpush2.msra.mxu0 0.0
      %745 = vmatprep.subr.mxu0 0.0
      %746 = vmatpush2.msra.mxu0 0.0
      %747 = vmatprep.subr.mxu0 0.0
      %748 = vmatpush2.msra.mxu0 0.0
      %749 = vmatprep.subr.mxu0 0.0
      %750 = vmatpush2.msra.mxu0 0.0
      %751 = vmatprep.subr.mxu0 0.0
      %752 = vmatpush2.msra.mxu0 0.0
      %753 = vmatprep.subr.mxu0 0.0
      %754 = vmatpush2.msra.mxu0 0.0
      %755 = vmatprep.subr.mxu0 0.0
      %756 = vmatpush2.msra.mxu0 0.0
      %757 = vmatprep.subr.mxu0 0.0
      %758 = vmatpush2.msra.mxu0 0.0
      %759 = vmatprep.subr.mxu0 0.0
      %760 = vmatpush2.msra.mxu0 0.0
      %761 = vmatprep.subr.mxu0 0.0
      %762 = vmatpush2.msra.mxu0 0.0
      %763 = vmatprep.mubr.f32.mxu0 0.0
      %764 = vmatmul.mubr.f32.gmra.mxu0 %v617
      %v765 = vpop.f32.mrf.mxu0
      %v766 = vadd.f32 %v579, %v765
      %v767 = vpop.f32.mrf.mxu0
      %768 = vmatprep.mubr.f32.mxu0 0.0
      %769 = vmatmul.mubr.f32.gmra.mxu0 %v620
      %v770 = vpop.f32.mrf.mxu0
      %v771 = vadd.f32 %v584, %v770
      %v772 = vpop.f32.mrf.mxu0
      %773 = vdwg.mxu0
      %v774 = vld [vmem:[%s4 + $0x20] sm:$0xff]
      %v775 = vld [vmem:[%s4 + $0x28] sm:$0xff]
      %776 = vrot.lane.b32.xlu0 %v381, 17
      %v777 = vpop.permute.xlu0 %776
      %778 = vrot.lane.b32.xlu0 %v382, 17
      %v779 = vpop.permute.xlu0 %778
      %780 = vrot.lane.b32.xlu0 %v383, 17
      %v781 = vpop.permute.xlu0 %780
      %782 = vrot.lane.b32.xlu0 %v384, 17
      %v783 = vpop.permute.xlu0 %782
      %784 = vrot.lane.b32.xlu0 %v385, 17
      %v785 = vpop.permute.xlu0 %784
      %786 = vrot.lane.b32.xlu0 %v386, 17
      %v787 = vpop.permute.xlu0 %786
      %788 = vrot.lane.b32.xlu0 %v387, 17
      %v789 = vpop.permute.xlu0 %788
      %790 = vrot.lane.b32.xlu0 %v388, 17
      %v791 = vpop.permute.xlu0 %790
      %vm792 = vcmask 138240
      %v793 = vsel %vm792, %v777, %v779
      %v794 = vsel %vm792, %v779, %v781
      %v795 = vsel %vm792, %v781, %v783
      %v796 = vsel %vm792, %v785, %v787
      %v797 = vsel %vm792, %v787, %v789
      %v798 = vsel %vm792, %v789, %v791
      %v806 = vsel %vm428, %v774, 0
      %v809 = vsel %vm428, %v775, 0
      %811 = vmatprep.subr.mxu0 0.0
      %812 = vmatpush1.msra.mxu0 0.0
      %813 = vmatprep.subr.mxu0 0.0
      %814 = vmatpush1.msra.mxu0 0.0
      %815 = vmatprep.subr.mxu0 0.0
      %816 = vmatpush1.msra.mxu0 0.0
      %817 = vmatprep.subr.mxu0 0.0
      %818 = vmatpush1.msra.mxu0 0.0
      %819 = vmatprep.subr.mxu0 0.0
      %820 = vmatpush1.msra.mxu0 0.0
      %821 = vmatprep.subr.mxu0 0.0
      %822 = vmatpush1.msra.mxu0 0.0
      %823 = vmatprep.subr.mxu0 0.0
      %824 = vmatpush1.msra.mxu0 0.0
      %825 = vmatprep.subr.mxu0 0.0
      %826 = vmatpush1.msra.mxu0 0.0
      %827 = vmatprep.subr.mxu0 0.0
      %828 = vmatpush1.msra.mxu0 0.0
      %829 = vmatprep.subr.mxu0 0.0
      %830 = vmatpush1.msra.mxu0 0.0
      %831 = vmatprep.subr.mxu0 0.0
      %832 = vmatpush1.msra.mxu0 0.0
      %833 = vmatprep.subr.mxu0 0.0
      %834 = vmatpush1.msra.mxu0 0.0
      %835 = vmatprep.subr.mxu0 0.0
      %836 = vmatpush1.msra.mxu0 0.0
      %837 = vmatprep.subr.mxu0 0.0
      %838 = vmatpush1.msra.mxu0 0.0
      %839 = vmatprep.subr.mxu0 %v797
      %840 = vmatpush1.msra.mxu0 %v796
      %841 = vmatprep.subr.mxu0 %v794
      %842 = vmatpush1.msra.mxu0 %v793
      %843 = vmatprep.subr.mxu0 0.0
      %844 = vmatpush2.msra.mxu0 0.0
      %845 = vmatprep.subr.mxu0 0.0
      %846 = vmatpush2.msra.mxu0 0.0
      %847 = vmatprep.subr.mxu0 0.0
      %848 = vmatpush2.msra.mxu0 0.0
      %849 = vmatprep.subr.mxu0 0.0
      %850 = vmatpush2.msra.mxu0 0.0
      %851 = vmatprep.subr.mxu0 0.0
      %852 = vmatpush2.msra.mxu0 0.0
      %853 = vmatprep.subr.mxu0 0.0
      %854 = vmatpush2.msra.mxu0 0.0
      %855 = vmatprep.subr.mxu0 0.0
      %856 = vmatpush2.msra.mxu0 0.0
      %857 = vmatprep.subr.mxu0 0.0
      %858 = vmatpush2.msra.mxu0 0.0
      %859 = vmatprep.subr.mxu0 0.0
      %860 = vmatpush2.msra.mxu0 0.0
      %861 = vmatprep.subr.mxu0 0.0
      %862 = vmatpush2.msra.mxu0 0.0
      %863 = vmatprep.subr.mxu0 0.0
      %864 = vmatpush2.msra.mxu0 0.0
      %865 = vmatprep.subr.mxu0 0.0
      %866 = vmatpush2.msra.mxu0 0.0
      %867 = vmatprep.subr.mxu0 0.0
      %868 = vmatpush2.msra.mxu0 0.0
      %869 = vmatprep.subr.mxu0 0.0
      %870 = vmatpush2.msra.mxu0 0.0
      %871 = vmatprep.subr.mxu0 0.0
      %872 = vmatpush2.msra.mxu0 0.0
      %873 = vmatprep.subr.mxu0 0.0
      %874 = vmatpush2.msra.mxu0 0.0
      %875 = vmatprep.mubr.f32.mxu0 0.0
      %876 = vmatmul.mubr.f32.gmra.mxu0 %v806
      %v877 = vpop.f32.mrf.mxu0
      %v878 = vadd.f32 0.0, %v877
      %v879 = vpop.f32.mrf.mxu0
      %v880 = vadd.f32 0.0, %v879
      %881 = vmatprep.mubr.f32.mxu0 0.0
      %882 = vmatmul.mubr.f32.gmra.mxu0 %v809
      %v883 = vpop.f32.mrf.mxu0
      %v884 = vadd.f32 0.0, %v883
      %v885 = vpop.f32.mrf.mxu0
      %v886 = vadd.f32 0.0, %v885
      %887 = vdwg.mxu0
      %888 = vmatprep.subr.mxu0 0.0
      %889 = vmatpush1.msra.mxu0 0.0
      %890 = vmatprep.subr.mxu0 0.0
      %891 = vmatpush1.msra.mxu0 0.0
      %892 = vmatprep.subr.mxu0 0.0
      %893 = vmatpush1.msra.mxu0 0.0
      %894 = vmatprep.subr.mxu0 0.0
      %895 = vmatpush1.msra.mxu0 0.0
      %896 = vmatprep.subr.mxu0 0.0
      %897 = vmatpush1.msra.mxu0 0.0
      %898 = vmatprep.subr.mxu0 0.0
      %899 = vmatpush1.msra.mxu0 0.0
      %900 = vmatprep.subr.mxu0 0.0
      %901 = vmatpush1.msra.mxu0 0.0
      %902 = vmatprep.subr.mxu0 0.0
      %903 = vmatpush1.msra.mxu0 0.0
      %904 = vmatprep.subr.mxu0 0.0
      %905 = vmatpush1.msra.mxu0 0.0
      %906 = vmatprep.subr.mxu0 0.0
      %907 = vmatpush1.msra.mxu0 0.0
      %908 = vmatprep.subr.mxu0 0.0
      %909 = vmatpush1.msra.mxu0 0.0
      %910 = vmatprep.subr.mxu0 0.0
      %911 = vmatpush1.msra.mxu0 0.0
      %912 = vmatprep.subr.mxu0 0.0
      %913 = vmatpush1.msra.mxu0 0.0
      %914 = vmatprep.subr.mxu0 0.0
      %915 = vmatpush1.msra.mxu0 0.0
      %916 = vmatprep.subr.mxu0 0.0
      %917 = vmatpush1.msra.mxu0 %v798
      %918 = vmatprep.subr.mxu0 0.0
      %919 = vmatpush1.msra.mxu0 %v795
      %920 = vmatprep.subr.mxu0 0.0
      %921 = vmatpush2.msra.mxu0 0.0
      %922 = vmatprep.subr.mxu0 0.0
      %923 = vmatpush2.msra.mxu0 0.0
      %924 = vmatprep.subr.mxu0 0.0
      %925 = vmatpush2.msra.mxu0 0.0
      %926 = vmatprep.subr.mxu0 0.0
      %927 = vmatpush2.msra.mxu0 0.0
      %928 = vmatprep.subr.mxu0 0.0
      %929 = vmatpush2.msra.mxu0 0.0
      %930 = vmatprep.subr.mxu0 0.0
      %931 = vmatpush2.msra.mxu0 0.0
      %932 = vmatprep.subr.mxu0 0.0
      %933 = vmatpush2.msra.mxu0 0.0
      %934 = vmatprep.subr.mxu0 0.0
      %935 = vmatpush2.msra.mxu0 0.0
      %936 = vmatprep.subr.mxu0 0.0
      %937 = vmatpush2.msra.mxu0 0.0
      %938 = vmatprep.subr.mxu0 0.0
      %939 = vmatpush2.msra.mxu0 0.0
      %940 = vmatprep.subr.mxu0 0.0
      %941 = vmatpush2.msra.mxu0 0.0
      %942 = vmatprep.subr.mxu0 0.0
      %943 = vmatpush2.msra.mxu0 0.0
      %944 = vmatprep.subr.mxu0 0.0
      %945 = vmatpush2.msra.mxu0 0.0
      %946 = vmatprep.subr.mxu0 0.0
      %947 = vmatpush2.msra.mxu0 0.0
      %948 = vmatprep.subr.mxu0 0.0
      %949 = vmatpush2.msra.mxu0 0.0
      %950 = vmatprep.subr.mxu0 0.0
      %951 = vmatpush2.msra.mxu0 0.0
      %952 = vmatprep.mubr.f32.mxu0 0.0
      %953 = vmatmul.mubr.f32.gmra.mxu0 %v806
      %v954 = vpop.f32.mrf.mxu0
      %v955 = vadd.f32 0.0, %v954
      %v956 = vpop.f32.mrf.mxu0
      %957 = vmatprep.mubr.f32.mxu0 0.0
      %958 = vmatmul.mubr.f32.gmra.mxu0 %v809
      %v959 = vpop.f32.mrf.mxu0
      %v960 = vadd.f32 0.0, %v959
      %v961 = vpop.f32.mrf.mxu0
      %962 = vdwg.mxu0
      %v963 = vadd.f32 %v689, %v878
      %v964 = vadd.f32 %v691, %v880
      %v965 = vadd.f32 %v766, %v955
      %v966 = vadd.f32 %v695, %v884
      %v967 = vadd.f32 %v697, %v886
      %v968 = vadd.f32 %v771, %v960
      %v969 = vld [vmem:[%s4 + $0x30] sm:$0xff]
      %v970 = vld [vmem:[%s4 + $0x38] sm:$0xff]
      %971 = vrot.lane.b32.xlu0 %v381, 1
      %v972 = vpop.permute.xlu0 %971
      %973 = vrot.lane.b32.xlu0 %v382, 1
      %v974 = vpop.permute.xlu0 %973
      %975 = vrot.lane.b32.xlu0 %v383, 1
      %v976 = vpop.permute.xlu0 %975
      %977 = vrot.lane.b32.xlu0 %v384, 1
      %v978 = vpop.permute.xlu0 %977
      %979 = vrot.lane.b32.xlu0 %v385, 1
      %v980 = vpop.permute.xlu0 %979
      %981 = vrot.lane.b32.xlu0 %v386, 1
      %v982 = vpop.permute.xlu0 %981
      %983 = vrot.lane.b32.xlu0 %v387, 1
      %v984 = vpop.permute.xlu0 %983
      %985 = vrot.lane.b32.xlu0 %v388, 1
      %v986 = vpop.permute.xlu0 %985
      %vm987 = vcmask 7168
      %v988 = vsel %vm987, %v972, %v974
      %v989 = vsel %vm987, %v974, %v976
      %v990 = vsel %vm987, %v976, %v978
      %v991 = vsel %vm987, %v980, %v982
      %v992 = vsel %vm987, %v982, %v984
      %v993 = vsel %vm987, %v984, %v986
      %v1001 = vsel %vm428, %v969, 0
      %v1004 = vsel %vm428, %v970, 0
      %1006 = vmatprep.subr.mxu0 0.0
      %1007 = vmatpush1.msra.mxu0 0.0
      %1008 = vmatprep.subr.mxu0 0.0
      %1009 = vmatpush1.msra.mxu0 0.0
      %1010 = vmatprep.subr.mxu0 0.0
      %1011 = vmatpush1.msra.mxu0 0.0
      %1012 = vmatprep.subr.mxu0 0.0
      %1013 = vmatpush1.msra.mxu0 0.0
      %1014 = vmatprep.subr.mxu0 0.0
      %1015 = vmatpush1.msra.mxu0 0.0
      %1016 = vmatprep.subr.mxu0 0.0
      %1017 = vmatpush1.msra.mxu0 0.0
      %1018 = vmatprep.subr.mxu0 0.0
      %1019 = vmatpush1.msra.mxu0 0.0
      %1020 = vmatprep.subr.mxu0 0.0
      %1021 = vmatpush1.msra.mxu0 0.0
      %1022 = vmatprep.subr.mxu0 0.0
      %1023 = vmatpush1.msra.mxu0 0.0
      %1024 = vmatprep.subr.mxu0 0.0
      %1025 = vmatpush1.msra.mxu0 0.0
      %1026 = vmatprep.subr.mxu0 0.0
      %1027 = vmatpush1.msra.mxu0 0.0
      %1028 = vmatprep.subr.mxu0 0.0
      %1029 = vmatpush1.msra.mxu0 0.0
      %1030 = vmatprep.subr.mxu0 0.0
      %1031 = vmatpush1.msra.mxu0 0.0
      %1032 = vmatprep.subr.mxu0 0.0
      %1033 = vmatpush1.msra.mxu0 0.0
      %1034 = vmatprep.subr.mxu0 %v992
      %1035 = vmatpush1.msra.mxu0 %v991
      %1036 = vmatprep.subr.mxu0 %v989
      %1037 = vmatpush1.msra.mxu0 %v988
      %1038 = vmatprep.subr.mxu0 0.0
      %1039 = vmatpush2.msra.mxu0 0.0
      %1040 = vmatprep.subr.mxu0 0.0
      %1041 = vmatpush2.msra.mxu0 0.0
      %1042 = vmatprep.subr.mxu0 0.0
      %1043 = vmatpush2.msra.mxu0 0.0
      %1044 = vmatprep.subr.mxu0 0.0
      %1045 = vmatpush2.msra.mxu0 0.0
      %1046 = vmatprep.subr.mxu0 0.0
      %1047 = vmatpush2.msra.mxu0 0.0
      %1048 = vmatprep.subr.mxu0 0.0
      %1049 = vmatpush2.msra.mxu0 0.0
      %1050 = vmatprep.subr.mxu0 0.0
      %1051 = vmatpush2.msra.mxu0 0.0
      %1052 = vmatprep.subr.mxu0 0.0
      %1053 = vmatpush2.msra.mxu0 0.0
      %1054 = vmatprep.subr.mxu0 0.0
      %1055 = vmatpush2.msra.mxu0 0.0
      %1056 = vmatprep.subr.mxu0 0.0
      %1057 = vmatpush2.msra.mxu0 0.0
      %1058 = vmatprep.subr.mxu0 0.0
      %1059 = vmatpush2.msra.mxu0 0.0
      %1060 = vmatprep.subr.mxu0 0.0
      %1061 = vmatpush2.msra.mxu0 0.0
      %1062 = vmatprep.subr.mxu0 0.0
      %1063 = vmatpush2.msra.mxu0 0.0
      %1064 = vmatprep.subr.mxu0 0.0
      %1065 = vmatpush2.msra.mxu0 0.0
      %1066 = vmatprep.subr.mxu0 0.0
      %1067 = vmatpush2.msra.mxu0 0.0
      %1068 = vmatprep.subr.mxu0 0.0
      %1069 = vmatpush2.msra.mxu0 0.0
      %1070 = vmatprep.mubr.f32.mxu0 0.0
      %1071 = vmatmul.mubr.f32.gmra.mxu0 %v1001
      %v1072 = vpop.f32.mrf.mxu0
      %v1073 = vadd.f32 0.0, %v1072
      %v1074 = vpop.f32.mrf.mxu0
      %v1075 = vadd.f32 0.0, %v1074
      %1076 = vmatprep.mubr.f32.mxu0 0.0
      %1077 = vmatmul.mubr.f32.gmra.mxu0 %v1004
      %v1078 = vpop.f32.mrf.mxu0
      %v1079 = vadd.f32 0.0, %v1078
      %v1080 = vpop.f32.mrf.mxu0
      %v1081 = vadd.f32 0.0, %v1080
      %1082 = vdwg.mxu0
      %1083 = vmatprep.subr.mxu0 0.0
      %1084 = vmatpush1.msra.mxu0 0.0
      %1085 = vmatprep.subr.mxu0 0.0
      %1086 = vmatpush1.msra.mxu0 0.0
      %1087 = vmatprep.subr.mxu0 0.0
      %1088 = vmatpush1.msra.mxu0 0.0
      %1089 = vmatprep.subr.mxu0 0.0
      %1090 = vmatpush1.msra.mxu0 0.0
      %1091 = vmatprep.subr.mxu0 0.0
      %1092 = vmatpush1.msra.mxu0 0.0
      %1093 = vmatprep.subr.mxu0 0.0
      %1094 = vmatpush1.msra.mxu0 0.0
      %1095 = vmatprep.subr.mxu0 0.0
      %1096 = vmatpush1.msra.mxu0 0.0
      %1097 = vmatprep.subr.mxu0 0.0
      %1098 = vmatpush1.msra.mxu0 0.0
      %1099 = vmatprep.subr.mxu0 0.0
      %1100 = vmatpush1.msra.mxu0 0.0
      %1101 = vmatprep.subr.mxu0 0.0
      %1102 = vmatpush1.msra.mxu0 0.0
      %1103 = vmatprep.subr.mxu0 0.0
      %1104 = vmatpush1.msra.mxu0 0.0
      %1105 = vmatprep.subr.mxu0 0.0
      %1106 = vmatpush1.msra.mxu0 0.0
      %1107 = vmatprep.subr.mxu0 0.0
      %1108 = vmatpush1.msra.mxu0 0.0
      %1109 = vmatprep.subr.mxu0 0.0
      %1110 = vmatpush1.msra.mxu0 0.0
      %1111 = vmatprep.subr.mxu0 0.0
      %1112 = vmatpush1.msra.mxu0 %v993
      %1113 = vmatprep.subr.mxu0 0.0
      %1114 = vmatpush1.msra.mxu0 %v990
      %1115 = vmatprep.subr.mxu0 0.0
      %1116 = vmatpush2.msra.mxu0 0.0
      %1117 = vmatprep.subr.mxu0 0.0
      %1118 = vmatpush2.msra.mxu0 0.0
      %1119 = vmatprep.subr.mxu0 0.0
      %1120 = vmatpush2.msra.mxu0 0.0
      %1121 = vmatprep.subr.mxu0 0.0
      %1122 = vmatpush2.msra.mxu0 0.0
      %1123 = vmatprep.subr.mxu0 0.0
      %1124 = vmatpush2.msra.mxu0 0.0
      %1125 = vmatprep.subr.mxu0 0.0
      %1126 = vmatpush2.msra.mxu0 0.0
      %1127 = vmatprep.subr.mxu0 0.0
      %1128 = vmatpush2.msra.mxu0 0.0
      %1129 = vmatprep.subr.mxu0 0.0
      %1130 = vmatpush2.msra.mxu0 0.0
      %1131 = vmatprep.subr.mxu0 0.0
      %1132 = vmatpush2.msra.mxu0 0.0
      %1133 = vmatprep.subr.mxu0 0.0
      %1134 = vmatpush2.msra.mxu0 0.0
      %1135 = vmatprep.subr.mxu0 0.0
      %1136 = vmatpush2.msra.mxu0 0.0
      %1137 = vmatprep.subr.mxu0 0.0
      %1138 = vmatpush2.msra.mxu0 0.0
      %1139 = vmatprep.subr.mxu0 0.0
      %1140 = vmatpush2.msra.mxu0 0.0
      %1141 = vmatprep.subr.mxu0 0.0
      %1142 = vmatpush2.msra.mxu0 0.0
      %1143 = vmatprep.subr.mxu0 0.0
      %1144 = vmatpush2.msra.mxu0 0.0
      %1145 = vmatprep.subr.mxu0 0.0
      %1146 = vmatpush2.msra.mxu0 0.0
      %1147 = vmatprep.mubr.f32.mxu0 0.0
      %1148 = vmatmul.mubr.f32.gmra.mxu0 %v1001
      %v1149 = vpop.f32.mrf.mxu0
      %v1150 = vadd.f32 0.0, %v1149
      %v1151 = vpop.f32.mrf.mxu0
      %1152 = vmatprep.mubr.f32.mxu0 0.0
      %1153 = vmatmul.mubr.f32.gmra.mxu0 %v1004
      %v1154 = vpop.f32.mrf.mxu0
      %v1155 = vadd.f32 0.0, %v1154
      %v1156 = vpop.f32.mrf.mxu0
      %1157 = vdwg.mxu0
      %v1158 = vadd.f32 %v963, %v1073
      %v1159 = vadd.f32 %v964, %v1075
      %v1160 = vadd.f32 %v965, %v1150
      %v1161 = vadd.f32 %v966, %v1079
      %v1162 = vadd.f32 %v967, %v1081
      %v1163 = vadd.f32 %v968, %v1155
      %v1164 = vld [vmem:[%s4 + $0x40] sm:$0xff]
      %v1165 = vld [vmem:[%s4 + $0x48] sm:$0xff]
      %v1167 = vsel %vm428, %v1164, 0
      %v1170 = vsel %vm428, %v1165, 0
      %1172 = vmatprep.subr.mxu0 0.0
      %1173 = vmatpush1.msra.mxu0 0.0
      %1174 = vmatprep.subr.mxu0 0.0
      %1175 = vmatpush1.msra.mxu0 0.0
      %1176 = vmatprep.subr.mxu0 0.0
      %1177 = vmatpush1.msra.mxu0 0.0
      %1178 = vmatprep.subr.mxu0 0.0
      %1179 = vmatpush1.msra.mxu0 0.0
      %1180 = vmatprep.subr.mxu0 0.0
      %1181 = vmatpush1.msra.mxu0 0.0
      %1182 = vmatprep.subr.mxu0 0.0
      %1183 = vmatpush1.msra.mxu0 0.0
      %1184 = vmatprep.subr.mxu0 0.0
      %1185 = vmatpush1.msra.mxu0 0.0
      %1186 = vmatprep.subr.mxu0 0.0
      %1187 = vmatpush1.msra.mxu0 0.0
      %1188 = vmatprep.subr.mxu0 0.0
      %1189 = vmatpush1.msra.mxu0 0.0
      %1190 = vmatprep.subr.mxu0 0.0
      %1191 = vmatpush1.msra.mxu0 0.0
      %1192 = vmatprep.subr.mxu0 0.0
      %1193 = vmatpush1.msra.mxu0 0.0
      %1194 = vmatprep.subr.mxu0 0.0
      %1195 = vmatpush1.msra.mxu0 0.0
      %1196 = vmatprep.subr.mxu0 0.0
      %1197 = vmatpush1.msra.mxu0 0.0
      %1198 = vmatprep.subr.mxu0 0.0
      %1199 = vmatpush1.msra.mxu0 0.0
      %1200 = vmatprep.subr.mxu0 %v387
      %1201 = vmatpush1.msra.mxu0 %v386
      %1202 = vmatprep.subr.mxu0 %v383
      %1203 = vmatpush1.msra.mxu0 %v382
      %1204 = vmatprep.subr.mxu0 0.0
      %1205 = vmatpush2.msra.mxu0 0.0
      %1206 = vmatprep.subr.mxu0 0.0
      %1207 = vmatpush2.msra.mxu0 0.0
      %1208 = vmatprep.subr.mxu0 0.0
      %1209 = vmatpush2.msra.mxu0 0.0
      %1210 = vmatprep.subr.mxu0 0.0
      %1211 = vmatpush2.msra.mxu0 0.0
      %1212 = vmatprep.subr.mxu0 0.0
      %1213 = vmatpush2.msra.mxu0 0.0
      %1214 = vmatprep.subr.mxu0 0.0
      %1215 = vmatpush2.msra.mxu0 0.0
      %1216 = vmatprep.subr.mxu0 0.0
      %1217 = vmatpush2.msra.mxu0 0.0
      %1218 = vmatprep.subr.mxu0 0.0
      %1219 = vmatpush2.msra.mxu0 0.0
      %1220 = vmatprep.subr.mxu0 0.0
      %1221 = vmatpush2.msra.mxu0 0.0
      %1222 = vmatprep.subr.mxu0 0.0
      %1223 = vmatpush2.msra.mxu0 0.0
      %1224 = vmatprep.subr.mxu0 0.0
      %1225 = vmatpush2.msra.mxu0 0.0
      %1226 = vmatprep.subr.mxu0 0.0
      %1227 = vmatpush2.msra.mxu0 0.0
      %1228 = vmatprep.subr.mxu0 0.0
      %1229 = vmatpush2.msra.mxu0 0.0
      %1230 = vmatprep.subr.mxu0 0.0
      %1231 = vmatpush2.msra.mxu0 0.0
      %1232 = vmatprep.subr.mxu0 0.0
      %1233 = vmatpush2.msra.mxu0 0.0
      %1234 = vmatprep.subr.mxu0 0.0
      %1235 = vmatpush2.msra.mxu0 0.0
      %1236 = vmatprep.mubr.f32.mxu0 0.0
      %1237 = vmatmul.mubr.f32.gmra.mxu0 %v1167
      %v1238 = vpop.f32.mrf.mxu0
      %v1239 = vadd.f32 0.0, %v1238
      %v1240 = vpop.f32.mrf.mxu0
      %v1241 = vadd.f32 0.0, %v1240
      %1242 = vmatprep.mubr.f32.mxu0 0.0
      %1243 = vmatmul.mubr.f32.gmra.mxu0 %v1170
      %v1244 = vpop.f32.mrf.mxu0
      %v1245 = vadd.f32 0.0, %v1244
      %v1246 = vpop.f32.mrf.mxu0
      %v1247 = vadd.f32 0.0, %v1246
      %1248 = vdwg.mxu0
      %1249 = vmatprep.subr.mxu0 0.0
      %1250 = vmatpush1.msra.mxu0 0.0
      %1251 = vmatprep.subr.mxu0 0.0
      %1252 = vmatpush1.msra.mxu0 0.0
      %1253 = vmatprep.subr.mxu0 0.0
      %1254 = vmatpush1.msra.mxu0 0.0
      %1255 = vmatprep.subr.mxu0 0.0
      %1256 = vmatpush1.msra.mxu0 0.0
      %1257 = vmatprep.subr.mxu0 0.0
      %1258 = vmatpush1.msra.mxu0 0.0
      %1259 = vmatprep.subr.mxu0 0.0
      %1260 = vmatpush1.msra.mxu0 0.0
      %1261 = vmatprep.subr.mxu0 0.0
      %1262 = vmatpush1.msra.mxu0 0.0
      %1263 = vmatprep.subr.mxu0 0.0
      %1264 = vmatpush1.msra.mxu0 0.0
      %1265 = vmatprep.subr.mxu0 0.0
      %1266 = vmatpush1.msra.mxu0 0.0
      %1267 = vmatprep.subr.mxu0 0.0
      %1268 = vmatpush1.msra.mxu0 0.0
      %1269 = vmatprep.subr.mxu0 0.0
      %1270 = vmatpush1.msra.mxu0 0.0
      %1271 = vmatprep.subr.mxu0 0.0
      %1272 = vmatpush1.msra.mxu0 0.0
      %1273 = vmatprep.subr.mxu0 0.0
      %1274 = vmatpush1.msra.mxu0 0.0
      %1275 = vmatprep.subr.mxu0 0.0
      %1276 = vmatpush1.msra.mxu0 0.0
      %1277 = vmatprep.subr.mxu0 0.0
      %1278 = vmatpush1.msra.mxu0 %v388
      %1279 = vmatprep.subr.mxu0 0.0
      %1280 = vmatpush1.msra.mxu0 %v384
      %1281 = vmatprep.subr.mxu0 0.0
      %1282 = vmatpush2.msra.mxu0 0.0
      %1283 = vmatprep.subr.mxu0 0.0
      %1284 = vmatpush2.msra.mxu0 0.0
      %1285 = vmatprep.subr.mxu0 0.0
      %1286 = vmatpush2.msra.mxu0 0.0
      %1287 = vmatprep.subr.mxu0 0.0
      %1288 = vmatpush2.msra.mxu0 0.0
      %1289 = vmatprep.subr.mxu0 0.0
      %1290 = vmatpush2.msra.mxu0 0.0
      %1291 = vmatprep.subr.mxu0 0.0
      %1292 = vmatpush2.msra.mxu0 0.0
      %1293 = vmatprep.subr.mxu0 0.0
      %1294 = vmatpush2.msra.mxu0 0.0
      %1295 = vmatprep.subr.mxu0 0.0
      %1296 = vmatpush2.msra.mxu0 0.0
      %1297 = vmatprep.subr.mxu0 0.0
      %1298 = vmatpush2.msra.mxu0 0.0
      %1299 = vmatprep.subr.mxu0 0.0
      %1300 = vmatpush2.msra.mxu0 0.0
      %1301 = vmatprep.subr.mxu0 0.0
      %1302 = vmatpush2.msra.mxu0 0.0
      %1303 = vmatprep.subr.mxu0 0.0
      %1304 = vmatpush2.msra.mxu0 0.0
      %1305 = vmatprep.subr.mxu0 0.0
      %1306 = vmatpush2.msra.mxu0 0.0
      %1307 = vmatprep.subr.mxu0 0.0
      %1308 = vmatpush2.msra.mxu0 0.0
      %1309 = vmatprep.subr.mxu0 0.0
      %1310 = vmatpush2.msra.mxu0 0.0
      %1311 = vmatprep.subr.mxu0 0.0
      %1312 = vmatpush2.msra.mxu0 0.0
      %1313 = vmatprep.mubr.f32.mxu0 0.0
      %1314 = vmatmul.mubr.f32.gmra.mxu0 %v1167
      %v1315 = vpop.f32.mrf.mxu0
      %v1316 = vadd.f32 0.0, %v1315
      %v1317 = vpop.f32.mrf.mxu0
      %1318 = vmatprep.mubr.f32.mxu0 0.0
      %1319 = vmatmul.mubr.f32.gmra.mxu0 %v1170
      %v1320 = vpop.f32.mrf.mxu0
      %v1321 = vadd.f32 0.0, %v1320
      %v1322 = vpop.f32.mrf.mxu0
      %1323 = vdwg.mxu0
      %v1324 = vadd.f32 %v1158, %v1239
      %v1325 = vadd.f32 %v1159, %v1241
      %v1326 = vadd.f32 %v1160, %v1316
      %v1327 = vadd.f32 %v1161, %v1245
      %v1328 = vadd.f32 %v1162, %v1247
      %v1329 = vadd.f32 %v1163, %v1321
      %v1330 = vld [vmem:[%s4 + $0x50] sm:$0xff]
      %v1331 = vld [vmem:[%s4 + $0x58] sm:$0xff]
      %v1332 = vld [vmem:[#allocation2 + $0x8] sm:$0xff]
      %v1333 = vld [vmem:[#allocation2 + $0x10] sm:$0xff]
      %v1334 = vld [vmem:[#allocation2 + $0x18] sm:$0xff]
      %v1335 = vld [vmem:[#allocation2 + $0x20] sm:$0xff]
      %v1336 = vld [vmem:[#allocation2 + $0x30] sm:$0xff]
      %v1337 = vld [vmem:[#allocation2 + $0x38] sm:$0xff]
      %v1338 = vld [vmem:[#allocation2 + $0x40] sm:$0xff]
      %v1339 = vld [vmem:[#allocation2 + $0x48] sm:$0xff]
      %1348 = vrot.lane.b32.xlu0 %v1332, 127
      %v1349 = vpop.permute.xlu0 %1348
      %1350 = vrot.lane.b32.xlu0 %v1333, 127
      %v1351 = vpop.permute.xlu0 %1350
      %1352 = vrot.lane.b32.xlu0 %v1334, 127
      %v1353 = vpop.permute.xlu0 %1352
      %1354 = vrot.lane.b32.xlu0 %v1335, 127
      %v1355 = vpop.permute.xlu0 %1354
      %1356 = vrot.lane.b32.xlu0 %v1336, 127
      %v1357 = vpop.permute.xlu0 %1356
      %1358 = vrot.lane.b32.xlu0 %v1337, 127
      %v1359 = vpop.permute.xlu0 %1358
      %1360 = vrot.lane.b32.xlu0 %v1338, 127
      %v1361 = vpop.permute.xlu0 %1360
      %1362 = vrot.lane.b32.xlu0 %v1339, 127
      %v1363 = vpop.permute.xlu0 %1362
      %vm1364 = vcmask 1039360
      %v1365 = vsel %vm1364, %v1349, %v1351
      %v1366 = vsel %vm1364, %v1351, %v1353
      %v1367 = vsel %vm1364, %v1353, %v1355
      %v1368 = vsel %vm1364, %v1357, %v1359
      %v1369 = vsel %vm1364, %v1359, %v1361
      %v1370 = vsel %vm1364, %v1361, %v1363
      %v1378 = vsel %vm428, %v1330, 0
      %v1381 = vsel %vm428, %v1331, 0
      %1383 = vmatprep.subr.mxu0 0.0
      %1384 = vmatpush1.msra.mxu0 0.0
      %1385 = vmatprep.subr.mxu0 0.0
      %1386 = vmatpush1.msra.mxu0 0.0
      %1387 = vmatprep.subr.mxu0 0.0
      %1388 = vmatpush1.msra.mxu0 0.0
      %1389 = vmatprep.subr.mxu0 0.0
      %1390 = vmatpush1.msra.mxu0 0.0
      %1391 = vmatprep.subr.mxu0 0.0
      %1392 = vmatpush1.msra.mxu0 0.0
      %1393 = vmatprep.subr.mxu0 0.0
      %1394 = vmatpush1.msra.mxu0 0.0
      %1395 = vmatprep.subr.mxu0 0.0
      %1396 = vmatpush1.msra.mxu0 0.0
      %1397 = vmatprep.subr.mxu0 0.0
      %1398 = vmatpush1.msra.mxu0 0.0
      %1399 = vmatprep.subr.mxu0 0.0
      %1400 = vmatpush1.msra.mxu0 0.0
      %1401 = vmatprep.subr.mxu0 0.0
      %1402 = vmatpush1.msra.mxu0 0.0
      %1403 = vmatprep.subr.mxu0 0.0
      %1404 = vmatpush1.msra.mxu0 0.0
      %1405 = vmatprep.subr.mxu0 0.0
      %1406 = vmatpush1.msra.mxu0 0.0
      %1407 = vmatprep.subr.mxu0 0.0
      %1408 = vmatpush1.msra.mxu0 0.0
      %1409 = vmatprep.subr.mxu0 0.0
      %1410 = vmatpush1.msra.mxu0 0.0
      %1411 = vmatprep.subr.mxu0 %v1369
      %1412 = vmatpush1.msra.mxu0 %v1368
      %1413 = vmatprep.subr.mxu0 %v1366
      %1414 = vmatpush1.msra.mxu0 %v1365
      %1415 = vmatprep.subr.mxu0 0.0
      %1416 = vmatpush2.msra.mxu0 0.0
      %1417 = vmatprep.subr.mxu0 0.0
      %1418 = vmatpush2.msra.mxu0 0.0
      %1419 = vmatprep.subr.mxu0 0.0
      %1420 = vmatpush2.msra.mxu0 0.0
      %1421 = vmatprep.subr.mxu0 0.0
      %1422 = vmatpush2.msra.mxu0 0.0
      %1423 = vmatprep.subr.mxu0 0.0
      %1424 = vmatpush2.msra.mxu0 0.0
      %1425 = vmatprep.subr.mxu0 0.0
      %1426 = vmatpush2.msra.mxu0 0.0
      %1427 = vmatprep.subr.mxu0 0.0
      %1428 = vmatpush2.msra.mxu0 0.0
      %1429 = vmatprep.subr.mxu0 0.0
      %1430 = vmatpush2.msra.mxu0 0.0
      %1431 = vmatprep.subr.mxu0 0.0
      %1432 = vmatpush2.msra.mxu0 0.0
      %1433 = vmatprep.subr.mxu0 0.0
      %1434 = vmatpush2.msra.mxu0 0.0
      %1435 = vmatprep.subr.mxu0 0.0
      %1436 = vmatpush2.msra.mxu0 0.0
      %1437 = vmatprep.subr.mxu0 0.0
      %1438 = vmatpush2.msra.mxu0 0.0
      %1439 = vmatprep.subr.mxu0 0.0
      %1440 = vmatpush2.msra.mxu0 0.0
      %1441 = vmatprep.subr.mxu0 0.0
      %1442 = vmatpush2.msra.mxu0 0.0
      %1443 = vmatprep.subr.mxu0 0.0
      %1444 = vmatpush2.msra.mxu0 0.0
      %1445 = vmatprep.subr.mxu0 0.0
      %1446 = vmatpush2.msra.mxu0 0.0
      %1447 = vmatprep.mubr.f32.mxu0 0.0
      %1448 = vmatmul.mubr.f32.gmra.mxu0 %v1378
      %v1449 = vpop.f32.mrf.mxu0
      %v1450 = vadd.f32 0.0, %v1449
      %v1451 = vpop.f32.mrf.mxu0
      %v1452 = vadd.f32 0.0, %v1451
      %1453 = vmatprep.mubr.f32.mxu0 0.0
      %1454 = vmatmul.mubr.f32.gmra.mxu0 %v1381
      %v1455 = vpop.f32.mrf.mxu0
      %v1456 = vadd.f32 0.0, %v1455
      %v1457 = vpop.f32.mrf.mxu0
      %v1458 = vadd.f32 0.0, %v1457
      %1459 = vdwg.mxu0
      %1460 = vmatprep.subr.mxu0 0.0
      %1461 = vmatpush1.msra.mxu0 0.0
      %1462 = vmatprep.subr.mxu0 0.0
      %1463 = vmatpush1.msra.mxu0 0.0
      %1464 = vmatprep.subr.mxu0 0.0
      %1465 = vmatpush1.msra.mxu0 0.0
      %1466 = vmatprep.subr.mxu0 0.0
      %1467 = vmatpush1.msra.mxu0 0.0
      %1468 = vmatprep.subr.mxu0 0.0
      %1469 = vmatpush1.msra.mxu0 0.0
      %1470 = vmatprep.subr.mxu0 0.0
      %1471 = vmatpush1.msra.mxu0 0.0
      %1472 = vmatprep.subr.mxu0 0.0
      %1473 = vmatpush1.msra.mxu0 0.0
      %1474 = vmatprep.subr.mxu0 0.0
      %1475 = vmatpush1.msra.mxu0 0.0
      %1476 = vmatprep.subr.mxu0 0.0
      %1477 = vmatpush1.msra.mxu0 0.0
      %1478 = vmatprep.subr.mxu0 0.0
      %1479 = vmatpush1.msra.mxu0 0.0
      %1480 = vmatprep.subr.mxu0 0.0
      %1481 = vmatpush1.msra.mxu0 0.0
      %1482 = vmatprep.subr.mxu0 0.0
      %1483 = vmatpush1.msra.mxu0 0.0
      %1484 = vmatprep.subr.mxu0 0.0
      %1485 = vmatpush1.msra.mxu0 0.0
      %1486 = vmatprep.subr.mxu0 0.0
      %1487 = vmatpush1.msra.mxu0 0.0
      %1488 = vmatprep.subr.mxu0 0.0
      %1489 = vmatpush1.msra.mxu0 %v1370
      %1490 = vmatprep.subr.mxu0 0.0
      %1491 = vmatpush1.msra.mxu0 %v1367
      %1492 = vmatprep.subr.mxu0 0.0
      %1493 = vmatpush2.msra.mxu0 0.0
      %1494 = vmatprep.subr.mxu0 0.0
      %1495 = vmatpush2.msra.mxu0 0.0
      %1496 = vmatprep.subr.mxu0 0.0
      %1497 = vmatpush2.msra.mxu0 0.0
      %1498 = vmatprep.subr.mxu0 0.0
      %1499 = vmatpush2.msra.mxu0 0.0
      %1500 = vmatprep.subr.mxu0 0.0
      %1501 = vmatpush2.msra.mxu0 0.0
      %1502 = vmatprep.subr.mxu0 0.0
      %1503 = vmatpush2.msra.mxu0 0.0
      %1504 = vmatprep.subr.mxu0 0.0
      %1505 = vmatpush2.msra.mxu0 0.0
      %1506 = vmatprep.subr.mxu0 0.0
      %1507 = vmatpush2.msra.mxu0 0.0
      %1508 = vmatprep.subr.mxu0 0.0
      %1509 = vmatpush2.msra.mxu0 0.0
      %1510 = vmatprep.subr.mxu0 0.0
      %1511 = vmatpush2.msra.mxu0 0.0
      %1512 = vmatprep.subr.mxu0 0.0
      %1513 = vmatpush2.msra.mxu0 0.0
      %1514 = vmatprep.subr.mxu0 0.0
      %1515 = vmatpush2.msra.mxu0 0.0
      %1516 = vmatprep.subr.mxu0 0.0
      %1517 = vmatpush2.msra.mxu0 0.0
      %1518 = vmatprep.subr.mxu0 0.0
      %1519 = vmatpush2.msra.mxu0 0.0
      %1520 = vmatprep.subr.mxu0 0.0
      %1521 = vmatpush2.msra.mxu0 0.0
      %1522 = vmatprep.subr.mxu0 0.0
      %1523 = vmatpush2.msra.mxu0 0.0
      %1524 = vmatprep.mubr.f32.mxu0 0.0
      %1525 = vmatmul.mubr.f32.gmra.mxu0 %v1378
      %v1526 = vpop.f32.mrf.mxu0
      %v1527 = vadd.f32 0.0, %v1526
      %v1528 = vpop.f32.mrf.mxu0
      %1529 = vmatprep.mubr.f32.mxu0 0.0
      %1530 = vmatmul.mubr.f32.gmra.mxu0 %v1381
      %v1531 = vpop.f32.mrf.mxu0
      %v1532 = vadd.f32 0.0, %v1531
      %v1533 = vpop.f32.mrf.mxu0
      %1534 = vdwg.mxu0
      %v1535 = vadd.f32 %v1324, %v1450
      %v1536 = vadd.f32 %v1325, %v1452
      %v1537 = vadd.f32 %v1326, %v1527
      %v1538 = vadd.f32 %v1327, %v1456
      %v1539 = vadd.f32 %v1328, %v1458
      %v1540 = vadd.f32 %v1329, %v1532
      %v1541 = vld [vmem:[%s4 + $0x60] sm:$0xff]
      %v1542 = vld [vmem:[%s4 + $0x68] sm:$0xff]
      %1543 = vrot.lane.b32.xlu0 %v1332, 111
      %v1544 = vpop.permute.xlu0 %1543
      %1545 = vrot.lane.b32.xlu0 %v1333, 111
      %v1546 = vpop.permute.xlu0 %1545
      %1547 = vrot.lane.b32.xlu0 %v1334, 111
      %v1548 = vpop.permute.xlu0 %1547
      %1549 = vrot.lane.b32.xlu0 %v1335, 111
      %v1550 = vpop.permute.xlu0 %1549
      %1551 = vrot.lane.b32.xlu0 %v1336, 111
      %v1552 = vpop.permute.xlu0 %1551
      %1553 = vrot.lane.b32.xlu0 %v1337, 111
      %v1554 = vpop.permute.xlu0 %1553
      %1555 = vrot.lane.b32.xlu0 %v1338, 111
      %v1556 = vpop.permute.xlu0 %1555
      %1557 = vrot.lane.b32.xlu0 %v1339, 111
      %v1558 = vpop.permute.xlu0 %1557
      %vm1559 = vcmask 908288
      %v1560 = vsel %vm1559, %v1544, %v1546
      %v1561 = vsel %vm1559, %v1546, %v1548
      %v1562 = vsel %vm1559, %v1548, %v1550
      %v1563 = vsel %vm1559, %v1552, %v1554
      %v1564 = vsel %vm1559, %v1554, %v1556
      %v1565 = vsel %vm1559, %v1556, %v1558
      %v1573 = vsel %vm428, %v1541, 0
      %v1576 = vsel %vm428, %v1542, 0
      %1578 = vmatprep.subr.mxu0 0.0
      %1579 = vmatpush1.msra.mxu0 0.0
      %1580 = vmatprep.subr.mxu0 0.0
      %1581 = vmatpush1.msra.mxu0 0.0
      %1582 = vmatprep.subr.mxu0 0.0
      %1583 = vmatpush1.msra.mxu0 0.0
      %1584 = vmatprep.subr.mxu0 0.0
      %1585 = vmatpush1.msra.mxu0 0.0
      %1586 = vmatprep.subr.mxu0 0.0
      %1587 = vmatpush1.msra.mxu0 0.0
      %1588 = vmatprep.subr.mxu0 0.0
      %1589 = vmatpush1.msra.mxu0 0.0
      %1590 = vmatprep.subr.mxu0 0.0
      %1591 = vmatpush1.msra.mxu0 0.0
      %1592 = vmatprep.subr.mxu0 0.0
      %1593 = vmatpush1.msra.mxu0 0.0
      %1594 = vmatprep.subr.mxu0 0.0
      %1595 = vmatpush1.msra.mxu0 0.0
      %1596 = vmatprep.subr.mxu0 0.0
      %1597 = vmatpush1.msra.mxu0 0.0
      %1598 = vmatprep.subr.mxu0 0.0
      %1599 = vmatpush1.msra.mxu0 0.0
      %1600 = vmatprep.subr.mxu0 0.0
      %1601 = vmatpush1.msra.mxu0 0.0
      %1602 = vmatprep.subr.mxu0 0.0
      %1603 = vmatpush1.msra.mxu0 0.0
      %1604 = vmatprep.subr.mxu0 0.0
      %1605 = vmatpush1.msra.mxu0 0.0
      %1606 = vmatprep.subr.mxu0 %v1564
      %1607 = vmatpush1.msra.mxu0 %v1563
      %1608 = vmatprep.subr.mxu0 %v1561
      %1609 = vmatpush1.msra.mxu0 %v1560
      %1610 = vmatprep.subr.mxu0 0.0
      %1611 = vmatpush2.msra.mxu0 0.0
      %1612 = vmatprep.subr.mxu0 0.0
      %1613 = vmatpush2.msra.mxu0 0.0
      %1614 = vmatprep.subr.mxu0 0.0
      %1615 = vmatpush2.msra.mxu0 0.0
      %1616 = vmatprep.subr.mxu0 0.0
      %1617 = vmatpush2.msra.mxu0 0.0
      %1618 = vmatprep.subr.mxu0 0.0
      %1619 = vmatpush2.msra.mxu0 0.0
      %1620 = vmatprep.subr.mxu0 0.0
      %1621 = vmatpush2.msra.mxu0 0.0
      %1622 = vmatprep.subr.mxu0 0.0
      %1623 = vmatpush2.msra.mxu0 0.0
      %1624 = vmatprep.subr.mxu0 0.0
      %1625 = vmatpush2.msra.mxu0 0.0
      %1626 = vmatprep.subr.mxu0 0.0
      %1627 = vmatpush2.msra.mxu0 0.0
      %1628 = vmatprep.subr.mxu0 0.0
      %1629 = vmatpush2.msra.mxu0 0.0
      %1630 = vmatprep.subr.mxu0 0.0
      %1631 = vmatpush2.msra.mxu0 0.0
      %1632 = vmatprep.subr.mxu0 0.0
      %1633 = vmatpush2.msra.mxu0 0.0
      %1634 = vmatprep.subr.mxu0 0.0
      %1635 = vmatpush2.msra.mxu0 0.0
      %1636 = vmatprep.subr.mxu0 0.0
      %1637 = vmatpush2.msra.mxu0 0.0
      %1638 = vmatprep.subr.mxu0 0.0
      %1639 = vmatpush2.msra.mxu0 0.0
      %1640 = vmatprep.subr.mxu0 0.0
      %1641 = vmatpush2.msra.mxu0 0.0
      %1642 = vmatprep.mubr.f32.mxu0 0.0
      %1643 = vmatmul.mubr.f32.gmra.mxu0 %v1573
      %v1644 = vpop.f32.mrf.mxu0
      %v1645 = vadd.f32 0.0, %v1644
      %v1646 = vpop.f32.mrf.mxu0
      %v1647 = vadd.f32 0.0, %v1646
      %1648 = vmatprep.mubr.f32.mxu0 0.0
      %1649 = vmatmul.mubr.f32.gmra.mxu0 %v1576
      %v1650 = vpop.f32.mrf.mxu0
      %v1651 = vadd.f32 0.0, %v1650
      %v1652 = vpop.f32.mrf.mxu0
      %v1653 = vadd.f32 0.0, %v1652
      %1654 = vdwg.mxu0
      %1655 = vmatprep.subr.mxu0 0.0
      %1656 = vmatpush1.msra.mxu0 0.0
      %1657 = vmatprep.subr.mxu0 0.0
      %1658 = vmatpush1.msra.mxu0 0.0
      %1659 = vmatprep.subr.mxu0 0.0
      %1660 = vmatpush1.msra.mxu0 0.0
      %1661 = vmatprep.subr.mxu0 0.0
      %1662 = vmatpush1.msra.mxu0 0.0
      %1663 = vmatprep.subr.mxu0 0.0
      %1664 = vmatpush1.msra.mxu0 0.0
      %1665 = vmatprep.subr.mxu0 0.0
      %1666 = vmatpush1.msra.mxu0 0.0
      %1667 = vmatprep.subr.mxu0 0.0
      %1668 = vmatpush1.msra.mxu0 0.0
      %1669 = vmatprep.subr.mxu0 0.0
      %1670 = vmatpush1.msra.mxu0 0.0
      %1671 = vmatprep.subr.mxu0 0.0
      %1672 = vmatpush1.msra.mxu0 0.0
      %1673 = vmatprep.subr.mxu0 0.0
      %1674 = vmatpush1.msra.mxu0 0.0
      %1675 = vmatprep.subr.mxu0 0.0
      %1676 = vmatpush1.msra.mxu0 0.0
      %1677 = vmatprep.subr.mxu0 0.0
      %1678 = vmatpush1.msra.mxu0 0.0
      %1679 = vmatprep.subr.mxu0 0.0
      %1680 = vmatpush1.msra.mxu0 0.0
      %1681 = vmatprep.subr.mxu0 0.0
      %1682 = vmatpush1.msra.mxu0 0.0
      %1683 = vmatprep.subr.mxu0 0.0
      %1684 = vmatpush1.msra.mxu0 %v1565
      %1685 = vmatprep.subr.mxu0 0.0
      %1686 = vmatpush1.msra.mxu0 %v1562
      %1687 = vmatprep.subr.mxu0 0.0
      %1688 = vmatpush2.msra.mxu0 0.0
      %1689 = vmatprep.subr.mxu0 0.0
      %1690 = vmatpush2.msra.mxu0 0.0
      %1691 = vmatprep.subr.mxu0 0.0
      %1692 = vmatpush2.msra.mxu0 0.0
      %1693 = vmatprep.subr.mxu0 0.0
      %1694 = vmatpush2.msra.mxu0 0.0
      %1695 = vmatprep.subr.mxu0 0.0
      %1696 = vmatpush2.msra.mxu0 0.0
      %1697 = vmatprep.subr.mxu0 0.0
      %1698 = vmatpush2.msra.mxu0 0.0
      %1699 = vmatprep.subr.mxu0 0.0
      %1700 = vmatpush2.msra.mxu0 0.0
      %1701 = vmatprep.subr.mxu0 0.0
      %1702 = vmatpush2.msra.mxu0 0.0
      %1703 = vmatprep.subr.mxu0 0.0
      %1704 = vmatpush2.msra.mxu0 0.0
      %1705 = vmatprep.subr.mxu0 0.0
      %1706 = vmatpush2.msra.mxu0 0.0
      %1707 = vmatprep.subr.mxu0 0.0
      %1708 = vmatpush2.msra.mxu0 0.0
      %1709 = vmatprep.subr.mxu0 0.0
      %1710 = vmatpush2.msra.mxu0 0.0
      %1711 = vmatprep.subr.mxu0 0.0
      %1712 = vmatpush2.msra.mxu0 0.0
      %1713 = vmatprep.subr.mxu0 0.0
      %1714 = vmatpush2.msra.mxu0 0.0
      %1715 = vmatprep.subr.mxu0 0.0
      %1716 = vmatpush2.msra.mxu0 0.0
      %1717 = vmatprep.subr.mxu0 0.0
      %1718 = vmatpush2.msra.mxu0 0.0
      %1719 = vmatprep.mubr.f32.mxu0 0.0
      %1720 = vmatmul.mubr.f32.gmra.mxu0 %v1573
      %v1721 = vpop.f32.mrf.mxu0
      %v1722 = vadd.f32 0.0, %v1721
      %v1723 = vpop.f32.mrf.mxu0
      %1724 = vmatprep.mubr.f32.mxu0 0.0
      %1725 = vmatmul.mubr.f32.gmra.mxu0 %v1576
      %v1726 = vpop.f32.mrf.mxu0
      %v1727 = vadd.f32 0.0, %v1726
      %v1728 = vpop.f32.mrf.mxu0
      %1729 = vdwg.mxu0
      %v1730 = vadd.f32 %v1535, %v1645
      %v1731 = vadd.f32 %v1536, %v1647
      %v1732 = vadd.f32 %v1537, %v1722
      %v1733 = vadd.f32 %v1538, %v1651
      %v1734 = vadd.f32 %v1539, %v1653
      %v1735 = vadd.f32 %v1540, %v1727
      %v1736 = vld [vmem:[%s4 + $0x70] sm:$0xff]
      %v1737 = vld [vmem:[%s4 + $0x78] sm:$0xff]
      %1738 = vrot.lane.b32.xlu0 %v1332, 110
      %v1739 = vpop.permute.xlu0 %1738
      %1740 = vrot.lane.b32.xlu0 %v1333, 110
      %v1741 = vpop.permute.xlu0 %1740
      %1742 = vrot.lane.b32.xlu0 %v1334, 110
      %v1743 = vpop.permute.xlu0 %1742
      %1744 = vrot.lane.b32.xlu0 %v1335, 110
      %v1745 = vpop.permute.xlu0 %1744
      %1746 = vrot.lane.b32.xlu0 %v1336, 110
      %v1747 = vpop.permute.xlu0 %1746
      %1748 = vrot.lane.b32.xlu0 %v1337, 110
      %v1749 = vpop.permute.xlu0 %1748
      %1750 = vrot.lane.b32.xlu0 %v1338, 110
      %v1751 = vpop.permute.xlu0 %1750
      %1752 = vrot.lane.b32.xlu0 %v1339, 110
      %v1753 = vpop.permute.xlu0 %1752
      %vm1754 = vcmask 900096
      %v1755 = vsel %vm1754, %v1739, %v1741
      %v1756 = vsel %vm1754, %v1741, %v1743
      %v1757 = vsel %vm1754, %v1743, %v1745
      %v1758 = vsel %vm1754, %v1747, %v1749
      %v1759 = vsel %vm1754, %v1749, %v1751
      %v1760 = vsel %vm1754, %v1751, %v1753
      %v1768 = vsel %vm428, %v1736, 0
      %v1771 = vsel %vm428, %v1737, 0
      %1773 = vmatprep.subr.mxu0 0.0
      %1774 = vmatpush1.msra.mxu0 0.0
      %1775 = vmatprep.subr.mxu0 0.0
      %1776 = vmatpush1.msra.mxu0 0.0
      %1777 = vmatprep.subr.mxu0 0.0
      %1778 = vmatpush1.msra.mxu0 0.0
      %1779 = vmatprep.subr.mxu0 0.0
      %1780 = vmatpush1.msra.mxu0 0.0
      %1781 = vmatprep.subr.mxu0 0.0
      %1782 = vmatpush1.msra.mxu0 0.0
      %1783 = vmatprep.subr.mxu0 0.0
      %1784 = vmatpush1.msra.mxu0 0.0
      %1785 = vmatprep.subr.mxu0 0.0
      %1786 = vmatpush1.msra.mxu0 0.0
      %1787 = vmatprep.subr.mxu0 0.0
      %1788 = vmatpush1.msra.mxu0 0.0
      %1789 = vmatprep.subr.mxu0 0.0
      %1790 = vmatpush1.msra.mxu0 0.0
      %1791 = vmatprep.subr.mxu0 0.0
      %1792 = vmatpush1.msra.mxu0 0.0
      %1793 = vmatprep.subr.mxu0 0.0
      %1794 = vmatpush1.msra.mxu0 0.0
      %1795 = vmatprep.subr.mxu0 0.0
      %1796 = vmatpush1.msra.mxu0 0.0
      %1797 = vmatprep.subr.mxu0 0.0
      %1798 = vmatpush1.msra.mxu0 0.0
      %1799 = vmatprep.subr.mxu0 0.0
      %1800 = vmatpush1.msra.mxu0 0.0
      %1801 = vmatprep.subr.mxu0 %v1759
      %1802 = vmatpush1.msra.mxu0 %v1758
      %1803 = vmatprep.subr.mxu0 %v1756
      %1804 = vmatpush1.msra.mxu0 %v1755
      %1805 = vmatprep.subr.mxu0 0.0
      %1806 = vmatpush2.msra.mxu0 0.0
      %1807 = vmatprep.subr.mxu0 0.0
      %1808 = vmatpush2.msra.mxu0 0.0
      %1809 = vmatprep.subr.mxu0 0.0
      %1810 = vmatpush2.msra.mxu0 0.0
      %1811 = vmatprep.subr.mxu0 0.0
      %1812 = vmatpush2.msra.mxu0 0.0
      %1813 = vmatprep.subr.mxu0 0.0
      %1814 = vmatpush2.msra.mxu0 0.0
      %1815 = vmatprep.subr.mxu0 0.0
      %1816 = vmatpush2.msra.mxu0 0.0
      %1817 = vmatprep.subr.mxu0 0.0
      %1818 = vmatpush2.msra.mxu0 0.0
      %1819 = vmatprep.subr.mxu0 0.0
      %1820 = vmatpush2.msra.mxu0 0.0
      %1821 = vmatprep.subr.mxu0 0.0
      %1822 = vmatpush2.msra.mxu0 0.0
      %1823 = vmatprep.subr.mxu0 0.0
      %1824 = vmatpush2.msra.mxu0 0.0
      %1825 = vmatprep.subr.mxu0 0.0
      %1826 = vmatpush2.msra.mxu0 0.0
      %1827 = vmatprep.subr.mxu0 0.0
      %1828 = vmatpush2.msra.mxu0 0.0
      %1829 = vmatprep.subr.mxu0 0.0
      %1830 = vmatpush2.msra.mxu0 0.0
      %1831 = vmatprep.subr.mxu0 0.0
      %1832 = vmatpush2.msra.mxu0 0.0
      %1833 = vmatprep.subr.mxu0 0.0
      %1834 = vmatpush2.msra.mxu0 0.0
      %1835 = vmatprep.subr.mxu0 0.0
      %1836 = vmatpush2.msra.mxu0 0.0
      %1837 = vmatprep.mubr.f32.mxu0 0.0
      %1838 = vmatmul.mubr.f32.gmra.mxu0 %v1768
      %v1839 = vpop.f32.mrf.mxu0
      %v1840 = vadd.f32 0.0, %v1839
      %v1841 = vpop.f32.mrf.mxu0
      %v1842 = vadd.f32 0.0, %v1841
      %1843 = vmatprep.mubr.f32.mxu0 0.0
      %1844 = vmatmul.mubr.f32.gmra.mxu0 %v1771
      %v1845 = vpop.f32.mrf.mxu0
      %v1846 = vadd.f32 0.0, %v1845
      %v1847 = vpop.f32.mrf.mxu0
      %v1848 = vadd.f32 0.0, %v1847
      %1849 = vdwg.mxu0
      %1850 = vmatprep.subr.mxu0 0.0
      %1851 = vmatpush1.msra.mxu0 0.0
      %1852 = vmatprep.subr.mxu0 0.0
      %1853 = vmatpush1.msra.mxu0 0.0
      %1854 = vmatprep.subr.mxu0 0.0
      %1855 = vmatpush1.msra.mxu0 0.0
      %1856 = vmatprep.subr.mxu0 0.0
      %1857 = vmatpush1.msra.mxu0 0.0
      %1858 = vmatprep.subr.mxu0 0.0
      %1859 = vmatpush1.msra.mxu0 0.0
      %1860 = vmatprep.subr.mxu0 0.0
      %1861 = vmatpush1.msra.mxu0 0.0
      %1862 = vmatprep.subr.mxu0 0.0
      %1863 = vmatpush1.msra.mxu0 0.0
      %1864 = vmatprep.subr.mxu0 0.0
      %1865 = vmatpush1.msra.mxu0 0.0
      %1866 = vmatprep.subr.mxu0 0.0
      %1867 = vmatpush1.msra.mxu0 0.0
      %1868 = vmatprep.subr.mxu0 0.0
      %1869 = vmatpush1.msra.mxu0 0.0
      %1870 = vmatprep.subr.mxu0 0.0
      %1871 = vmatpush1.msra.mxu0 0.0
      %1872 = vmatprep.subr.mxu0 0.0
      %1873 = vmatpush1.msra.mxu0 0.0
      %1874 = vmatprep.subr.mxu0 0.0
      %1875 = vmatpush1.msra.mxu0 0.0
      %1876 = vmatprep.subr.mxu0 0.0
      %1877 = vmatpush1.msra.mxu0 0.0
      %1878 = vmatprep.subr.mxu0 0.0
      %1879 = vmatpush1.msra.mxu0 %v1760
      %1880 = vmatprep.subr.mxu0 0.0
      %1881 = vmatpush1.msra.mxu0 %v1757
      %1882 = vmatprep.subr.mxu0 0.0
      %1883 = vmatpush2.msra.mxu0 0.0
      %1884 = vmatprep.subr.mxu0 0.0
      %1885 = vmatpush2.msra.mxu0 0.0
      %1886 = vmatprep.subr.mxu0 0.0
      %1887 = vmatpush2.msra.mxu0 0.0
      %1888 = vmatprep.subr.mxu0 0.0
      %1889 = vmatpush2.msra.mxu0 0.0
      %1890 = vmatprep.subr.mxu0 0.0
      %1891 = vmatpush2.msra.mxu0 0.0
      %1892 = vmatprep.subr.mxu0 0.0
      %1893 = vmatpush2.msra.mxu0 0.0
      %1894 = vmatprep.subr.mxu0 0.0
      %1895 = vmatpush2.msra.mxu0 0.0
      %1896 = vmatprep.subr.mxu0 0.0
      %1897 = vmatpush2.msra.mxu0 0.0
      %1898 = vmatprep.subr.mxu0 0.0
      %1899 = vmatpush2.msra.mxu0 0.0
      %1900 = vmatprep.subr.mxu0 0.0
      %1901 = vmatpush2.msra.mxu0 0.0
      %1902 = vmatprep.subr.mxu0 0.0
      %1903 = vmatpush2.msra.mxu0 0.0
      %1904 = vmatprep.subr.mxu0 0.0
      %1905 = vmatpush2.msra.mxu0 0.0
      %1906 = vmatprep.subr.mxu0 0.0
      %1907 = vmatpush2.msra.mxu0 0.0
      %1908 = vmatprep.subr.mxu0 0.0
      %1909 = vmatpush2.msra.mxu0 0.0
      %1910 = vmatprep.subr.mxu0 0.0
      %1911 = vmatpush2.msra.mxu0 0.0
      %1912 = vmatprep.subr.mxu0 0.0
      %1913 = vmatpush2.msra.mxu0 0.0
      %1914 = vmatprep.mubr.f32.mxu0 0.0
      %1915 = vmatmul.mubr.f32.gmra.mxu0 %v1768
      %v1916 = vpop.f32.mrf.mxu0
      %v1917 = vadd.f32 0.0, %v1916
      %v1918 = vpop.f32.mrf.mxu0
      %1919 = vmatprep.mubr.f32.mxu0 0.0
      %1920 = vmatmul.mubr.f32.gmra.mxu0 %v1771
      %v1921 = vpop.f32.mrf.mxu0
      %v1922 = vadd.f32 0.0, %v1921
      %v1923 = vpop.f32.mrf.mxu0
      %1924 = vdwg.mxu0
      %v1925 = vadd.f32 %v1730, %v1840
      %v1926 = vadd.f32 %v1731, %v1842
      %v1927 = vadd.f32 %v1732, %v1917
      %v1928 = vadd.f32 %v1733, %v1846
      %v1929 = vadd.f32 %v1734, %v1848
      %v1930 = vadd.f32 %v1735, %v1922
      %v1931 = vld [vmem:[%s4 + $0x80] sm:$0xff]
      %v1932 = vld [vmem:[%s4 + $0x88] sm:$0xff]
      %1933 = vrot.lane.b32.xlu0 %v1332, 109
      %v1934 = vpop.permute.xlu0 %1933
      %1935 = vrot.lane.b32.xlu0 %v1333, 109
      %v1936 = vpop.permute.xlu0 %1935
      %1937 = vrot.lane.b32.xlu0 %v1334, 109
      %v1938 = vpop.permute.xlu0 %1937
      %1939 = vrot.lane.b32.xlu0 %v1335, 109
      %v1940 = vpop.permute.xlu0 %1939
      %1941 = vrot.lane.b32.xlu0 %v1336, 109
      %v1942 = vpop.permute.xlu0 %1941
      %1943 = vrot.lane.b32.xlu0 %v1337, 109
      %v1944 = vpop.permute.xlu0 %1943
      %1945 = vrot.lane.b32.xlu0 %v1338, 109
      %v1946 = vpop.permute.xlu0 %1945
      %1947 = vrot.lane.b32.xlu0 %v1339, 109
      %v1948 = vpop.permute.xlu0 %1947
      %vm1949 = vcmask 891904
      %v1950 = vsel %vm1949, %v1934, %v1936
      %v1951 = vsel %vm1949, %v1936, %v1938
      %v1952 = vsel %vm1949, %v1938, %v1940
      %v1953 = vsel %vm1949, %v1942, %v1944
      %v1954 = vsel %vm1949, %v1944, %v1946
      %v1955 = vsel %vm1949, %v1946, %v1948
      %v1963 = vsel %vm428, %v1931, 0
      %v1966 = vsel %vm428, %v1932, 0
      %1968 = vmatprep.subr.mxu0 0.0
      %1969 = vmatpush1.msra.mxu0 0.0
      %1970 = vmatprep.subr.mxu0 0.0
      %1971 = vmatpush1.msra.mxu0 0.0
      %1972 = vmatprep.subr.mxu0 0.0
      %1973 = vmatpush1.msra.mxu0 0.0
      %1974 = vmatprep.subr.mxu0 0.0
      %1975 = vmatpush1.msra.mxu0 0.0
      %1976 = vmatprep.subr.mxu0 0.0
      %1977 = vmatpush1.msra.mxu0 0.0
      %1978 = vmatprep.subr.mxu0 0.0
      %1979 = vmatpush1.msra.mxu0 0.0
      %1980 = vmatprep.subr.mxu0 0.0
      %1981 = vmatpush1.msra.mxu0 0.0
      %1982 = vmatprep.subr.mxu0 0.0
      %1983 = vmatpush1.msra.mxu0 0.0
      %1984 = vmatprep.subr.mxu0 0.0
      %1985 = vmatpush1.msra.mxu0 0.0
      %1986 = vmatprep.subr.mxu0 0.0
      %1987 = vmatpush1.msra.mxu0 0.0
      %1988 = vmatprep.subr.mxu0 0.0
      %1989 = vmatpush1.msra.mxu0 0.0
      %1990 = vmatprep.subr.mxu0 0.0
      %1991 = vmatpush1.msra.mxu0 0.0
      %1992 = vmatprep.subr.mxu0 0.0
      %1993 = vmatpush1.msra.mxu0 0.0
      %1994 = vmatprep.subr.mxu0 0.0
      %1995 = vmatpush1.msra.mxu0 0.0
      %1996 = vmatprep.subr.mxu0 %v1954
      %1997 = vmatpush1.msra.mxu0 %v1953
      %1998 = vmatprep.subr.mxu0 %v1951
      %1999 = vmatpush1.msra.mxu0 %v1950
      %2000 = vmatprep.subr.mxu0 0.0
      %2001 = vmatpush2.msra.mxu0 0.0
      %2002 = vmatprep.subr.mxu0 0.0
      %2003 = vmatpush2.msra.mxu0 0.0
      %2004 = vmatprep.subr.mxu0 0.0
      %2005 = vmatpush2.msra.mxu0 0.0
      %2006 = vmatprep.subr.mxu0 0.0
      %2007 = vmatpush2.msra.mxu0 0.0
      %2008 = vmatprep.subr.mxu0 0.0
      %2009 = vmatpush2.msra.mxu0 0.0
      %2010 = vmatprep.subr.mxu0 0.0
      %2011 = vmatpush2.msra.mxu0 0.0
      %2012 = vmatprep.subr.mxu0 0.0
      %2013 = vmatpush2.msra.mxu0 0.0
      %2014 = vmatprep.subr.mxu0 0.0
      %2015 = vmatpush2.msra.mxu0 0.0
      %2016 = vmatprep.subr.mxu0 0.0
      %2017 = vmatpush2.msra.mxu0 0.0
      %2018 = vmatprep.subr.mxu0 0.0
      %2019 = vmatpush2.msra.mxu0 0.0
      %2020 = vmatprep.subr.mxu0 0.0
      %2021 = vmatpush2.msra.mxu0 0.0
      %2022 = vmatprep.subr.mxu0 0.0
      %2023 = vmatpush2.msra.mxu0 0.0
      %2024 = vmatprep.subr.mxu0 0.0
      %2025 = vmatpush2.msra.mxu0 0.0
      %2026 = vmatprep.subr.mxu0 0.0
      %2027 = vmatpush2.msra.mxu0 0.0
      %2028 = vmatprep.subr.mxu0 0.0
      %2029 = vmatpush2.msra.mxu0 0.0
      %2030 = vmatprep.subr.mxu0 0.0
      %2031 = vmatpush2.msra.mxu0 0.0
      %2032 = vmatprep.mubr.f32.mxu0 0.0
      %2033 = vmatmul.mubr.f32.gmra.mxu0 %v1963
      %v2034 = vpop.f32.mrf.mxu0
      %v2035 = vadd.f32 0.0, %v2034
      %v2036 = vpop.f32.mrf.mxu0
      %v2037 = vadd.f32 0.0, %v2036
      %2038 = vmatprep.mubr.f32.mxu0 0.0
      %2039 = vmatmul.mubr.f32.gmra.mxu0 %v1966
      %v2040 = vpop.f32.mrf.mxu0
      %v2041 = vadd.f32 0.0, %v2040
      %v2042 = vpop.f32.mrf.mxu0
      %v2043 = vadd.f32 0.0, %v2042
      %2044 = vdwg.mxu0
      %2045 = vmatprep.subr.mxu0 0.0
      %2046 = vmatpush1.msra.mxu0 0.0
      %2047 = vmatprep.subr.mxu0 0.0
      %2048 = vmatpush1.msra.mxu0 0.0
      %2049 = vmatprep.subr.mxu0 0.0
      %2050 = vmatpush1.msra.mxu0 0.0
      %2051 = vmatprep.subr.mxu0 0.0
      %2052 = vmatpush1.msra.mxu0 0.0
      %2053 = vmatprep.subr.mxu0 0.0
      %2054 = vmatpush1.msra.mxu0 0.0
      %2055 = vmatprep.subr.mxu0 0.0
      %2056 = vmatpush1.msra.mxu0 0.0
      %2057 = vmatprep.subr.mxu0 0.0
      %2058 = vmatpush1.msra.mxu0 0.0
      %2059 = vmatprep.subr.mxu0 0.0
      %2060 = vmatpush1.msra.mxu0 0.0
      %2061 = vmatprep.subr.mxu0 0.0
      %2062 = vmatpush1.msra.mxu0 0.0
      %2063 = vmatprep.subr.mxu0 0.0
      %2064 = vmatpush1.msra.mxu0 0.0
      %2065 = vmatprep.subr.mxu0 0.0
      %2066 = vmatpush1.msra.mxu0 0.0
      %2067 = vmatprep.subr.mxu0 0.0
      %2068 = vmatpush1.msra.mxu0 0.0
      %2069 = vmatprep.subr.mxu0 0.0
      %2070 = vmatpush1.msra.mxu0 0.0
      %2071 = vmatprep.subr.mxu0 0.0
      %2072 = vmatpush1.msra.mxu0 0.0
      %2073 = vmatprep.subr.mxu0 0.0
      %2074 = vmatpush1.msra.mxu0 %v1955
      %2075 = vmatprep.subr.mxu0 0.0
      %2076 = vmatpush1.msra.mxu0 %v1952
      %2077 = vmatprep.subr.mxu0 0.0
      %2078 = vmatpush2.msra.mxu0 0.0
      %2079 = vmatprep.subr.mxu0 0.0
      %2080 = vmatpush2.msra.mxu0 0.0
      %2081 = vmatprep.subr.mxu0 0.0
      %2082 = vmatpush2.msra.mxu0 0.0
      %2083 = vmatprep.subr.mxu0 0.0
      %2084 = vmatpush2.msra.mxu0 0.0
      %2085 = vmatprep.subr.mxu0 0.0
      %2086 = vmatpush2.msra.mxu0 0.0
      %2087 = vmatprep.subr.mxu0 0.0
      %2088 = vmatpush2.msra.mxu0 0.0
      %2089 = vmatprep.subr.mxu0 0.0
      %2090 = vmatpush2.msra.mxu0 0.0
      %2091 = vmatprep.subr.mxu0 0.0
      %2092 = vmatpush2.msra.mxu0 0.0
      %2093 = vmatprep.subr.mxu0 0.0
      %2094 = vmatpush2.msra.mxu0 0.0
      %2095 = vmatprep.subr.mxu0 0.0
      %2096 = vmatpush2.msra.mxu0 0.0
      %2097 = vmatprep.subr.mxu0 0.0
      %2098 = vmatpush2.msra.mxu0 0.0
      %2099 = vmatprep.subr.mxu0 0.0
      %2100 = vmatpush2.msra.mxu0 0.0
      %2101 = vmatprep.subr.mxu0 0.0
      %2102 = vmatpush2.msra.mxu0 0.0
      %2103 = vmatprep.subr.mxu0 0.0
      %2104 = vmatpush2.msra.mxu0 0.0
      %2105 = vmatprep.subr.mxu0 0.0
      %2106 = vmatpush2.msra.mxu0 0.0
      %2107 = vmatprep.subr.mxu0 0.0
      %2108 = vmatpush2.msra.mxu0 0.0
      %2109 = vmatprep.mubr.f32.mxu0 0.0
      %2110 = vmatmul.mubr.f32.gmra.mxu0 %v1963
      %v2111 = vpop.f32.mrf.mxu0
      %v2112 = vadd.f32 0.0, %v2111
      %v2113 = vpop.f32.mrf.mxu0
      %2114 = vmatprep.mubr.f32.mxu0 0.0
      %2115 = vmatmul.mubr.f32.gmra.mxu0 %v1966
      %v2116 = vpop.f32.mrf.mxu0
      %v2117 = vadd.f32 0.0, %v2116
      %v2118 = vpop.f32.mrf.mxu0
      %2119 = vdwg.mxu0
      %v2120 = vadd.f32 %v1925, %v2035
      %v2121 = vadd.f32 %v1926, %v2037
      %v2122 = vadd.f32 %v1927, %v2112
      %v2123 = vadd.f32 %v1928, %v2041
      %v2124 = vadd.f32 %v1929, %v2043
      %v2125 = vadd.f32 %v1930, %v2117
      %v2126 = vmax.f32 %v2120, 0.0
      %v2127 = vmax.f32 %v2121, 0.0
      %v2128 = vmax.f32 %v2122, 0.0
      %v2129 = vmax.f32 %v2123, 0.0
      %v2130 = vmax.f32 %v2124, 0.0
      %v2131 = vmax.f32 %v2125, 0.0
      %v2132 = vadd.f32 %v2126, %v304
      %v2133 = vadd.f32 %v2127, %v305
      %v2134 = vadd.f32 %v2128, %v306
      %v2135 = vadd.f32 %v2129, %v307
      %v2136 = vadd.f32 %v2130, %v308
      %v2137 = vadd.f32 %v2131, %v309
      %v2138 = vmul.f32 %v2132, %v351
      %v2139 = vmul.f32 %v2133, %v355
      %v2140 = vmul.f32 %v2134, %v359
      %v2141 = vmul.f32 %v2135, %v351
      %v2142 = vmul.f32 %v2136, %v355
      %v2143 = vmul.f32 %v2137, %v359
      %2144 = vst [vmem:[%s293] sm:$0xff] %v2138
      %2145 = vst [vmem:[%s293 + $0x8] sm:$0xff] %v2139
      %2146 = vst [vmem:[%s293 + $0x10] sm:$0xff] %v2140
      %2147 = vst [vmem:[%s293 + $0x18] sm:$0xff] %v2141
      %2148 = vst [vmem:[%s293 + $0x20] sm:$0xff] %v2142
      %2149 = vst [vmem:[%s293 + $0x28] sm:$0xff] %v2143
      %v2150 = vadd.f32 %v2138, %v2139
      %v2151 = vadd.f32 %v2150, %v2140
      %2152 = vadd.xlane.f32.xlu0 %v2151
      %v2153 = vpop.xlane.xlu0 %2152
      %v2154 = vadd.f32 %v2141, %v2142
      %v2155 = vadd.f32 %v2154, %v2143
      %2156 = vadd.xlane.f32.xlu0 %v2155
      %v2157 = vpop.xlane.xlu0 %2156
      %2158 = vst.msk [vmem:[%s298] sm:$0xff] %vm987, %v2153
      %2159 = vst.msk [vmem:[%s298 + $0x8] sm:$0xff] %vm987, %v2157
      %v2160 = vmul.f32 %v2138, %v2138
      %v2161 = vmul.f32 %v2139, %v2139
      %v2162 = vmul.f32 %v2140, %v2140
      %v2163 = vmul.f32 %v2141, %v2141
      %v2164 = vmul.f32 %v2142, %v2142
      %v2165 = vmul.f32 %v2143, %v2143
      %v2166 = vadd.f32 %v2160, %v2161
      %v2167 = vadd.f32 %v2166, %v2162
      %2168 = vadd.xlane.f32.xlu0 %v2167
      %v2169 = vpop.xlane.xlu0 %2168
      %v2170 = vadd.f32 %v2163, %v2164
      %v2171 = vadd.f32 %v2170, %v2165
      %2172 = vadd.xlane.f32.xlu0 %v2171
      %v2173 = vpop.xlane.xlu0 %2172
      %2174 = vst.msk [vmem:[%s303] sm:$0xff] %vm987, %v2169
      %2175 = vst.msk [vmem:[%s303 + $0x8] sm:$0xff] %vm987, %v2173
      %p2176 = scmp.lt.s32.totalorder %s19, 1
      %s2177 = scalar_select %p2176, %s19, 1
      %s2178 = smul.addr %s2177, 6
      %s2179 = smul.addr %s2178, 8
      %s2180 = scalar_lea.vmem %s5, %s2179
      %p2181 = scmp.lt.s32.totalorder %s19, 1
      %s2182 = scalar_select %p2181, %s19, 1
      %s2183 = smul.addr %s2182, 2
      %s2184 = smul.addr %s2183, 8
      %s2185 = scalar_lea.vmem %s6, %s2184
      %p2186 = scmp.lt.s32.totalorder %s19, 1
      %s2187 = scalar_select %p2186, %s19, 1
      %s2188 = smul.addr %s2187, 2
      %s2189 = smul.addr %s2188, 8
      %s2190 = scalar_lea.vmem %s7, %s2189
      // Predicated region
      $region41: #{eb_deep_basic_block.5} parent=39 // pred_check
        %p2191 = pneg %p147
      $region42: #{eb_deep_basic_block.5} parent=39 // pred_check_branch
        %2193 = sbr.rel (%p2191) target = $region44
      $region43: #{eb_deep_basic_block.5} parent=39 // pred_region
        _
      $region44: #{eb_deep_basic_block.5} parent=39 // pred_fallthru
        _
      // Predicated region
      $region45: #{eb_deep_basic_block.5} parent=39 // pred_check
        %p2194 = pneg %p173
      $region46: #{eb_deep_basic_block.5} parent=39 // pred_check_branch
        %2196 = sbr.rel (%p2194) target = $region48
      $region47: #{eb_deep_basic_block.5} parent=39 // pred_region
        _
      $region48: #{eb_deep_basic_block.5} parent=39 // pred_fallthru
        _
      // Predicated region
      $region49: #{eb_deep_basic_block.5} parent=39 // pred_check
        %p2197 = pneg %p199
      $region50: #{eb_deep_basic_block.5} parent=39 // pred_check_branch
        %2199 = sbr.rel (%p2197) target = $region52
      $region51: #{eb_deep_basic_block.5} parent=39 // pred_region
        _
      $region52: #{eb_deep_basic_block.5} parent=39 // pred_fallthru
        _
    $region40: #{eb_deep_basic_block.5} parent=5 // pred_fallthru
      _
    %p2200 = scmp.le.s32.totalorder 2, %s14
    // Predicated region
    $region53: #{eb_deep_basic_block.5} parent=5 // pred_check
      %p2201 = pneg %p2200
    $region54: #{eb_deep_basic_block.5} parent=5 // pred_check_branch
      %2203 = sbr.rel (%p2201) target = $region56
    $region55: #{eb_deep_basic_block.5} parent=5 // pred_region
      %s2204 = ssub.s32 %s14, 2
      // Predicated region
      $region57: #{eb_deep_basic_block.5} parent=55 // pred_check
        %p2205 = pneg %p153
      $region58: #{eb_deep_basic_block.5} parent=55 // pred_check_branch
        %2207 = sbr.rel (%p2205) target = $region60
      $region59: #{eb_deep_basic_block.5} parent=55 // pred_region
        %p2208 = scmp.lt.s32.totalorder %s20, 1
        %s2209 = scalar_select %p2208, %s20, 1
        %s2210 = smul.addr %s2209, 6
        %s2211 = smul.addr %s2210, 8
        %s2212 = scalar_lea.vmem %s5, %s2211
      $region60: #{eb_deep_basic_block.5} parent=55 // pred_fallthru
        _
      // Predicated region
      $region61: #{eb_deep_basic_block.5} parent=55 // pred_check
        %p2213 = pneg %p179
      $region62: #{eb_deep_basic_block.5} parent=55 // pred_check_branch
        %2215 = sbr.rel (%p2213) target = $region64
      $region63: #{eb_deep_basic_block.5} parent=55 // pred_region
        %p2216 = scmp.lt.s32.totalorder %s20, 1
        %s2217 = scalar_select %p2216, %s20, 1
        %s2218 = smul.addr %s2217, 2
        %s2219 = smul.addr %s2218, 8
        %s2220 = scalar_lea.vmem %s6, %s2219
      $region64: #{eb_deep_basic_block.5} parent=55 // pred_fallthru
        _
      // Predicated region
      $region65: #{eb_deep_basic_block.5} parent=55 // pred_check
        %p2221 = pneg %p205
      $region66: #{eb_deep_basic_block.5} parent=55 // pred_check_branch
        %2223 = sbr.rel (%p2221) target = $region68
      $region67: #{eb_deep_basic_block.5} parent=55 // pred_region
        %p2224 = scmp.lt.s32.totalorder %s20, 1
        %s2225 = scalar_select %p2224, %s20, 1
        %s2226 = smul.addr %s2225, 2
        %s2227 = smul.addr %s2226, 8
        %s2228 = scalar_lea.vmem %s7, %s2227
      $region68: #{eb_deep_basic_block.5} parent=55 // pred_fallthru
        _
    $region56: #{eb_deep_basic_block.5} parent=5 // pred_fallthru
      _
  $region6: #{eb_deep_basic_block.5} parent=0 // loop_footer
    %s18 = sadd.s32 1, %s14
  $region7: #{eb_deep_basic_block.5} parent=0 // loop_footer_branch
    %13 = sbr.rel target = $region3
  $region8: #{eb_deep_basic_block.5} parent=0 // loop_exit
    _

</llo_original>
